<compile_context>
chip_gen: v6e
topology: v6e:2x2x1
jax: 0.10.0
libtpu: 0.0.40
codegen_flags: <defaults>
</compile_context>

<pallas_src>
import math
import jax
import jax.numpy as jnp
from jax.experimental import pallas as pl
from jax.experimental.pallas import tpu as pltpu

# ----------------------------- config (matches module constants) -------------
B = 4                 # batch           (module-level B)
T = 32                # sequence length (module-level T)
N_EMBD = 128          # C
N_HEAD = 4
HEAD_DIM = N_EMBD // N_HEAD      # 32
BLOCK_SIZE = 32                  # causal-mask buffer size (>= T)
BT = B * T

NEG_BIG = -1e30


# ------------------------------- fused kernel --------------------------------
def attn_kernel(x_ref, wqkv_ref, bqkv_ref, wproj_ref, bproj_ref, o_ref):
    # Fold batch into the matmul M dimension: (B, T, C) -> (B*T, C).
    x = x_ref[...].reshape(BT, N_EMBD)

    # QKV projection: one lane-dense (128,128)x(128,384) bf16 matmul, f32 accumulation.
    qkv = jnp.dot(x.astype(jnp.bfloat16), wqkv_ref[...],
                  preferred_element_type=jnp.float32) + bqkv_ref[...]

    # Additive causal bias (0 / -1e30), built once in f32.
    row = jax.lax.broadcasted_iota(jnp.int32, (T, T), 0)
    col = jax.lax.broadcasted_iota(jnp.int32, (T, T), 1)
    causal_bias = jnp.where(row >= col, 0.0, NEG_BIG).astype(jnp.float32)

    scale = 1.0 / math.sqrt(HEAD_DIM)

    y_heads = []
    for h in range(N_HEAD):
        lo = h * HEAD_DIM
        q = qkv[:, 0 * N_EMBD + lo:0 * N_EMBD + lo + HEAD_DIM].reshape(B, T, HEAD_DIM)
        k = qkv[:, 1 * N_EMBD + lo:1 * N_EMBD + lo + HEAD_DIM].reshape(B, T, HEAD_DIM)
        v = qkv[:, 2 * N_EMBD + lo:2 * N_EMBD + lo + HEAD_DIM].reshape(B, T, HEAD_DIM)

        # Batched (over B) attention scores: (B, T, T), bf16 in / f32 accumulation.
        s = jnp.einsum('bqd,bkd->bqk',
                       q.astype(jnp.bfloat16), k.astype(jnp.bfloat16),
                       preferred_element_type=jnp.float32)
        s = s * scale + causal_bias[None, :, :]

        # Explicit softmax; divide goes to the EUP via approx reciprocal.
        m = jnp.max(s, axis=-1, keepdims=True)
        p = jnp.exp(s - m)
        denom = jnp.sum(p, axis=-1, keepdims=True)
        p = p * pl.reciprocal(denom, approx=True)

        y = jnp.einsum('bqk,bkd->bqd',
                       p.astype(jnp.bfloat16), v.astype(jnp.bfloat16),
                       preferred_element_type=jnp.float32)
        y_heads.append(y.reshape(BT, HEAD_DIM))

    # Lane-dense (B*T, 128) slab for the output projection.
    y = jnp.concatenate(y_heads, axis=-1)
    out = jnp.dot(y.astype(jnp.bfloat16), wproj_ref[...],
                  preferred_element_type=jnp.float32) + bproj_ref[...]
    o_ref[...] = out.reshape(B, T, N_EMBD)


# --------------------------------- wrapper ------------------------------------
def causal_self_attention(x, w_qkv, b_qkv, w_proj, b_proj):
    """x: (B, T, C) f32; weights pre-transposed as (in, out) bf16; biases (1, N) f32."""
    def vmem():
        return pl.BlockSpec(memory_space=pltpu.MemorySpace.VMEM)

    flops = (2 * BT * N_EMBD * 3 * N_EMBD                 # qkv projection
             + 2 * 2 * B * N_HEAD * T * T * HEAD_DIM      # scores + weighted sum
             + 2 * BT * N_EMBD * N_EMBD)                  # output projection
    transcendentals = B * N_HEAD * T * T + B * N_HEAD * T # exp + reciprocal
    bytes_accessed = (x.size * 4 + w_qkv.size * 2 + b_qkv.size * 4
                      + w_proj.size * 2 + b_proj.size * 4 + BT * N_EMBD * 4)

    return pl.pallas_call(
        attn_kernel,
        out_shape=jax.ShapeDtypeStruct((B, T, N_EMBD), jnp.float32),
        in_specs=[vmem() for _ in range(5)],
        out_specs=vmem(),
        cost_estimate=pl.CostEstimate(flops=flops,
                                      transcendentals=transcendentals,
                                      bytes_accessed=bytes_accessed),
    )(x, w_qkv, b_qkv, w_proj, b_proj)


# --------------------------- pure-JAX reference --------------------------------
def reference(x, w_qkv, b_qkv, w_proj, b_proj):
    qkv = x @ w_qkv.astype(jnp.float32) + b_qkv
    q, k, v = jnp.split(qkv, 3, axis=-1)

    def heads(t):
        return t.reshape(B, T, N_HEAD, HEAD_DIM).transpose(0, 2, 1, 3)

    q, k, v = heads(q), heads(k), heads(v)
    s = (q @ jnp.swapaxes(k, -1, -2)) / math.sqrt(HEAD_DIM)
    mask = jnp.tril(jnp.ones((T, T), dtype=bool))
    s = jnp.where(mask[None, None], s, -jnp.inf)
    p = jax.nn.softmax(s, axis=-1)
    y = (p @ v).transpose(0, 2, 1, 3).reshape(B, T, N_EMBD)
    return y @ w_proj.astype(jnp.float32) + b_proj


# ----------------------------------- main ---------------------------------------
if __name__ == "__main__":
    key = jax.random.PRNGKey(0)
    kx, k1, k2, k3, k4 = jax.random.split(key, 5)
    std = 0.02
    x = jax.random.normal(kx, (B, T, N_EMBD), dtype=jnp.float32)
    w_qkv = (std * jax.random.normal(k1, (N_EMBD, 3 * N_EMBD))).astype(jnp.bfloat16)
    b_qkv = (std * jax.random.normal(k2, (1, 3 * N_EMBD))).astype(jnp.float32)
    w_proj = (std * jax.random.normal(k3, (N_EMBD, N_EMBD))).astype(jnp.bfloat16)
    b_proj = (std * jax.random.normal(k4, (1, N_EMBD))).astype(jnp.float32)

    out = jax.jit(causal_self_attention)(x, w_qkv, b_qkv, w_proj, b_proj)
    out = jax.block_until_ready(out)
    assert out.shape == (B, T, N_EMBD) and out.dtype == jnp.float32

    ref = reference(x, w_qkv, b_qkv, w_proj, b_proj)
    rel_err = float(jnp.max(jnp.abs(out - ref)) / (jnp.max(jnp.abs(ref)) + 1e-6))
    assert rel_err < 0.1, f"kernel/reference mismatch: rel_err={rel_err}"
    print("KERNEL_OK")
</pallas_src>

<mosaic_0001>
module attributes {stable_mosaic.version = 11 : i64} {
  func.func @attn_kernel(%arg0: memref<4x32x128xf32, #tpu.memory_space<vmem>>, %arg1: memref<128x384xbf16, #tpu.memory_space<vmem>>, %arg2: memref<1x384xf32, #tpu.memory_space<vmem>>, %arg3: memref<128x128xbf16, #tpu.memory_space<vmem>>, %arg4: memref<1x128xf32, #tpu.memory_space<vmem>>, %arg5: memref<4x32x128xf32, #tpu.memory_space<vmem>>) attributes {dimension_semantics = [], scalar_prefetch = 0 : i64, scratch_operands = 0 : i64, tpu.core_type = #tpu.core_type<tc>} {
    %c0 = arith.constant 0 : index
    %c0_0 = arith.constant 0 : index
    %c0_1 = arith.constant 0 : index
    %0 = vector.load %arg0[%c0, %c0_0, %c0_1] : memref<4x32x128xf32, #tpu.memory_space<vmem>>, vector<4x32x128xf32>
    %1 = vector.shape_cast %0 : vector<4x32x128xf32> to vector<128x128xf32>
    %2 = arith.truncf %1 : vector<128x128xf32> to vector<128x128xbf16>
    %c0_2 = arith.constant 0 : index
    %c0_3 = arith.constant 0 : index
    %3 = vector.load %arg1[%c0_2, %c0_3] : memref<128x384xbf16, #tpu.memory_space<vmem>>, vector<128x384xbf16>
    %cst = arith.constant dense<0.000000e+00> : vector<128x384xf32>
    %4 = tpu.matmul %2, %3, %cst {dimension_numbers = #tpu.dot_dimension_numbers<[1], [0], [0], [1], [0, 0, 1, 1], [], []>} : vector<128x128xbf16>, vector<128x384xbf16>, vector<128x384xf32> -> vector<128x384xf32>
    %c0_4 = arith.constant 0 : index
    %c0_5 = arith.constant 0 : index
    %5 = vector.load %arg2[%c0_4, %c0_5] : memref<1x384xf32, #tpu.memory_space<vmem>>, vector<1x384xf32>
    %6 = vector.broadcast %5 : vector<1x384xf32> to vector<128x384xf32>
    %7 = arith.addf %4, %6 : vector<128x384xf32>
    %8 = tpu.iota {dimensions = array<i32: 0>} : vector<32x32xi32>
    %9 = tpu.iota {dimensions = array<i32: 1>} : vector<32x32xi32>
    %10 = arith.cmpi sge, %8, %9 : vector<32x32xi32>
    %cst_6 = arith.constant 0.000000e+00 : f32
    %cst_7 = arith.constant -1.000000e+30 : f32
    %11 = vector.broadcast %cst_6 : f32 to vector<32x32xf32>
    %12 = vector.broadcast %cst_7 : f32 to vector<32x32xf32>
    %13 = arith.select %10, %11, %12 : vector<32x32xi1>, vector<32x32xf32>
    %14 = vector.extract_strided_slice %7 {offsets = [0, 0], sizes = [128, 32], strides = [1, 1]} : vector<128x384xf32> to vector<128x32xf32>
    %15 = vector.shape_cast %14 : vector<128x32xf32> to vector<4x32x32xf32>
    %16 = vector.extract_strided_slice %7 {offsets = [0, 128], sizes = [128, 32], strides = [1, 1]} : vector<128x384xf32> to vector<128x32xf32>
    %17 = vector.shape_cast %16 : vector<128x32xf32> to vector<4x32x32xf32>
    %18 = vector.extract_strided_slice %7 {offsets = [0, 256], sizes = [128, 32], strides = [1, 1]} : vector<128x384xf32> to vector<128x32xf32>
    %19 = vector.shape_cast %18 : vector<128x32xf32> to vector<4x32x32xf32>
    %20 = arith.truncf %15 : vector<4x32x32xf32> to vector<4x32x32xbf16>
    %21 = arith.truncf %17 : vector<4x32x32xf32> to vector<4x32x32xbf16>
    "tpu.trace_start"() <{level = 10 : i32, message = "bqd,bkd->bqk"}> : () -> ()
    %cst_8 = arith.constant dense<0.000000e+00> : vector<4x32x32xf32>
    %22 = tpu.matmul %20, %21, %cst_8 {dimension_numbers = #tpu.dot_dimension_numbers<[2], [2], [1], [1], [0, 0, 0, 1, 1, 1], [0], [0]>} : vector<4x32x32xbf16>, vector<4x32x32xbf16>, vector<4x32x32xf32> -> vector<4x32x32xf32>
    "tpu.trace_stop"() : () -> ()
    %cst_9 = arith.constant 0.176776692 : f32
    %23 = vector.broadcast %cst_9 : f32 to vector<4x32x32xf32>
    %24 = arith.mulf %22, %23 : vector<4x32x32xf32>
    %25 = vector.shape_cast %13 : vector<32x32xf32> to vector<1x32x32xf32>
    %26 = vector.broadcast %25 : vector<1x32x32xf32> to vector<4x32x32xf32>
    %27 = arith.addf %24, %26 : vector<4x32x32xf32>
    %cst_10 = arith.constant dense<0xFF800000> : vector<4x32xf32>
    %28 = vector.multi_reduction <maximumf>, %27, %cst_10 [2] : vector<4x32x32xf32> to vector<4x32xf32>
    %29 = vector.shape_cast %28 : vector<4x32xf32> to vector<4x32x1xf32>
    %30 = vector.broadcast %29 : vector<4x32x1xf32> to vector<4x32x32xf32>
    %31 = arith.subf %27, %30 : vector<4x32x32xf32>
    %32 = math.exp %31 : vector<4x32x32xf32>
    %cst_11 = arith.constant dense<0.000000e+00> : vector<4x32xf32>
    %33 = vector.multi_reduction <add>, %32, %cst_11 [2] : vector<4x32x32xf32> to vector<4x32xf32>
    %34 = vector.shape_cast %33 : vector<4x32xf32> to vector<4x32x1xf32>
    %35 = tpu.reciprocal %34 {approx = true} : vector<4x32x1xf32> -> vector<4x32x1xf32>
    %36 = vector.broadcast %35 : vector<4x32x1xf32> to vector<4x32x32xf32>
    %37 = arith.mulf %32, %36 : vector<4x32x32xf32>
    %38 = arith.truncf %37 : vector<4x32x32xf32> to vector<4x32x32xbf16>
    %39 = arith.truncf %19 : vector<4x32x32xf32> to vector<4x32x32xbf16>
    "tpu.trace_start"() <{level = 10 : i32, message = "bqk,bkd->bqd"}> : () -> ()
    %cst_12 = arith.constant dense<0.000000e+00> : vector<4x32x32xf32>
    %40 = tpu.matmul %38, %39, %cst_12 {dimension_numbers = #tpu.dot_dimension_numbers<[2], [1], [1], [2], [0, 0, 0, 1, 1, 2], [0], [0]>} : vector<4x32x32xbf16>, vector<4x32x32xbf16>, vector<4x32x32xf32> -> vector<4x32x32xf32>
    "tpu.trace_stop"() : () -> ()
    %41 = vector.shape_cast %40 : vector<4x32x32xf32> to vector<128x32xf32>
    %42 = vector.extract_strided_slice %7 {offsets = [0, 32], sizes = [128, 32], strides = [1, 1]} : vector<128x384xf32> to vector<128x32xf32>
    %43 = vector.shape_cast %42 : vector<128x32xf32> to vector<4x32x32xf32>
    %44 = vector.extract_strided_slice %7 {offsets = [0, 160], sizes = [128, 32], strides = [1, 1]} : vector<128x384xf32> to vector<128x32xf32>
    %45 = vector.shape_cast %44 : vector<128x32xf32> to vector<4x32x32xf32>
    %46 = vector.extract_strided_slice %7 {offsets = [0, 288], sizes = [128, 32], strides = [1, 1]} : vector<128x384xf32> to vector<128x32xf32>
    %47 = vector.shape_cast %46 : vector<128x32xf32> to vector<4x32x32xf32>
    %48 = arith.truncf %43 : vector<4x32x32xf32> to vector<4x32x32xbf16>
    %49 = arith.truncf %45 : vector<4x32x32xf32> to vector<4x32x32xbf16>
    "tpu.trace_start"() <{level = 10 : i32, message = "bqd,bkd->bqk"}> : () -> ()
    %cst_13 = arith.constant dense<0.000000e+00> : vector<4x32x32xf32>
    %50 = tpu.matmul %48, %49, %cst_13 {dimension_numbers = #tpu.dot_dimension_numbers<[2], [2], [1], [1], [0, 0, 0, 1, 1, 1], [0], [0]>} : vector<4x32x32xbf16>, vector<4x32x32xbf16>, vector<4x32x32xf32> -> vector<4x32x32xf32>
    "tpu.trace_stop"() : () -> ()
    %cst_14 = arith.constant 0.176776692 : f32
    %51 = vector.broadcast %cst_14 : f32 to vector<4x32x32xf32>
    %52 = arith.mulf %50, %51 : vector<4x32x32xf32>
    %53 = vector.shape_cast %13 : vector<32x32xf32> to vector<1x32x32xf32>
    %54 = vector.broadcast %53 : vector<1x32x32xf32> to vector<4x32x32xf32>
    %55 = arith.addf %52, %54 : vector<4x32x32xf32>
    %cst_15 = arith.constant dense<0xFF800000> : vector<4x32xf32>
    %56 = vector.multi_reduction <maximumf>, %55, %cst_15 [2] : vector<4x32x32xf32> to vector<4x32xf32>
    %57 = vector.shape_cast %56 : vector<4x32xf32> to vector<4x32x1xf32>
    %58 = vector.broadcast %57 : vector<4x32x1xf32> to vector<4x32x32xf32>
    %59 = arith.subf %55, %58 : vector<4x32x32xf32>
    %60 = math.exp %59 : vector<4x32x32xf32>
    %cst_16 = arith.constant dense<0.000000e+00> : vector<4x32xf32>
    %61 = vector.multi_reduction <add>, %60, %cst_16 [2] : vector<4x32x32xf32> to vector<4x32xf32>
    %62 = vector.shape_cast %61 : vector<4x32xf32> to vector<4x32x1xf32>
    %63 = tpu.reciprocal %62 {approx = true} : vector<4x32x1xf32> -> vector<4x32x1xf32>
    %64 = vector.broadcast %63 : vector<4x32x1xf32> to vector<4x32x32xf32>
    %65 = arith.mulf %60, %64 : vector<4x32x32xf32>
    %66 = arith.truncf %65 : vector<4x32x32xf32> to vector<4x32x32xbf16>
    %67 = arith.truncf %47 : vector<4x32x32xf32> to vector<4x32x32xbf16>
    "tpu.trace_start"() <{level = 10 : i32, message = "bqk,bkd->bqd"}> : () -> ()
    %cst_17 = arith.constant dense<0.000000e+00> : vector<4x32x32xf32>
    %68 = tpu.matmul %66, %67, %cst_17 {dimension_numbers = #tpu.dot_dimension_numbers<[2], [1], [1], [2], [0, 0, 0, 1, 1, 2], [0], [0]>} : vector<4x32x32xbf16>, vector<4x32x32xbf16>, vector<4x32x32xf32> -> vector<4x32x32xf32>
    "tpu.trace_stop"() : () -> ()
    %69 = vector.shape_cast %68 : vector<4x32x32xf32> to vector<128x32xf32>
    %70 = vector.extract_strided_slice %7 {offsets = [0, 64], sizes = [128, 32], strides = [1, 1]} : vector<128x384xf32> to vector<128x32xf32>
    %71 = vector.shape_cast %70 : vector<128x32xf32> to vector<4x32x32xf32>
    %72 = vector.extract_strided_slice %7 {offsets = [0, 192], sizes = [128, 32], strides = [1, 1]} : vector<128x384xf32> to vector<128x32xf32>
    %73 = vector.shape_cast %72 : vector<128x32xf32> to vector<4x32x32xf32>
    %74 = vector.extract_strided_slice %7 {offsets = [0, 320], sizes = [128, 32], strides = [1, 1]} : vector<128x384xf32> to vector<128x32xf32>
    %75 = vector.shape_cast %74 : vector<128x32xf32> to vector<4x32x32xf32>
    %76 = arith.truncf %71 : vector<4x32x32xf32> to vector<4x32x32xbf16>
    %77 = arith.truncf %73 : vector<4x32x32xf32> to vector<4x32x32xbf16>
    "tpu.trace_start"() <{level = 10 : i32, message = "bqd,bkd->bqk"}> : () -> ()
    %cst_18 = arith.constant dense<0.000000e+00> : vector<4x32x32xf32>
    %78 = tpu.matmul %76, %77, %cst_18 {dimension_numbers = #tpu.dot_dimension_numbers<[2], [2], [1], [1], [0, 0, 0, 1, 1, 1], [0], [0]>} : vector<4x32x32xbf16>, vector<4x32x32xbf16>, vector<4x32x32xf32> -> vector<4x32x32xf32>
    "tpu.trace_stop"() : () -> ()
    %cst_19 = arith.constant 0.176776692 : f32
    %79 = vector.broadcast %cst_19 : f32 to vector<4x32x32xf32>
    %80 = arith.mulf %78, %79 : vector<4x32x32xf32>
    %81 = vector.shape_cast %13 : vector<32x32xf32> to vector<1x32x32xf32>
    %82 = vector.broadcast %81 : vector<1x32x32xf32> to vector<4x32x32xf32>
    %83 = arith.addf %80, %82 : vector<4x32x32xf32>
    %cst_20 = arith.constant dense<0xFF800000> : vector<4x32xf32>
    %84 = vector.multi_reduction <maximumf>, %83, %cst_20 [2] : vector<4x32x32xf32> to vector<4x32xf32>
    %85 = vector.shape_cast %84 : vector<4x32xf32> to vector<4x32x1xf32>
    %86 = vector.broadcast %85 : vector<4x32x1xf32> to vector<4x32x32xf32>
    %87 = arith.subf %83, %86 : vector<4x32x32xf32>
    %88 = math.exp %87 : vector<4x32x32xf32>
    %cst_21 = arith.constant dense<0.000000e+00> : vector<4x32xf32>
    %89 = vector.multi_reduction <add>, %88, %cst_21 [2] : vector<4x32x32xf32> to vector<4x32xf32>
    %90 = vector.shape_cast %89 : vector<4x32xf32> to vector<4x32x1xf32>
    %91 = tpu.reciprocal %90 {approx = true} : vector<4x32x1xf32> -> vector<4x32x1xf32>
    %92 = vector.broadcast %91 : vector<4x32x1xf32> to vector<4x32x32xf32>
    %93 = arith.mulf %88, %92 : vector<4x32x32xf32>
    %94 = arith.truncf %93 : vector<4x32x32xf32> to vector<4x32x32xbf16>
    %95 = arith.truncf %75 : vector<4x32x32xf32> to vector<4x32x32xbf16>
    "tpu.trace_start"() <{level = 10 : i32, message = "bqk,bkd->bqd"}> : () -> ()
    %cst_22 = arith.constant dense<0.000000e+00> : vector<4x32x32xf32>
    %96 = tpu.matmul %94, %95, %cst_22 {dimension_numbers = #tpu.dot_dimension_numbers<[2], [1], [1], [2], [0, 0, 0, 1, 1, 2], [0], [0]>} : vector<4x32x32xbf16>, vector<4x32x32xbf16>, vector<4x32x32xf32> -> vector<4x32x32xf32>
    "tpu.trace_stop"() : () -> ()
    %97 = vector.shape_cast %96 : vector<4x32x32xf32> to vector<128x32xf32>
    %98 = vector.extract_strided_slice %7 {offsets = [0, 96], sizes = [128, 32], strides = [1, 1]} : vector<128x384xf32> to vector<128x32xf32>
    %99 = vector.shape_cast %98 : vector<128x32xf32> to vector<4x32x32xf32>
    %100 = vector.extract_strided_slice %7 {offsets = [0, 224], sizes = [128, 32], strides = [1, 1]} : vector<128x384xf32> to vector<128x32xf32>
    %101 = vector.shape_cast %100 : vector<128x32xf32> to vector<4x32x32xf32>
    %102 = vector.extract_strided_slice %7 {offsets = [0, 352], sizes = [128, 32], strides = [1, 1]} : vector<128x384xf32> to vector<128x32xf32>
    %103 = vector.shape_cast %102 : vector<128x32xf32> to vector<4x32x32xf32>
    %104 = arith.truncf %99 : vector<4x32x32xf32> to vector<4x32x32xbf16>
    %105 = arith.truncf %101 : vector<4x32x32xf32> to vector<4x32x32xbf16>
    "tpu.trace_start"() <{level = 10 : i32, message = "bqd,bkd->bqk"}> : () -> ()
    %cst_23 = arith.constant dense<0.000000e+00> : vector<4x32x32xf32>
    %106 = tpu.matmul %104, %105, %cst_23 {dimension_numbers = #tpu.dot_dimension_numbers<[2], [2], [1], [1], [0, 0, 0, 1, 1, 1], [0], [0]>} : vector<4x32x32xbf16>, vector<4x32x32xbf16>, vector<4x32x32xf32> -> vector<4x32x32xf32>
    "tpu.trace_stop"() : () -> ()
    %cst_24 = arith.constant 0.176776692 : f32
    %107 = vector.broadcast %cst_24 : f32 to vector<4x32x32xf32>
    %108 = arith.mulf %106, %107 : vector<4x32x32xf32>
    %109 = vector.shape_cast %13 : vector<32x32xf32> to vector<1x32x32xf32>
    %110 = vector.broadcast %109 : vector<1x32x32xf32> to vector<4x32x32xf32>
    %111 = arith.addf %108, %110 : vector<4x32x32xf32>
    %cst_25 = arith.constant dense<0xFF800000> : vector<4x32xf32>
    %112 = vector.multi_reduction <maximumf>, %111, %cst_25 [2] : vector<4x32x32xf32> to vector<4x32xf32>
    %113 = vector.shape_cast %112 : vector<4x32xf32> to vector<4x32x1xf32>
    %114 = vector.broadcast %113 : vector<4x32x1xf32> to vector<4x32x32xf32>
    %115 = arith.subf %111, %114 : vector<4x32x32xf32>
    %116 = math.exp %115 : vector<4x32x32xf32>
    %cst_26 = arith.constant dense<0.000000e+00> : vector<4x32xf32>
    %117 = vector.multi_reduction <add>, %116, %cst_26 [2] : vector<4x32x32xf32> to vector<4x32xf32>
    %118 = vector.shape_cast %117 : vector<4x32xf32> to vector<4x32x1xf32>
    %119 = tpu.reciprocal %118 {approx = true} : vector<4x32x1xf32> -> vector<4x32x1xf32>
    %120 = vector.broadcast %119 : vector<4x32x1xf32> to vector<4x32x32xf32>
    %121 = arith.mulf %116, %120 : vector<4x32x32xf32>
    %122 = arith.truncf %121 : vector<4x32x32xf32> to vector<4x32x32xbf16>
    %123 = arith.truncf %103 : vector<4x32x32xf32> to vector<4x32x32xbf16>
    "tpu.trace_start"() <{level = 10 : i32, message = "bqk,bkd->bqd"}> : () -> ()
    %cst_27 = arith.constant dense<0.000000e+00> : vector<4x32x32xf32>
    %124 = tpu.matmul %122, %123, %cst_27 {dimension_numbers = #tpu.dot_dimension_numbers<[2], [1], [1], [2], [0, 0, 0, 1, 1, 2], [0], [0]>} : vector<4x32x32xbf16>, vector<4x32x32xbf16>, vector<4x32x32xf32> -> vector<4x32x32xf32>
    "tpu.trace_stop"() : () -> ()
    %125 = vector.shape_cast %124 : vector<4x32x32xf32> to vector<128x32xf32>
    %126 = tpu.concatenate %41, %69, %97, %125 in 1 : vector<128x32xf32>, vector<128x32xf32>, vector<128x32xf32>, vector<128x32xf32> -> vector<128x128xf32>
    %127 = arith.truncf %126 : vector<128x128xf32> to vector<128x128xbf16>
    %c0_28 = arith.constant 0 : index
    %c0_29 = arith.constant 0 : index
    %128 = vector.load %arg3[%c0_28, %c0_29] : memref<128x128xbf16, #tpu.memory_space<vmem>>, vector<128x128xbf16>
    %cst_30 = arith.constant dense<0.000000e+00> : vector<128x128xf32>
    %129 = tpu.matmul %127, %128, %cst_30 {dimension_numbers = #tpu.dot_dimension_numbers<[1], [0], [0], [1], [0, 0, 1, 1], [], []>} : vector<128x128xbf16>, vector<128x128xbf16>, vector<128x128xf32> -> vector<128x128xf32>
    %c0_31 = arith.constant 0 : index
    %c0_32 = arith.constant 0 : index
    %130 = vector.load %arg4[%c0_31, %c0_32] : memref<1x128xf32, #tpu.memory_space<vmem>>, vector<1x128xf32>
    %131 = vector.broadcast %130 : vector<1x128xf32> to vector<128x128xf32>
    %132 = arith.addf %129, %131 : vector<128x128xf32>
    %133 = vector.shape_cast %132 : vector<128x128xf32> to vector<4x32x128xf32>
    %c0_33 = arith.constant 0 : index
    %c0_34 = arith.constant 0 : index
    %c0_35 = arith.constant 0 : index
    %134 = vector.load %arg5[%c0_33, %c0_34, %c0_35] : memref<4x32x128xf32, #tpu.memory_space<vmem>>, vector<4x32x128xf32>
    tpu.vector_store %arg5[%c0_33, %c0_34, %c0_35], %133 {strides = array<i32>} : memref<4x32x128xf32, #tpu.memory_space<vmem>>, vector<4x32x128xf32>,
    return
  }
}

</mosaic_0001>

<llo_original>
// kernel: causal_self_attention.1
$region0: #{causal_self_attention.1}
  #allocation0 [shape = 'u32[]', space=smem, size = 0x4, offset = 0x4, fixed_abs, tag = 'smem constant byte address 0x4 - core index']
  #allocation1 [shape = 'u32[144,128]{1,0:T(1,128)}', space=vmem, size = 0x12000, scoped, tag = 'internal scratch']
  %s0 = inlined_call_operand.hbm [shape: f32[4,32,128], index: 0, kind: input, shape index: {}]
  %s1 = inlined_call_operand.hbm [shape: bf16[128,384], index: 1, kind: input, shape index: {}]
  %s2 = inlined_call_operand.vmem [shape: f32[1,384], index: 2, kind: input, shape index: {}]
  %s3 = inlined_call_operand.hbm [shape: bf16[128,128], index: 3, kind: input, shape index: {}]
  %s4 = inlined_call_operand.vmem [shape: f32[1,128], index: 4, kind: input, shape index: {}]
  %s5 = inlined_call_operand.hbm [shape: f32[4,32,128], index: 5, kind: output, shape index: {}]
  %s6 = sld [smem:[#allocation0]]
  $region42: #{causal_self_attention.1} parent=0
    _
  %s8 = ssub.s32 1, %s6
  %s9 = scalar_select 0, %s8, %s6
  $region1: #{causal_self_attention.1} parent=0
    #allocation2 [shape = 'u8[65536]{0}', space=vmem, size = 0x10000, scoped, tag = 'input window, operand 0, single buffered']
    #allocation3 [shape = 's32[1]{0}', space=sflag, size = 0x4, scoped, tag = 'scoped memory for causal_self_attention.1']
    #allocation4 [shape = 's32[1]{0}', space=sflag, size = 0x4, scoped, tag = 'scoped memory for causal_self_attention.1']
    #allocation5 [shape = 'u8[98304]{0}', space=vmem, size = 0x18000, scoped, tag = 'input window, operand 1, single buffered']
    #allocation6 [shape = 's32[1]{0}', space=sflag, size = 0x4, scoped, tag = 'scoped memory for causal_self_attention.1']
    #allocation7 [shape = 'u8[32768]{0}', space=vmem, size = 0x8000, scoped, tag = 'input window, operand 3, single buffered']
    #allocation8 [shape = 'u8[65536]{0}', space=vmem, size = 0x10000, scoped, tag = 'output window, operand 0, single buffered']
    %10 = vsyncpa [#allocation3], 0
    %11 = vsyncpa [#allocation6], 0
    %12 = vsyncpa [#allocation4], 0
    // Predicated region
    $region2: #{causal_self_attention.1} parent=1 // pred_check
      _
    $region3: #{causal_self_attention.1} parent=1 // pred_check_branch
      %14 = sbr.rel (0) target = $region5
    $region4: #{causal_self_attention.1} parent=1 // pred_region
      %s16 = ssub.s32 2048, 2048
      %17 = vsyncadd [#allocation3], %s16
      %s18 = sshll.u32 [#allocation2], 4
      %s19 = int_to_ptr.vmem [resolvable:$true] %s18
      %24 = dma.hbm_to_vmem [thread:$0]  %s0, 2048, %s19, [#allocation3], 128, 128, 8
    $region5: #{causal_self_attention.1} parent=1 // pred_fallthru
      _
    // Predicated region
    $region6: #{causal_self_attention.1} parent=1 // pred_check
      _
    $region7: #{causal_self_attention.1} parent=1 // pred_check_branch
      %26 = sbr.rel (0) target = $region9
    $region8: #{causal_self_attention.1} parent=1 // pred_region
      %s28 = ssub.s32 3072, 3072
      %29 = vsyncadd [#allocation6], %s28
      %s30 = sshll.u32 [#allocation5], 4
      %s31 = int_to_ptr.vmem [resolvable:$true] %s30
      %36 = dma.hbm_to_vmem [thread:$0]  %s1, 3072, %s31, [#allocation6], 192, 192, 12
    $region9: #{causal_self_attention.1} parent=1 // pred_fallthru
      _
    // Predicated region
    $region10: #{causal_self_attention.1} parent=1 // pred_check
      _
    $region11: #{causal_self_attention.1} parent=1 // pred_check_branch
      %38 = sbr.rel (0) target = $region13
    $region12: #{causal_self_attention.1} parent=1 // pred_region
      _
    $region13: #{causal_self_attention.1} parent=1 // pred_fallthru
      _
    // Predicated region
    $region14: #{causal_self_attention.1} parent=1 // pred_check
      _
    $region15: #{causal_self_attention.1} parent=1 // pred_check_branch
      %40 = sbr.rel (0) target = $region17
    $region16: #{causal_self_attention.1} parent=1 // pred_region
      %s42 = ssub.s32 1024, 1024
      %43 = vsyncadd [#allocation6], %s42
      %s44 = sshll.u32 [#allocation7], 4
      %s45 = int_to_ptr.vmem [resolvable:$true] %s44
      %50 = dma.hbm_to_vmem [thread:$0]  %s3, 1024, %s45, [#allocation6], 64, 64, 4
    $region17: #{causal_self_attention.1} parent=1 // pred_fallthru
      _
    // Predicated region
    $region18: #{causal_self_attention.1} parent=1 // pred_check
      _
    $region19: #{causal_self_attention.1} parent=1 // pred_check_branch
      %52 = sbr.rel (0) target = $region21
    $region20: #{causal_self_attention.1} parent=1 // pred_region
      _
    $region21: #{causal_self_attention.1} parent=1 // pred_fallthru
      _
    // Predicated region
    $region22: #{causal_self_attention.1} parent=1 // pred_check
      _
    $region23: #{causal_self_attention.1} parent=1 // pred_check_branch
      %54 = sbr.rel (0) target = $region25
    $region24: #{causal_self_attention.1} parent=1 // pred_region
      %55 = dma.done [#allocation3], 2048
    $region25: #{causal_self_attention.1} parent=1 // pred_fallthru
      _
    // Predicated region
    $region26: #{causal_self_attention.1} parent=1 // pred_check
      _
    $region27: #{causal_self_attention.1} parent=1 // pred_check_branch
      %57 = sbr.rel (0) target = $region29
    $region28: #{causal_self_attention.1} parent=1 // pred_region
      %58 = dma.done [#allocation6], 3072
    $region29: #{causal_self_attention.1} parent=1 // pred_fallthru
      _
    // Predicated region
    $region30: #{causal_self_attention.1} parent=1 // pred_check
      _
    $region31: #{causal_self_attention.1} parent=1 // pred_check_branch
      %60 = sbr.rel (0) target = $region33
    $region32: #{causal_self_attention.1} parent=1 // pred_region
      %61 = dma.done [#allocation6], 1024
    $region33: #{causal_self_attention.1} parent=1 // pred_fallthru
      _
    %v63 = vld [vmem:[#allocation2] sm:$0xff]
    %v64 = vld [vmem:[#allocation2 + $0x8] sm:$0xff]
    %v65 = vld [vmem:[#allocation2 + $0x10] sm:$0xff]
    %v66 = vld [vmem:[#allocation2 + $0x18] sm:$0xff]
    %v67 = vld [vmem:[#allocation2 + $0x20] sm:$0xff]
    %v68 = vld [vmem:[#allocation2 + $0x28] sm:$0xff]
    %v69 = vld [vmem:[#allocation2 + $0x30] sm:$0xff]
    %v70 = vld [vmem:[#allocation2 + $0x38] sm:$0xff]
    %v71 = vld [vmem:[#allocation2 + $0x40] sm:$0xff]
    %v72 = vld [vmem:[#allocation2 + $0x48] sm:$0xff]
    %v73 = vld [vmem:[#allocation2 + $0x50] sm:$0xff]
    %v74 = vld [vmem:[#allocation2 + $0x58] sm:$0xff]
    %v75 = vld [vmem:[#allocation2 + $0x60] sm:$0xff]
    %v76 = vld [vmem:[#allocation2 + $0x68] sm:$0xff]
    %v77 = vld [vmem:[#allocation2 + $0x70] sm:$0xff]
    %v78 = vld [vmem:[#allocation2 + $0x78] sm:$0xff]
    %v79 = vpack.c.bf16 %v64, %v63
    %v80 = vpack.c.bf16 %v66, %v65
    %v81 = vpack.c.bf16 %v68, %v67
    %v82 = vpack.c.bf16 %v70, %v69
    %v83 = vpack.c.bf16 %v72, %v71
    %v84 = vpack.c.bf16 %v74, %v73
    %v85 = vpack.c.bf16 %v76, %v75
    %v86 = vpack.c.bf16 %v78, %v77
    %v87 = vld [vmem:[#allocation5] sm:$0xff]
    %v88 = vld [vmem:[#allocation5 + $0x8] sm:$0xf]
    %v89 = vld [vmem:[#allocation5 + $0xc] sm:$0xff]
    %v90 = vld [vmem:[#allocation5 + $0x14] sm:$0xf]
    %v91 = vld [vmem:[#allocation5 + $0x18] sm:$0xff]
    %v92 = vld [vmem:[#allocation5 + $0x20] sm:$0xf]
    %v93 = vld [vmem:[#allocation5 + $0x24] sm:$0xff]
    %v94 = vld [vmem:[#allocation5 + $0x2c] sm:$0xf]
    %v95 = vld [vmem:[#allocation5 + $0x30] sm:$0xff]
    %v96 = vld [vmem:[#allocation5 + $0x38] sm:$0xf]
    %v97 = vld [vmem:[#allocation5 + $0x3c] sm:$0xff]
    %v98 = vld [vmem:[#allocation5 + $0x44] sm:$0xf]
    %v99 = vld [vmem:[#allocation5 + $0x48] sm:$0xff]
    %v100 = vld [vmem:[#allocation5 + $0x50] sm:$0xf]
    %v101 = vld [vmem:[#allocation5 + $0x54] sm:$0xff]
    %v102 = vld [vmem:[#allocation5 + $0x5c] sm:$0xf]
    %v103 = vld [vmem:[#allocation5 + $0x60] sm:$0xff]
    %v104 = vld [vmem:[#allocation5 + $0x68] sm:$0xf]
    %v105 = vld [vmem:[#allocation5 + $0x6c] sm:$0xff]
    %v106 = vld [vmem:[#allocation5 + $0x74] sm:$0xf]
    %v107 = vld [vmem:[#allocation5 + $0x78] sm:$0xff]
    %v108 = vld [vmem:[#allocation5 + $0x80] sm:$0xf]
    %v109 = vld [vmem:[#allocation5 + $0x84] sm:$0xff]
    %v110 = vld [vmem:[#allocation5 + $0x8c] sm:$0xf]
    %v111 = vld [vmem:[#allocation5 + $0x90] sm:$0xff]
    %v112 = vld [vmem:[#allocation5 + $0x98] sm:$0xf]
    %v113 = vld [vmem:[#allocation5 + $0x9c] sm:$0xff]
    %v114 = vld [vmem:[#allocation5 + $0xa4] sm:$0xf]
    %v115 = vld [vmem:[#allocation5 + $0xa8] sm:$0xff]
    %v116 = vld [vmem:[#allocation5 + $0xb0] sm:$0xf]
    %v117 = vld [vmem:[#allocation5 + $0xb4] sm:$0xff]
    %v118 = vld [vmem:[#allocation5 + $0xbc] sm:$0xf]
    %v119 = vld [vmem:[%s2] sm:$0x7]
    %v121 = vlaneseq
    %v122 = vshrl.u32 %v121, 7
    %v123 = vsub.s32 0, %v122
    %v124 = vrot.slane %v119, %v123
    %v125 = vlaneseq
    %v126 = vshrl.u32 %v125, 7
    %v127 = vsub.s32 1, %v126
    %v128 = vrot.slane %v119, %v127
    %v129 = vlaneseq
    %v130 = vshrl.u32 %v129, 7
    %v131 = vsub.s32 2, %v130
    %v132 = vrot.slane %v119, %v131
    %v168 = vunpack.c.l.b16 %v87
    %v169 = vunpack.c.h.b16 %v87
    %v170 = vunpack.c.l.b16 %v88
    %v171 = vunpack.c.l.b16 %v89
    %v172 = vunpack.c.h.b16 %v89
    %v173 = vunpack.c.l.b16 %v90
    %v174 = vunpack.c.l.b16 %v91
    %v175 = vunpack.c.h.b16 %v91
    %v176 = vunpack.c.l.b16 %v92
    %v177 = vunpack.c.l.b16 %v93
    %v178 = vunpack.c.h.b16 %v93
    %v179 = vunpack.c.l.b16 %v94
    %v180 = vunpack.c.l.b16 %v95
    %v181 = vunpack.c.h.b16 %v95
    %v182 = vunpack.c.l.b16 %v96
    %v183 = vunpack.c.l.b16 %v97
    %v184 = vunpack.c.h.b16 %v97
    %v185 = vunpack.c.l.b16 %v98
    %v186 = vunpack.c.l.b16 %v99
    %v187 = vunpack.c.h.b16 %v99
    %v188 = vunpack.c.l.b16 %v100
    %v189 = vunpack.c.l.b16 %v101
    %v190 = vunpack.c.h.b16 %v101
    %v191 = vunpack.c.l.b16 %v102
    %v192 = vunpack.c.l.b16 %v103
    %v193 = vunpack.c.h.b16 %v103
    %v194 = vunpack.c.l.b16 %v104
    %v195 = vunpack.c.l.b16 %v105
    %v196 = vunpack.c.h.b16 %v105
    %v197 = vunpack.c.l.b16 %v106
    %v198 = vunpack.c.l.b16 %v107
    %v199 = vunpack.c.h.b16 %v107
    %v200 = vunpack.c.l.b16 %v108
    %v201 = vunpack.c.l.b16 %v109
    %v202 = vunpack.c.h.b16 %v109
    %v203 = vunpack.c.l.b16 %v110
    %v204 = vunpack.c.l.b16 %v111
    %v205 = vunpack.c.h.b16 %v111
    %v206 = vunpack.c.l.b16 %v112
    %v207 = vunpack.c.l.b16 %v113
    %v208 = vunpack.c.h.b16 %v113
    %v209 = vunpack.c.l.b16 %v114
    %v210 = vunpack.c.l.b16 %v115
    %v211 = vunpack.c.h.b16 %v115
    %v212 = vunpack.c.l.b16 %v116
    %v213 = vunpack.c.l.b16 %v117
    %v214 = vunpack.c.h.b16 %v117
    %v215 = vunpack.c.l.b16 %v118
    %v216 = vpack.c.b16 %v171, %v168
    %v217 = vpack.c.b16 %v172, %v169
    %v218 = vpack.c.b16 %v173, %v170
    %v219 = vpack.c.b16 %v177, %v174
    %v220 = vpack.c.b16 %v178, %v175
    %v221 = vpack.c.b16 %v179, %v176
    %v222 = vpack.c.b16 %v183, %v180
    %v223 = vpack.c.b16 %v184, %v181
    %v224 = vpack.c.b16 %v185, %v182
    %v225 = vpack.c.b16 %v189, %v186
    %v226 = vpack.c.b16 %v190, %v187
    %v227 = vpack.c.b16 %v191, %v188
    %v228 = vpack.c.b16 %v195, %v192
    %v229 = vpack.c.b16 %v196, %v193
    %v230 = vpack.c.b16 %v197, %v194
    %v231 = vpack.c.b16 %v201, %v198
    %v232 = vpack.c.b16 %v202, %v199
    %v233 = vpack.c.b16 %v203, %v200
    %v234 = vpack.c.b16 %v207, %v204
    %v235 = vpack.c.b16 %v208, %v205
    %v236 = vpack.c.b16 %v209, %v206
    %v237 = vpack.c.b16 %v213, %v210
    %v238 = vpack.c.b16 %v214, %v211
    %v239 = vpack.c.b16 %v215, %v212
    %264 = vmatprep.subr.bf16.mxu0 %v238
    %265 = vmatpush1.bf16.msra.mxu0 %v237
    %266 = vmatprep.subr.bf16.mxu0 %v235
    %267 = vmatpush1.bf16.msra.mxu0 %v234
    %268 = vmatprep.subr.bf16.mxu0 %v232
    %269 = vmatpush1.bf16.msra.mxu0 %v231
    %270 = vmatprep.subr.bf16.mxu0 %v229
    %271 = vmatpush1.bf16.msra.mxu0 %v228
    %272 = vmatprep.subr.bf16.mxu0 %v226
    %273 = vmatpush1.bf16.msra.mxu0 %v225
    %274 = vmatprep.subr.bf16.mxu0 %v223
    %275 = vmatpush1.bf16.msra.mxu0 %v222
    %276 = vmatprep.subr.bf16.mxu0 %v220
    %277 = vmatpush1.bf16.msra.mxu0 %v219
    %278 = vmatprep.subr.bf16.mxu0 %v217
    %279 = vmatpush1.bf16.msra.mxu0 %v216
    %280 = vmatprep.subr.bf16.mxu0 0
    %281 = vmatpush2.bf16.msra.mxu0 0
    %282 = vmatprep.subr.bf16.mxu0 0
    %283 = vmatpush2.bf16.msra.mxu0 0
    %284 = vmatprep.subr.bf16.mxu0 0
    %285 = vmatpush2.bf16.msra.mxu0 0
    %286 = vmatprep.subr.bf16.mxu0 0
    %287 = vmatpush2.bf16.msra.mxu0 0
    %288 = vmatprep.subr.bf16.mxu0 0
    %289 = vmatpush2.bf16.msra.mxu0 0
    %290 = vmatprep.subr.bf16.mxu0 0
    %291 = vmatpush2.bf16.msra.mxu0 0
    %292 = vmatprep.subr.bf16.mxu0 0
    %293 = vmatpush2.bf16.msra.mxu0 0
    %294 = vmatprep.subr.bf16.mxu0 0
    %295 = vmatpush2.bf16.msra.mxu0 0
    %296 = vmatprep.mubr.bf16.mxu0 0
    %297 = vmatmul.mubr.bf16.gmra.mxu0 %v79
    %v298 = vpop.f32.mrf.mxu0
    %v299 = vadd.f32 %v124, %v298
    %v300 = vpop.f32.mrf.mxu0
    %v301 = vadd.f32 %v128, %v300
    %v302 = vpop.f32.mrf.mxu0
    %v303 = vadd.f32 %v124, %v302
    %v304 = vpop.f32.mrf.mxu0
    %v305 = vadd.f32 %v128, %v304
    %306 = vmatprep.mubr.bf16.mxu0 0
    %307 = vmatmul.mubr.bf16.gmra.mxu0 %v80
    %v308 = vpop.f32.mrf.mxu0
    %v309 = vadd.f32 %v124, %v308
    %v310 = vpop.f32.mrf.mxu0
    %v311 = vadd.f32 %v128, %v310
    %v312 = vpop.f32.mrf.mxu0
    %v313 = vadd.f32 %v124, %v312
    %v314 = vpop.f32.mrf.mxu0
    %v315 = vadd.f32 %v128, %v314
    %316 = vmatprep.mubr.bf16.mxu0 0
    %317 = vmatmul.mubr.bf16.gmra.mxu0 %v81
    %v318 = vpop.f32.mrf.mxu0
    %v319 = vadd.f32 %v124, %v318
    %v320 = vpop.f32.mrf.mxu0
    %v321 = vadd.f32 %v128, %v320
    %v322 = vpop.f32.mrf.mxu0
    %v323 = vadd.f32 %v124, %v322
    %v324 = vpop.f32.mrf.mxu0
    %v325 = vadd.f32 %v128, %v324
    %326 = vmatprep.mubr.bf16.mxu0 0
    %327 = vmatmul.mubr.bf16.gmra.mxu0 %v82
    %v328 = vpop.f32.mrf.mxu0
    %v329 = vadd.f32 %v124, %v328
    %v330 = vpop.f32.mrf.mxu0
    %v331 = vadd.f32 %v128, %v330
    %v332 = vpop.f32.mrf.mxu0
    %v333 = vadd.f32 %v124, %v332
    %v334 = vpop.f32.mrf.mxu0
    %v335 = vadd.f32 %v128, %v334
    %336 = vmatprep.mubr.bf16.mxu0 0
    %337 = vmatmul.mubr.bf16.gmra.mxu0 %v83
    %v338 = vpop.f32.mrf.mxu0
    %v339 = vadd.f32 %v124, %v338
    %v340 = vpop.f32.mrf.mxu0
    %v341 = vadd.f32 %v128, %v340
    %v342 = vpop.f32.mrf.mxu0
    %v343 = vadd.f32 %v124, %v342
    %v344 = vpop.f32.mrf.mxu0
    %v345 = vadd.f32 %v128, %v344
    %346 = vmatprep.mubr.bf16.mxu0 0
    %347 = vmatmul.mubr.bf16.gmra.mxu0 %v84
    %v348 = vpop.f32.mrf.mxu0
    %v349 = vadd.f32 %v124, %v348
    %v350 = vpop.f32.mrf.mxu0
    %v351 = vadd.f32 %v128, %v350
    %v352 = vpop.f32.mrf.mxu0
    %v353 = vadd.f32 %v124, %v352
    %v354 = vpop.f32.mrf.mxu0
    %v355 = vadd.f32 %v128, %v354
    %356 = vmatprep.mubr.bf16.mxu0 0
    %357 = vmatmul.mubr.bf16.gmra.mxu0 %v85
    %v358 = vpop.f32.mrf.mxu0
    %v359 = vadd.f32 %v124, %v358
    %v360 = vpop.f32.mrf.mxu0
    %v361 = vadd.f32 %v128, %v360
    %v362 = vpop.f32.mrf.mxu0
    %v363 = vadd.f32 %v124, %v362
    %v364 = vpop.f32.mrf.mxu0
    %v365 = vadd.f32 %v128, %v364
    %366 = vmatprep.mubr.bf16.mxu0 0
    %367 = vmatmul.mubr.bf16.gmra.mxu0 %v86
    %v368 = vpop.f32.mrf.mxu0
    %v369 = vadd.f32 %v124, %v368
    %v370 = vpop.f32.mrf.mxu0
    %v371 = vadd.f32 %v128, %v370
    %v372 = vpop.f32.mrf.mxu0
    %v373 = vadd.f32 %v124, %v372
    %v374 = vpop.f32.mrf.mxu0
    %v375 = vadd.f32 %v128, %v374
    %376 = vdwg.mxu0
    %377 = vmatprep.subr.bf16.mxu0 0
    %378 = vmatpush1.bf16.msra.mxu0 %v239
    %379 = vmatprep.subr.bf16.mxu0 0
    %380 = vmatpush1.bf16.msra.mxu0 %v236
    %381 = vmatprep.subr.bf16.mxu0 0
    %382 = vmatpush1.bf16.msra.mxu0 %v233
    %383 = vmatprep.subr.bf16.mxu0 0
    %384 = vmatpush1.bf16.msra.mxu0 %v230
    %385 = vmatprep.subr.bf16.mxu0 0
    %386 = vmatpush1.bf16.msra.mxu0 %v227
    %387 = vmatprep.subr.bf16.mxu0 0
    %388 = vmatpush1.bf16.msra.mxu0 %v224
    %389 = vmatprep.subr.bf16.mxu0 0
    %390 = vmatpush1.bf16.msra.mxu0 %v221
    %391 = vmatprep.subr.bf16.mxu0 0
    %392 = vmatpush1.bf16.msra.mxu0 %v218
    %393 = vmatprep.subr.bf16.mxu0 0
    %394 = vmatpush2.bf16.msra.mxu0 0
    %395 = vmatprep.subr.bf16.mxu0 0
    %396 = vmatpush2.bf16.msra.mxu0 0
    %397 = vmatprep.subr.bf16.mxu0 0
    %398 = vmatpush2.bf16.msra.mxu0 0
    %399 = vmatprep.subr.bf16.mxu0 0
    %400 = vmatpush2.bf16.msra.mxu0 0
    %401 = vmatprep.subr.bf16.mxu0 0
    %402 = vmatpush2.bf16.msra.mxu0 0
    %403 = vmatprep.subr.bf16.mxu0 0
    %404 = vmatpush2.bf16.msra.mxu0 0
    %405 = vmatprep.subr.bf16.mxu0 0
    %406 = vmatpush2.bf16.msra.mxu0 0
    %407 = vmatprep.subr.bf16.mxu0 0
    %408 = vmatpush2.bf16.msra.mxu0 0
    %409 = vmatprep.mubr.bf16.mxu0 0
    %410 = vmatmul.mubr.bf16.gmra.mxu0 %v79
    %v411 = vpop.f32.mrf.mxu0
    %v412 = vadd.f32 %v132, %v411
    %v413 = vpop.f32.mrf.mxu0
    %v414 = vpop.f32.mrf.mxu0
    %v415 = vadd.f32 %v132, %v414
    %v416 = vpop.f32.mrf.mxu0
    %417 = vmatprep.mubr.bf16.mxu0 0
    %418 = vmatmul.mubr.bf16.gmra.mxu0 %v80
    %v419 = vpop.f32.mrf.mxu0
    %v420 = vadd.f32 %v132, %v419
    %v421 = vpop.f32.mrf.mxu0
    %v422 = vpop.f32.mrf.mxu0
    %v423 = vadd.f32 %v132, %v422
    %v424 = vpop.f32.mrf.mxu0
    %425 = vmatprep.mubr.bf16.mxu0 0
    %426 = vmatmul.mubr.bf16.gmra.mxu0 %v81
    %v427 = vpop.f32.mrf.mxu0
    %v428 = vadd.f32 %v132, %v427
    %v429 = vpop.f32.mrf.mxu0
    %v430 = vpop.f32.mrf.mxu0
    %v431 = vadd.f32 %v132, %v430
    %v432 = vpop.f32.mrf.mxu0
    %433 = vmatprep.mubr.bf16.mxu0 0
    %434 = vmatmul.mubr.bf16.gmra.mxu0 %v82
    %v435 = vpop.f32.mrf.mxu0
    %v436 = vadd.f32 %v132, %v435
    %v437 = vpop.f32.mrf.mxu0
    %v438 = vpop.f32.mrf.mxu0
    %v439 = vadd.f32 %v132, %v438
    %v440 = vpop.f32.mrf.mxu0
    %441 = vmatprep.mubr.bf16.mxu0 0
    %442 = vmatmul.mubr.bf16.gmra.mxu0 %v83
    %v443 = vpop.f32.mrf.mxu0
    %v444 = vadd.f32 %v132, %v443
    %v445 = vpop.f32.mrf.mxu0
    %v446 = vpop.f32.mrf.mxu0
    %v447 = vadd.f32 %v132, %v446
    %v448 = vpop.f32.mrf.mxu0
    %449 = vmatprep.mubr.bf16.mxu0 0
    %450 = vmatmul.mubr.bf16.gmra.mxu0 %v84
    %v451 = vpop.f32.mrf.mxu0
    %v452 = vadd.f32 %v132, %v451
    %v453 = vpop.f32.mrf.mxu0
    %v454 = vpop.f32.mrf.mxu0
    %v455 = vadd.f32 %v132, %v454
    %v456 = vpop.f32.mrf.mxu0
    %457 = vmatprep.mubr.bf16.mxu0 0
    %458 = vmatmul.mubr.bf16.gmra.mxu0 %v85
    %v459 = vpop.f32.mrf.mxu0
    %v460 = vadd.f32 %v132, %v459
    %v461 = vpop.f32.mrf.mxu0
    %v462 = vpop.f32.mrf.mxu0
    %v463 = vadd.f32 %v132, %v462
    %v464 = vpop.f32.mrf.mxu0
    %465 = vmatprep.mubr.bf16.mxu0 0
    %466 = vmatmul.mubr.bf16.gmra.mxu0 %v86
    %v467 = vpop.f32.mrf.mxu0
    %v468 = vadd.f32 %v132, %v467
    %v469 = vpop.f32.mrf.mxu0
    %v470 = vpop.f32.mrf.mxu0
    %v471 = vadd.f32 %v132, %v470
    %v472 = vpop.f32.mrf.mxu0
    %473 = vdwg.mxu0
    %v474 = vlaneseq
    %v475 = vshrl.u32 %v474, 7
    %v476 = vadd.s32 %v475, 8
    %v477 = vadd.s32 %v475, 16
    %v478 = vadd.s32 %v475, 24
    %v479 = vlaneseq
    %v480 = vand.u32 %v479, 127
    %vm481 = vcmp.ge.s32.totalorder %v475, %v480
    %vm482 = vcmp.ge.s32.totalorder %v476, %v480
    %vm483 = vcmp.ge.s32.totalorder %v477, %v480
    %vm484 = vcmp.ge.s32.totalorder %v478, %v480
    %v485 = vsel %vm481, 0.0, -1e+30
    %v486 = vsel %vm482, 0.0, -1e+30
    %v487 = vsel %vm483, 0.0, -1e+30
    %v488 = vsel %vm484, 0.0, -1e+30
    %v489 = vpack.c.bf16 %v303, %v299
    %v490 = vpack.c.bf16 %v313, %v309
    %v491 = vpack.c.bf16 %v323, %v319
    %v492 = vpack.c.bf16 %v333, %v329
    %v493 = vpack.c.bf16 %v343, %v339
    %v494 = vpack.c.bf16 %v353, %v349
    %v495 = vpack.c.bf16 %v363, %v359
    %v496 = vpack.c.bf16 %v373, %v369
    %v497 = vpack.c.bf16 %v305, %v301
    %v498 = vpack.c.bf16 %v315, %v311
    %v499 = vpack.c.bf16 %v325, %v321
    %v500 = vpack.c.bf16 %v335, %v331
    %v501 = vpack.c.bf16 %v345, %v341
    %v502 = vpack.c.bf16 %v355, %v351
    %v503 = vpack.c.bf16 %v365, %v361
    %v504 = vpack.c.bf16 %v375, %v371
    %vm505 = vcmask 261120
    %v507 = vsel %vm505, %v489, 0
    %v510 = vsel %vm505, %v490, 0
    %v513 = vsel %vm505, %v497, 0
    %v516 = vsel %vm505, %v498, 0
    %518 = vmatprep.subr.bf16.mxu0 0
    %519 = vmatpush1.bf16.xpose.msra.mxu0 0
    %520 = vmatprep.subr.bf16.mxu0 0
    %521 = vmatpush1.bf16.xpose.msra.mxu0 0
    %522 = vmatprep.subr.bf16.mxu0 0
    %523 = vmatpush1.bf16.xpose.msra.mxu0 0
    %524 = vmatprep.subr.bf16.mxu0 0
    %525 = vmatpush1.bf16.xpose.msra.mxu0 0
    %526 = vmatprep.subr.bf16.mxu0 0
    %527 = vmatpush1.bf16.xpose.msra.mxu0 0
    %528 = vmatprep.subr.bf16.mxu0 0
    %529 = vmatpush1.bf16.xpose.msra.mxu0 0
    %530 = vmatprep.subr.bf16.mxu0 0
    %531 = vmatpush1.bf16.xpose.msra.mxu0 %v516
    %532 = vmatprep.subr.bf16.mxu0 0
    %533 = vmatpush1.bf16.xpose.msra.mxu0 %v513
    %534 = vmatprep.subr.bf16.mxu0 0
    %535 = vmatpush2.bf16.xpose.msra.mxu0 0
    %536 = vmatprep.subr.bf16.mxu0 0
    %537 = vmatpush2.bf16.xpose.msra.mxu0 0
    %538 = vmatprep.subr.bf16.mxu0 0
    %539 = vmatpush2.bf16.xpose.msra.mxu0 0
    %540 = vmatprep.subr.bf16.mxu0 0
    %541 = vmatpush2.bf16.xpose.msra.mxu0 0
    %542 = vmatprep.subr.bf16.mxu0 0
    %543 = vmatpush2.bf16.xpose.msra.mxu0 0
    %544 = vmatprep.subr.bf16.mxu0 0
    %545 = vmatpush2.bf16.xpose.msra.mxu0 0
    %546 = vmatprep.subr.bf16.mxu0 0
    %547 = vmatpush2.bf16.xpose.msra.mxu0 0
    %548 = vmatprep.subr.bf16.mxu0 0
    %549 = vmatpush2.bf16.xpose.msra.mxu0 0
    %550 = vmatprep.mubr.bf16.mxu0 0
    %551 = vmatmul.mubr.bf16.gmra.mxu0 %v507
    %v552 = vpop.f32.mrf.mxu0
    %v553 = vadd.f32 0.0, %v552
    %v554 = vpop.f32.mrf.mxu0
    %v555 = vpop.f32.mrf.mxu0
    %v556 = vadd.f32 0.0, %v555
    %v557 = vpop.f32.mrf.mxu0
    %558 = vmatprep.mubr.bf16.mxu0 0
    %559 = vmatmul.mubr.bf16.gmra.mxu0 %v510
    %v560 = vpop.f32.mrf.mxu0
    %v561 = vadd.f32 0.0, %v560
    %v562 = vpop.f32.mrf.mxu0
    %v563 = vpop.f32.mrf.mxu0
    %v564 = vadd.f32 0.0, %v563
    %v565 = vpop.f32.mrf.mxu0
    %566 = vdwg.mxu0
    %v568 = vsel %vm505, %v491, 0
    %v571 = vsel %vm505, %v492, 0
    %v574 = vsel %vm505, %v499, 0
    %v577 = vsel %vm505, %v500, 0
    %579 = vmatprep.subr.bf16.mxu0 0
    %580 = vmatpush1.bf16.xpose.msra.mxu0 0
    %581 = vmatprep.subr.bf16.mxu0 0
    %582 = vmatpush1.bf16.xpose.msra.mxu0 0
    %583 = vmatprep.subr.bf16.mxu0 0
    %584 = vmatpush1.bf16.xpose.msra.mxu0 0
    %585 = vmatprep.subr.bf16.mxu0 0
    %586 = vmatpush1.bf16.xpose.msra.mxu0 0
    %587 = vmatprep.subr.bf16.mxu0 0
    %588 = vmatpush1.bf16.xpose.msra.mxu0 0
    %589 = vmatprep.subr.bf16.mxu0 0
    %590 = vmatpush1.bf16.xpose.msra.mxu0 0
    %591 = vmatprep.subr.bf16.mxu0 0
    %592 = vmatpush1.bf16.xpose.msra.mxu0 %v577
    %593 = vmatprep.subr.bf16.mxu0 0
    %594 = vmatpush1.bf16.xpose.msra.mxu0 %v574
    %595 = vmatprep.subr.bf16.mxu0 0
    %596 = vmatpush2.bf16.xpose.msra.mxu0 0
    %597 = vmatprep.subr.bf16.mxu0 0
    %598 = vmatpush2.bf16.xpose.msra.mxu0 0
    %599 = vmatprep.subr.bf16.mxu0 0
    %600 = vmatpush2.bf16.xpose.msra.mxu0 0
    %601 = vmatprep.subr.bf16.mxu0 0
    %602 = vmatpush2.bf16.xpose.msra.mxu0 0
    %603 = vmatprep.subr.bf16.mxu0 0
    %604 = vmatpush2.bf16.xpose.msra.mxu0 0
    %605 = vmatprep.subr.bf16.mxu0 0
    %606 = vmatpush2.bf16.xpose.msra.mxu0 0
    %607 = vmatprep.subr.bf16.mxu0 0
    %608 = vmatpush2.bf16.xpose.msra.mxu0 0
    %609 = vmatprep.subr.bf16.mxu0 0
    %610 = vmatpush2.bf16.xpose.msra.mxu0 0
    %611 = vmatprep.mubr.bf16.mxu0 0
    %612 = vmatmul.mubr.bf16.gmra.mxu0 %v568
    %v613 = vpop.f32.mrf.mxu0
    %v614 = vadd.f32 0.0, %v613
    %v615 = vpop.f32.mrf.mxu0
    %v616 = vpop.f32.mrf.mxu0
    %v617 = vadd.f32 0.0, %v616
    %v618 = vpop.f32.mrf.mxu0
    %619 = vmatprep.mubr.bf16.mxu0 0
    %620 = vmatmul.mubr.bf16.gmra.mxu0 %v571
    %v621 = vpop.f32.mrf.mxu0
    %v622 = vadd.f32 0.0, %v621
    %v623 = vpop.f32.mrf.mxu0
    %v624 = vpop.f32.mrf.mxu0
    %v625 = vadd.f32 0.0, %v624
    %v626 = vpop.f32.mrf.mxu0
    %627 = vdwg.mxu0
    %v629 = vsel %vm505, %v493, 0
    %v632 = vsel %vm505, %v494, 0
    %v635 = vsel %vm505, %v501, 0
    %v638 = vsel %vm505, %v502, 0
    %640 = vmatprep.subr.bf16.mxu0 0
    %641 = vmatpush1.bf16.xpose.msra.mxu0 0
    %642 = vmatprep.subr.bf16.mxu0 0
    %643 = vmatpush1.bf16.xpose.msra.mxu0 0
    %644 = vmatprep.subr.bf16.mxu0 0
    %645 = vmatpush1.bf16.xpose.msra.mxu0 0
    %646 = vmatprep.subr.bf16.mxu0 0
    %647 = vmatpush1.bf16.xpose.msra.mxu0 0
    %648 = vmatprep.subr.bf16.mxu0 0
    %649 = vmatpush1.bf16.xpose.msra.mxu0 0
    %650 = vmatprep.subr.bf16.mxu0 0
    %651 = vmatpush1.bf16.xpose.msra.mxu0 0
    %652 = vmatprep.subr.bf16.mxu0 0
    %653 = vmatpush1.bf16.xpose.msra.mxu0 %v638
    %654 = vmatprep.subr.bf16.mxu0 0
    %655 = vmatpush1.bf16.xpose.msra.mxu0 %v635
    %656 = vmatprep.subr.bf16.mxu0 0
    %657 = vmatpush2.bf16.xpose.msra.mxu0 0
    %658 = vmatprep.subr.bf16.mxu0 0
    %659 = vmatpush2.bf16.xpose.msra.mxu0 0
    %660 = vmatprep.subr.bf16.mxu0 0
    %661 = vmatpush2.bf16.xpose.msra.mxu0 0
    %662 = vmatprep.subr.bf16.mxu0 0
    %663 = vmatpush2.bf16.xpose.msra.mxu0 0
    %664 = vmatprep.subr.bf16.mxu0 0
    %665 = vmatpush2.bf16.xpose.msra.mxu0 0
    %666 = vmatprep.subr.bf16.mxu0 0
    %667 = vmatpush2.bf16.xpose.msra.mxu0 0
    %668 = vmatprep.subr.bf16.mxu0 0
    %669 = vmatpush2.bf16.xpose.msra.mxu0 0
    %670 = vmatprep.subr.bf16.mxu0 0
    %671 = vmatpush2.bf16.xpose.msra.mxu0 0
    %672 = vmatprep.mubr.bf16.mxu0 0
    %673 = vmatmul.mubr.bf16.gmra.mxu0 %v629
    %v674 = vpop.f32.mrf.mxu0
    %v675 = vadd.f32 0.0, %v674
    %v676 = vpop.f32.mrf.mxu0
    %v677 = vpop.f32.mrf.mxu0
    %v678 = vadd.f32 0.0, %v677
    %v679 = vpop.f32.mrf.mxu0
    %680 = vmatprep.mubr.bf16.mxu0 0
    %681 = vmatmul.mubr.bf16.gmra.mxu0 %v632
    %v682 = vpop.f32.mrf.mxu0
    %v683 = vadd.f32 0.0, %v682
    %v684 = vpop.f32.mrf.mxu0
    %v685 = vpop.f32.mrf.mxu0
    %v686 = vadd.f32 0.0, %v685
    %v687 = vpop.f32.mrf.mxu0
    %688 = vdwg.mxu0
    %v690 = vsel %vm505, %v495, 0
    %v693 = vsel %vm505, %v496, 0
    %v696 = vsel %vm505, %v503, 0
    %v699 = vsel %vm505, %v504, 0
    %701 = vmatprep.subr.bf16.mxu0 0
    %702 = vmatpush1.bf16.xpose.msra.mxu0 0
    %703 = vmatprep.subr.bf16.mxu0 0
    %704 = vmatpush1.bf16.xpose.msra.mxu0 0
    %705 = vmatprep.subr.bf16.mxu0 0
    %706 = vmatpush1.bf16.xpose.msra.mxu0 0
    %707 = vmatprep.subr.bf16.mxu0 0
    %708 = vmatpush1.bf16.xpose.msra.mxu0 0
    %709 = vmatprep.subr.bf16.mxu0 0
    %710 = vmatpush1.bf16.xpose.msra.mxu0 0
    %711 = vmatprep.subr.bf16.mxu0 0
    %712 = vmatpush1.bf16.xpose.msra.mxu0 0
    %713 = vmatprep.subr.bf16.mxu0 0
    %714 = vmatpush1.bf16.xpose.msra.mxu0 %v699
    %715 = vmatprep.subr.bf16.mxu0 0
    %716 = vmatpush1.bf16.xpose.msra.mxu0 %v696
    %717 = vmatprep.subr.bf16.mxu0 0
    %718 = vmatpush2.bf16.xpose.msra.mxu0 0
    %719 = vmatprep.subr.bf16.mxu0 0
    %720 = vmatpush2.bf16.xpose.msra.mxu0 0
    %721 = vmatprep.subr.bf16.mxu0 0
    %722 = vmatpush2.bf16.xpose.msra.mxu0 0
    %723 = vmatprep.subr.bf16.mxu0 0
    %724 = vmatpush2.bf16.xpose.msra.mxu0 0
    %725 = vmatprep.subr.bf16.mxu0 0
    %726 = vmatpush2.bf16.xpose.msra.mxu0 0
    %727 = vmatprep.subr.bf16.mxu0 0
    %728 = vmatpush2.bf16.xpose.msra.mxu0 0
    %729 = vmatprep.subr.bf16.mxu0 0
    %730 = vmatpush2.bf16.xpose.msra.mxu0 0
    %731 = vmatprep.subr.bf16.mxu0 0
    %732 = vmatpush2.bf16.xpose.msra.mxu0 0
    %733 = vmatprep.mubr.bf16.mxu0 0
    %734 = vmatmul.mubr.bf16.gmra.mxu0 %v690
    %v735 = vpop.f32.mrf.mxu0
    %v736 = vadd.f32 0.0, %v735
    %v737 = vpop.f32.mrf.mxu0
    %v738 = vpop.f32.mrf.mxu0
    %v739 = vadd.f32 0.0, %v738
    %v740 = vpop.f32.mrf.mxu0
    %741 = vmatprep.mubr.bf16.mxu0 0
    %742 = vmatmul.mubr.bf16.gmra.mxu0 %v693
    %v743 = vpop.f32.mrf.mxu0
    %v744 = vadd.f32 0.0, %v743
    %v745 = vpop.f32.mrf.mxu0
    %v746 = vpop.f32.mrf.mxu0
    %v747 = vadd.f32 0.0, %v746
    %v748 = vpop.f32.mrf.mxu0
    %749 = vdwg.mxu0
    %v750 = vmul.f32 %v553, 0.17677669
    %v751 = vmul.f32 %v556, 0.17677669
    %v752 = vmul.f32 %v561, 0.17677669
    %v753 = vmul.f32 %v564, 0.17677669
    %v754 = vmul.f32 %v614, 0.17677669
    %v755 = vmul.f32 %v617, 0.17677669
    %v756 = vmul.f32 %v622, 0.17677669
    %v757 = vmul.f32 %v625, 0.17677669
    %v758 = vmul.f32 %v675, 0.17677669
    %v759 = vmul.f32 %v678, 0.17677669
    %v760 = vmul.f32 %v683, 0.17677669
    %v761 = vmul.f32 %v686, 0.17677669
    %v762 = vmul.f32 %v736, 0.17677669
    %v763 = vmul.f32 %v739, 0.17677669
    %v764 = vmul.f32 %v744, 0.17677669
    %v765 = vmul.f32 %v747, 0.17677669
    %v766 = vadd.f32 %v750, %v485
    %v767 = vadd.f32 %v751, %v486
    %v768 = vadd.f32 %v752, %v487
    %v769 = vadd.f32 %v753, %v488
    %v770 = vadd.f32 %v754, %v485
    %v771 = vadd.f32 %v755, %v486
    %v772 = vadd.f32 %v756, %v487
    %v773 = vadd.f32 %v757, %v488
    %v774 = vadd.f32 %v758, %v485
    %v775 = vadd.f32 %v759, %v486
    %v776 = vadd.f32 %v760, %v487
    %v777 = vadd.f32 %v761, %v488
    %v778 = vadd.f32 %v762, %v485
    %v779 = vadd.f32 %v763, %v486
    %v780 = vadd.f32 %v764, %v487
    %v781 = vadd.f32 %v765, %v488
    %v782 = vsel %vm505, %v766, -inf
    %783 = vmax.xlane.f32.xlu0 %v782
    %v784 = vpop.xlane.xlu0 %783
    %v785 = vsel %vm505, %v767, -inf
    %786 = vmax.xlane.f32.xlu0 %v785
    %v787 = vpop.xlane.xlu0 %786
    %v788 = vsel %vm505, %v768, -inf
    %789 = vmax.xlane.f32.xlu0 %v788
    %v790 = vpop.xlane.xlu0 %789
    %v791 = vsel %vm505, %v769, -inf
    %792 = vmax.xlane.f32.xlu0 %v791
    %v793 = vpop.xlane.xlu0 %792
    %v794 = vsel %vm505, %v770, -inf
    %795 = vmax.xlane.f32.xlu0 %v794
    %v796 = vpop.xlane.xlu0 %795
    %v797 = vsel %vm505, %v771, -inf
    %798 = vmax.xlane.f32.xlu0 %v797
    %v799 = vpop.xlane.xlu0 %798
    %v800 = vsel %vm505, %v772, -inf
    %801 = vmax.xlane.f32.xlu0 %v800
    %v802 = vpop.xlane.xlu0 %801
    %v803 = vsel %vm505, %v773, -inf
    %804 = vmax.xlane.f32.xlu0 %v803
    %v805 = vpop.xlane.xlu0 %804
    %v806 = vsel %vm505, %v774, -inf
    %807 = vmax.xlane.f32.xlu0 %v806
    %v808 = vpop.xlane.xlu0 %807
    %v809 = vsel %vm505, %v775, -inf
    %810 = vmax.xlane.f32.xlu0 %v809
    %v811 = vpop.xlane.xlu0 %810
    %v812 = vsel %vm505, %v776, -inf
    %813 = vmax.xlane.f32.xlu0 %v812
    %v814 = vpop.xlane.xlu0 %813
    %v815 = vsel %vm505, %v777, -inf
    %816 = vmax.xlane.f32.xlu0 %v815
    %v817 = vpop.xlane.xlu0 %816
    %v818 = vsel %vm505, %v778, -inf
    %819 = vmax.xlane.f32.xlu0 %v818
    %v820 = vpop.xlane.xlu0 %819
    %v821 = vsel %vm505, %v779, -inf
    %822 = vmax.xlane.f32.xlu0 %v821
    %v823 = vpop.xlane.xlu0 %822
    %v824 = vsel %vm505, %v780, -inf
    %825 = vmax.xlane.f32.xlu0 %v824
    %v826 = vpop.xlane.xlu0 %825
    %v827 = vsel %vm505, %v781, -inf
    %828 = vmax.xlane.f32.xlu0 %v827
    %v829 = vpop.xlane.xlu0 %828
    %v830 = vsub.f32 %v766, %v784
    %v831 = vsub.f32 %v767, %v787
    %v832 = vsub.f32 %v768, %v790
    %v833 = vsub.f32 %v769, %v793
    %v834 = vsub.f32 %v770, %v796
    %v835 = vsub.f32 %v771, %v799
    %v836 = vsub.f32 %v772, %v802
    %v837 = vsub.f32 %v773, %v805
    %v838 = vsub.f32 %v774, %v808
    %v839 = vsub.f32 %v775, %v811
    %v840 = vsub.f32 %v776, %v814
    %v841 = vsub.f32 %v777, %v817
    %v842 = vsub.f32 %v778, %v820
    %v843 = vsub.f32 %v779, %v823
    %v844 = vsub.f32 %v780, %v826
    %v845 = vsub.f32 %v781, %v829
    %v846 = vmul.f32 %v830, 1.442695
    %v847 = vpow.pop %v846
    %v848 = vmul.f32 %v831, 1.442695
    %v849 = vpow.pop %v848
    %v850 = vmul.f32 %v832, 1.442695
    %v851 = vpow.pop %v850
    %v852 = vmul.f32 %v833, 1.442695
    %v853 = vpow.pop %v852
    %v854 = vmul.f32 %v834, 1.442695
    %v855 = vpow.pop %v854
    %v856 = vmul.f32 %v835, 1.442695
    %v857 = vpow.pop %v856
    %v858 = vmul.f32 %v836, 1.442695
    %v859 = vpow.pop %v858
    %v860 = vmul.f32 %v837, 1.442695
    %v861 = vpow.pop %v860
    %v862 = vmul.f32 %v838, 1.442695
    %v863 = vpow.pop %v862
    %v864 = vmul.f32 %v839, 1.442695
    %v865 = vpow.pop %v864
    %v866 = vmul.f32 %v840, 1.442695
    %v867 = vpow.pop %v866
    %v868 = vmul.f32 %v841, 1.442695
    %v869 = vpow.pop %v868
    %v870 = vmul.f32 %v842, 1.442695
    %v871 = vpow.pop %v870
    %v872 = vmul.f32 %v843, 1.442695
    %v873 = vpow.pop %v872
    %v874 = vmul.f32 %v844, 1.442695
    %v875 = vpow.pop %v874
    %v876 = vmul.f32 %v845, 1.442695
    %v877 = vpow.pop %v876
    %v878 = vsel %vm505, %v847, 0.0
    %879 = vadd.xlane.f32.xlu0 %v878
    %v880 = vpop.xlane.xlu0 %879
    %v881 = vsel %vm505, %v849, 0.0
    %882 = vadd.xlane.f32.xlu0 %v881
    %v883 = vpop.xlane.xlu0 %882
    %v884 = vsel %vm505, %v851, 0.0
    %885 = vadd.xlane.f32.xlu0 %v884
    %v886 = vpop.xlane.xlu0 %885
    %v887 = vsel %vm505, %v853, 0.0
    %888 = vadd.xlane.f32.xlu0 %v887
    %v889 = vpop.xlane.xlu0 %888
    %v890 = vsel %vm505, %v855, 0.0
    %891 = vadd.xlane.f32.xlu0 %v890
    %v892 = vpop.xlane.xlu0 %891
    %v893 = vsel %vm505, %v857, 0.0
    %894 = vadd.xlane.f32.xlu0 %v893
    %v895 = vpop.xlane.xlu0 %894
    %v896 = vsel %vm505, %v859, 0.0
    %897 = vadd.xlane.f32.xlu0 %v896
    %v898 = vpop.xlane.xlu0 %897
    %v899 = vsel %vm505, %v861, 0.0
    %900 = vadd.xlane.f32.xlu0 %v899
    %v901 = vpop.xlane.xlu0 %900
    %v902 = vsel %vm505, %v863, 0.0
    %903 = vadd.xlane.f32.xlu0 %v902
    %v904 = vpop.xlane.xlu0 %903
    %v905 = vsel %vm505, %v865, 0.0
    %906 = vadd.xlane.f32.xlu0 %v905
    %v907 = vpop.xlane.xlu0 %906
    %v908 = vsel %vm505, %v867, 0.0
    %909 = vadd.xlane.f32.xlu0 %v908
    %v910 = vpop.xlane.xlu0 %909
    %v911 = vsel %vm505, %v869, 0.0
    %912 = vadd.xlane.f32.xlu0 %v911
    %v913 = vpop.xlane.xlu0 %912
    %v914 = vsel %vm505, %v871, 0.0
    %915 = vadd.xlane.f32.xlu0 %v914
    %v916 = vpop.xlane.xlu0 %915
    %v917 = vsel %vm505, %v873, 0.0
    %918 = vadd.xlane.f32.xlu0 %v917
    %v919 = vpop.xlane.xlu0 %918
    %v920 = vsel %vm505, %v875, 0.0
    %921 = vadd.xlane.f32.xlu0 %v920
    %v922 = vpop.xlane.xlu0 %921
    %v923 = vsel %vm505, %v877, 0.0
    %924 = vadd.xlane.f32.xlu0 %v923
    %v925 = vpop.xlane.xlu0 %924
    %v926 = vrcp.pop %v880
    %v927 = vrcp.pop %v883
    %v928 = vrcp.pop %v886
    %v929 = vrcp.pop %v889
    %v930 = vrcp.pop %v892
    %v931 = vrcp.pop %v895
    %v932 = vrcp.pop %v898
    %v933 = vrcp.pop %v901
    %v934 = vrcp.pop %v904
    %v935 = vrcp.pop %v907
    %v936 = vrcp.pop %v910
    %v937 = vrcp.pop %v913
    %v938 = vrcp.pop %v916
    %v939 = vrcp.pop %v919
    %v940 = vrcp.pop %v922
    %v941 = vrcp.pop %v925
    %v942 = vmul.f32 %v847, %v926
    %v943 = vmul.f32 %v849, %v927
    %v944 = vmul.f32 %v851, %v928
    %v945 = vmul.f32 %v853, %v929
    %v946 = vmul.f32 %v855, %v930
    %v947 = vmul.f32 %v857, %v931
    %v948 = vmul.f32 %v859, %v932
    %v949 = vmul.f32 %v861, %v933
    %v950 = vmul.f32 %v863, %v934
    %v951 = vmul.f32 %v865, %v935
    %v952 = vmul.f32 %v867, %v936
    %v953 = vmul.f32 %v869, %v937
    %v954 = vmul.f32 %v871, %v938
    %v955 = vmul.f32 %v873, %v939
    %v956 = vmul.f32 %v875, %v940
    %v957 = vmul.f32 %v877, %v941
    %v958 = vpack.c.bf16 %v943, %v942
    %v959 = vpack.c.bf16 %v945, %v944
    %v960 = vpack.c.bf16 %v947, %v946
    %v961 = vpack.c.bf16 %v949, %v948
    %v962 = vpack.c.bf16 %v951, %v950
    %v963 = vpack.c.bf16 %v953, %v952
    %v964 = vpack.c.bf16 %v955, %v954
    %v965 = vpack.c.bf16 %v957, %v956
    %v966 = vpack.c.bf16 %v415, %v412
    %v967 = vpack.c.bf16 %v423, %v420
    %v968 = vpack.c.bf16 %v431, %v428
    %v969 = vpack.c.bf16 %v439, %v436
    %v970 = vpack.c.bf16 %v447, %v444
    %v971 = vpack.c.bf16 %v455, %v452
    %v972 = vpack.c.bf16 %v463, %v460
    %v973 = vpack.c.bf16 %v471, %v468
    %v975 = vsel %vm505, %v958, 0
    %v978 = vsel %vm505, %v959, 0
    %980 = vmatprep.subr.bf16.mxu0 0
    %981 = vmatpush1.bf16.msra.mxu0 0
    %982 = vmatprep.subr.bf16.mxu0 0
    %983 = vmatpush1.bf16.msra.mxu0 0
    %984 = vmatprep.subr.bf16.mxu0 0
    %985 = vmatpush1.bf16.msra.mxu0 0
    %986 = vmatprep.subr.bf16.mxu0 0
    %987 = vmatpush1.bf16.msra.mxu0 0
    %988 = vmatprep.subr.bf16.mxu0 0
    %989 = vmatpush1.bf16.msra.mxu0 0
    %990 = vmatprep.subr.bf16.mxu0 0
    %991 = vmatpush1.bf16.msra.mxu0 0
    %992 = vmatprep.subr.bf16.mxu0 0
    %993 = vmatpush1.bf16.msra.mxu0 %v967
    %994 = vmatprep.subr.bf16.mxu0 0
    %995 = vmatpush1.bf16.msra.mxu0 %v966
    %996 = vmatprep.subr.bf16.mxu0 0
    %997 = vmatpush2.bf16.msra.mxu0 0
    %998 = vmatprep.subr.bf16.mxu0 0
    %999 = vmatpush2.bf16.msra.mxu0 0
    %1000 = vmatprep.subr.bf16.mxu0 0
    %1001 = vmatpush2.bf16.msra.mxu0 0
    %1002 = vmatprep.subr.bf16.mxu0 0
    %1003 = vmatpush2.bf16.msra.mxu0 0
    %1004 = vmatprep.subr.bf16.mxu0 0
    %1005 = vmatpush2.bf16.msra.mxu0 0
    %1006 = vmatprep.subr.bf16.mxu0 0
    %1007 = vmatpush2.bf16.msra.mxu0 0
    %1008 = vmatprep.subr.bf16.mxu0 0
    %1009 = vmatpush2.bf16.msra.mxu0 0
    %1010 = vmatprep.subr.bf16.mxu0 0
    %1011 = vmatpush2.bf16.msra.mxu0 0
    %1012 = vmatprep.mubr.bf16.mxu0 0
    %1013 = vmatmul.mubr.bf16.gmra.mxu0 %v975
    %v1014 = vpop.f32.mrf.mxu0
    %v1015 = vadd.f32 0.0, %v1014
    %v1016 = vpop.f32.mrf.mxu0
    %v1017 = vpop.f32.mrf.mxu0
    %v1018 = vadd.f32 0.0, %v1017
    %v1019 = vpop.f32.mrf.mxu0
    %1020 = vmatprep.mubr.bf16.mxu0 0
    %1021 = vmatmul.mubr.bf16.gmra.mxu0 %v978
    %v1022 = vpop.f32.mrf.mxu0
    %v1023 = vadd.f32 0.0, %v1022
    %v1024 = vpop.f32.mrf.mxu0
    %v1025 = vpop.f32.mrf.mxu0
    %v1026 = vadd.f32 0.0, %v1025
    %v1027 = vpop.f32.mrf.mxu0
    %1028 = vdwg.mxu0
    %v1030 = vsel %vm505, %v960, 0
    %v1033 = vsel %vm505, %v961, 0
    %1035 = vmatprep.subr.bf16.mxu0 0
    %1036 = vmatpush1.bf16.msra.mxu0 0
    %1037 = vmatprep.subr.bf16.mxu0 0
    %1038 = vmatpush1.bf16.msra.mxu0 0
    %1039 = vmatprep.subr.bf16.mxu0 0
    %1040 = vmatpush1.bf16.msra.mxu0 0
    %1041 = vmatprep.subr.bf16.mxu0 0
    %1042 = vmatpush1.bf16.msra.mxu0 0
    %1043 = vmatprep.subr.bf16.mxu0 0
    %1044 = vmatpush1.bf16.msra.mxu0 0
    %1045 = vmatprep.subr.bf16.mxu0 0
    %1046 = vmatpush1.bf16.msra.mxu0 0
    %1047 = vmatprep.subr.bf16.mxu0 0
    %1048 = vmatpush1.bf16.msra.mxu0 %v969
    %1049 = vmatprep.subr.bf16.mxu0 0
    %1050 = vmatpush1.bf16.msra.mxu0 %v968
    %1051 = vmatprep.subr.bf16.mxu0 0
    %1052 = vmatpush2.bf16.msra.mxu0 0
    %1053 = vmatprep.subr.bf16.mxu0 0
    %1054 = vmatpush2.bf16.msra.mxu0 0
    %1055 = vmatprep.subr.bf16.mxu0 0
    %1056 = vmatpush2.bf16.msra.mxu0 0
    %1057 = vmatprep.subr.bf16.mxu0 0
    %1058 = vmatpush2.bf16.msra.mxu0 0
    %1059 = vmatprep.subr.bf16.mxu0 0
    %1060 = vmatpush2.bf16.msra.mxu0 0
    %1061 = vmatprep.subr.bf16.mxu0 0
    %1062 = vmatpush2.bf16.msra.mxu0 0
    %1063 = vmatprep.subr.bf16.mxu0 0
    %1064 = vmatpush2.bf16.msra.mxu0 0
    %1065 = vmatprep.subr.bf16.mxu0 0
    %1066 = vmatpush2.bf16.msra.mxu0 0
    %1067 = vmatprep.mubr.bf16.mxu0 0
    %1068 = vmatmul.mubr.bf16.gmra.mxu0 %v1030
    %v1069 = vpop.f32.mrf.mxu0
    %v1070 = vadd.f32 0.0, %v1069
    %v1071 = vpop.f32.mrf.mxu0
    %v1072 = vpop.f32.mrf.mxu0
    %v1073 = vadd.f32 0.0, %v1072
    %v1074 = vpop.f32.mrf.mxu0
    %1075 = vmatprep.mubr.bf16.mxu0 0
    %1076 = vmatmul.mubr.bf16.gmra.mxu0 %v1033
    %v1077 = vpop.f32.mrf.mxu0
    %v1078 = vadd.f32 0.0, %v1077
    %v1079 = vpop.f32.mrf.mxu0
    %v1080 = vpop.f32.mrf.mxu0
    %v1081 = vadd.f32 0.0, %v1080
    %v1082 = vpop.f32.mrf.mxu0
    %1083 = vdwg.mxu0
    %v1085 = vsel %vm505, %v962, 0
    %v1088 = vsel %vm505, %v963, 0
    %1090 = vmatprep.subr.bf16.mxu0 0
    %1091 = vmatpush1.bf16.msra.mxu0 0
    %1092 = vmatprep.subr.bf16.mxu0 0
    %1093 = vmatpush1.bf16.msra.mxu0 0
    %1094 = vmatprep.subr.bf16.mxu0 0
    %1095 = vmatpush1.bf16.msra.mxu0 0
    %1096 = vmatprep.subr.bf16.mxu0 0
    %1097 = vmatpush1.bf16.msra.mxu0 0
    %1098 = vmatprep.subr.bf16.mxu0 0
    %1099 = vmatpush1.bf16.msra.mxu0 0
    %1100 = vmatprep.subr.bf16.mxu0 0
    %1101 = vmatpush1.bf16.msra.mxu0 0
    %1102 = vmatprep.subr.bf16.mxu0 0
    %1103 = vmatpush1.bf16.msra.mxu0 %v971
    %1104 = vmatprep.subr.bf16.mxu0 0
    %1105 = vmatpush1.bf16.msra.mxu0 %v970
    %1106 = vmatprep.subr.bf16.mxu0 0
    %1107 = vmatpush2.bf16.msra.mxu0 0
    %1108 = vmatprep.subr.bf16.mxu0 0
    %1109 = vmatpush2.bf16.msra.mxu0 0
    %1110 = vmatprep.subr.bf16.mxu0 0
    %1111 = vmatpush2.bf16.msra.mxu0 0
    %1112 = vmatprep.subr.bf16.mxu0 0
    %1113 = vmatpush2.bf16.msra.mxu0 0
    %1114 = vmatprep.subr.bf16.mxu0 0
    %1115 = vmatpush2.bf16.msra.mxu0 0
    %1116 = vmatprep.subr.bf16.mxu0 0
    %1117 = vmatpush2.bf16.msra.mxu0 0
    %1118 = vmatprep.subr.bf16.mxu0 0
    %1119 = vmatpush2.bf16.msra.mxu0 0
    %1120 = vmatprep.subr.bf16.mxu0 0
    %1121 = vmatpush2.bf16.msra.mxu0 0
    %1122 = vmatprep.mubr.bf16.mxu0 0
    %1123 = vmatmul.mubr.bf16.gmra.mxu0 %v1085
    %v1124 = vpop.f32.mrf.mxu0
    %v1125 = vadd.f32 0.0, %v1124
    %v1126 = vpop.f32.mrf.mxu0
    %v1127 = vpop.f32.mrf.mxu0
    %v1128 = vadd.f32 0.0, %v1127
    %v1129 = vpop.f32.mrf.mxu0
    %1130 = vmatprep.mubr.bf16.mxu0 0
    %1131 = vmatmul.mubr.bf16.gmra.mxu0 %v1088
    %v1132 = vpop.f32.mrf.mxu0
    %v1133 = vadd.f32 0.0, %v1132
    %v1134 = vpop.f32.mrf.mxu0
    %v1135 = vpop.f32.mrf.mxu0
    %v1136 = vadd.f32 0.0, %v1135
    %v1137 = vpop.f32.mrf.mxu0
    %1138 = vdwg.mxu0
    %v1140 = vsel %vm505, %v964, 0
    %v1143 = vsel %vm505, %v965, 0
    %1145 = vmatprep.subr.bf16.mxu0 0
    %1146 = vmatpush1.bf16.msra.mxu0 0
    %1147 = vmatprep.subr.bf16.mxu0 0
    %1148 = vmatpush1.bf16.msra.mxu0 0
    %1149 = vmatprep.subr.bf16.mxu0 0
    %1150 = vmatpush1.bf16.msra.mxu0 0
    %1151 = vmatprep.subr.bf16.mxu0 0
    %1152 = vmatpush1.bf16.msra.mxu0 0
    %1153 = vmatprep.subr.bf16.mxu0 0
    %1154 = vmatpush1.bf16.msra.mxu0 0
    %1155 = vmatprep.subr.bf16.mxu0 0
    %1156 = vmatpush1.bf16.msra.mxu0 0
    %1157 = vmatprep.subr.bf16.mxu0 0
    %1158 = vmatpush1.bf16.msra.mxu0 %v973
    %1159 = vmatprep.subr.bf16.mxu0 0
    %1160 = vmatpush1.bf16.msra.mxu0 %v972
    %1161 = vmatprep.subr.bf16.mxu0 0
    %1162 = vmatpush2.bf16.msra.mxu0 0
    %1163 = vmatprep.subr.bf16.mxu0 0
    %1164 = vmatpush2.bf16.msra.mxu0 0
    %1165 = vmatprep.subr.bf16.mxu0 0
    %1166 = vmatpush2.bf16.msra.mxu0 0
    %1167 = vmatprep.subr.bf16.mxu0 0
    %1168 = vmatpush2.bf16.msra.mxu0 0
    %1169 = vmatprep.subr.bf16.mxu0 0
    %1170 = vmatpush2.bf16.msra.mxu0 0
    %1171 = vmatprep.subr.bf16.mxu0 0
    %1172 = vmatpush2.bf16.msra.mxu0 0
    %1173 = vmatprep.subr.bf16.mxu0 0
    %1174 = vmatpush2.bf16.msra.mxu0 0
    %1175 = vmatprep.subr.bf16.mxu0 0
    %1176 = vmatpush2.bf16.msra.mxu0 0
    %1177 = vmatprep.mubr.bf16.mxu0 0
    %1178 = vmatmul.mubr.bf16.gmra.mxu0 %v1140
    %v1179 = vpop.f32.mrf.mxu0
    %v1180 = vadd.f32 0.0, %v1179
    %v1181 = vpop.f32.mrf.mxu0
    %v1182 = vpop.f32.mrf.mxu0
    %v1183 = vadd.f32 0.0, %v1182
    %v1184 = vpop.f32.mrf.mxu0
    %1185 = vmatprep.mubr.bf16.mxu0 0
    %1186 = vmatmul.mubr.bf16.gmra.mxu0 %v1143
    %v1187 = vpop.f32.mrf.mxu0
    %v1188 = vadd.f32 0.0, %v1187
    %v1189 = vpop.f32.mrf.mxu0
    %v1190 = vpop.f32.mrf.mxu0
    %v1191 = vadd.f32 0.0, %v1190
    %v1192 = vpop.f32.mrf.mxu0
    %1193 = vdwg.mxu0
    %1196 = vrot.lane.b32.xlu0 %v489, 96
    %v1197 = vpop.permute.xlu0 %1196
    %1198 = vrot.lane.b32.xlu0 %v490, 96
    %v1199 = vpop.permute.xlu0 %1198
    %1202 = vrot.lane.b32.xlu0 %v497, 96
    %v1203 = vpop.permute.xlu0 %1202
    %1204 = vrot.lane.b32.xlu0 %v498, 96
    %v1205 = vpop.permute.xlu0 %1204
    %v1207 = vsel %vm505, %v1197, 0
    %v1210 = vsel %vm505, %v1199, 0
    %v1213 = vsel %vm505, %v1203, 0
    %v1216 = vsel %vm505, %v1205, 0
    %1218 = vmatprep.subr.bf16.mxu0 0
    %1219 = vmatpush1.bf16.xpose.msra.mxu0 0
    %1220 = vmatprep.subr.bf16.mxu0 0
    %1221 = vmatpush1.bf16.xpose.msra.mxu0 0
    %1222 = vmatprep.subr.bf16.mxu0 0
    %1223 = vmatpush1.bf16.xpose.msra.mxu0 0
    %1224 = vmatprep.subr.bf16.mxu0 0
    %1225 = vmatpush1.bf16.xpose.msra.mxu0 0
    %1226 = vmatprep.subr.bf16.mxu0 0
    %1227 = vmatpush1.bf16.xpose.msra.mxu0 0
    %1228 = vmatprep.subr.bf16.mxu0 0
    %1229 = vmatpush1.bf16.xpose.msra.mxu0 0
    %1230 = vmatprep.subr.bf16.mxu0 0
    %1231 = vmatpush1.bf16.xpose.msra.mxu0 %v1216
    %1232 = vmatprep.subr.bf16.mxu0 0
    %1233 = vmatpush1.bf16.xpose.msra.mxu0 %v1213
    %1234 = vmatprep.subr.bf16.mxu0 0
    %1235 = vmatpush2.bf16.xpose.msra.mxu0 0
    %1236 = vmatprep.subr.bf16.mxu0 0
    %1237 = vmatpush2.bf16.xpose.msra.mxu0 0
    %1238 = vmatprep.subr.bf16.mxu0 0
    %1239 = vmatpush2.bf16.xpose.msra.mxu0 0
    %1240 = vmatprep.subr.bf16.mxu0 0
    %1241 = vmatpush2.bf16.xpose.msra.mxu0 0
    %1242 = vmatprep.subr.bf16.mxu0 0
    %1243 = vmatpush2.bf16.xpose.msra.mxu0 0
    %1244 = vmatprep.subr.bf16.mxu0 0
    %1245 = vmatpush2.bf16.xpose.msra.mxu0 0
    %1246 = vmatprep.subr.bf16.mxu0 0
    %1247 = vmatpush2.bf16.xpose.msra.mxu0 0
    %1248 = vmatprep.subr.bf16.mxu0 0
    %1249 = vmatpush2.bf16.xpose.msra.mxu0 0
    %1250 = vmatprep.mubr.bf16.mxu0 0
    %1251 = vmatmul.mubr.bf16.gmra.mxu0 %v1207
    %v1252 = vpop.f32.mrf.mxu0
    %v1253 = vadd.f32 0.0, %v1252
    %v1254 = vpop.f32.mrf.mxu0
    %v1255 = vpop.f32.mrf.mxu0
    %v1256 = vadd.f32 0.0, %v1255
    %v1257 = vpop.f32.mrf.mxu0
    %1258 = vmatprep.mubr.bf16.mxu0 0
    %1259 = vmatmul.mubr.bf16.gmra.mxu0 %v1210
    %v1260 = vpop.f32.mrf.mxu0
    %v1261 = vadd.f32 0.0, %v1260
    %v1262 = vpop.f32.mrf.mxu0
    %v1263 = vpop.f32.mrf.mxu0
    %v1264 = vadd.f32 0.0, %v1263
    %v1265 = vpop.f32.mrf.mxu0
    %1266 = vdwg.mxu0
    %1269 = vrot.lane.b32.xlu0 %v491, 96
    %v1270 = vpop.permute.xlu0 %1269
    %1271 = vrot.lane.b32.xlu0 %v492, 96
    %v1272 = vpop.permute.xlu0 %1271
    %1275 = vrot.lane.b32.xlu0 %v499, 96
    %v1276 = vpop.permute.xlu0 %1275
    %1277 = vrot.lane.b32.xlu0 %v500, 96
    %v1278 = vpop.permute.xlu0 %1277
    %v1280 = vsel %vm505, %v1270, 0
    %v1283 = vsel %vm505, %v1272, 0
    %v1286 = vsel %vm505, %v1276, 0
    %v1289 = vsel %vm505, %v1278, 0
    %1291 = vmatprep.subr.bf16.mxu0 0
    %1292 = vmatpush1.bf16.xpose.msra.mxu0 0
    %1293 = vmatprep.subr.bf16.mxu0 0
    %1294 = vmatpush1.bf16.xpose.msra.mxu0 0
    %1295 = vmatprep.subr.bf16.mxu0 0
    %1296 = vmatpush1.bf16.xpose.msra.mxu0 0
    %1297 = vmatprep.subr.bf16.mxu0 0
    %1298 = vmatpush1.bf16.xpose.msra.mxu0 0
    %1299 = vmatprep.subr.bf16.mxu0 0
    %1300 = vmatpush1.bf16.xpose.msra.mxu0 0
    %1301 = vmatprep.subr.bf16.mxu0 0
    %1302 = vmatpush1.bf16.xpose.msra.mxu0 0
    %1303 = vmatprep.subr.bf16.mxu0 0
    %1304 = vmatpush1.bf16.xpose.msra.mxu0 %v1289
    %1305 = vmatprep.subr.bf16.mxu0 0
    %1306 = vmatpush1.bf16.xpose.msra.mxu0 %v1286
    %1307 = vmatprep.subr.bf16.mxu0 0
    %1308 = vmatpush2.bf16.xpose.msra.mxu0 0
    %1309 = vmatprep.subr.bf16.mxu0 0
    %1310 = vmatpush2.bf16.xpose.msra.mxu0 0
    %1311 = vmatprep.subr.bf16.mxu0 0
    %1312 = vmatpush2.bf16.xpose.msra.mxu0 0
    %1313 = vmatprep.subr.bf16.mxu0 0
    %1314 = vmatpush2.bf16.xpose.msra.mxu0 0
    %1315 = vmatprep.subr.bf16.mxu0 0
    %1316 = vmatpush2.bf16.xpose.msra.mxu0 0
    %1317 = vmatprep.subr.bf16.mxu0 0
    %1318 = vmatpush2.bf16.xpose.msra.mxu0 0
    %1319 = vmatprep.subr.bf16.mxu0 0
    %1320 = vmatpush2.bf16.xpose.msra.mxu0 0
    %1321 = vmatprep.subr.bf16.mxu0 0
    %1322 = vmatpush2.bf16.xpose.msra.mxu0 0
    %1323 = vmatprep.mubr.bf16.mxu0 0
    %1324 = vmatmul.mubr.bf16.gmra.mxu0 %v1280
    %v1325 = vpop.f32.mrf.mxu0
    %v1326 = vadd.f32 0.0, %v1325
    %v1327 = vpop.f32.mrf.mxu0
    %v1328 = vpop.f32.mrf.mxu0
    %v1329 = vadd.f32 0.0, %v1328
    %v1330 = vpop.f32.mrf.mxu0
    %1331 = vmatprep.mubr.bf16.mxu0 0
    %1332 = vmatmul.mubr.bf16.gmra.mxu0 %v1283
    %v1333 = vpop.f32.mrf.mxu0
    %v1334 = vadd.f32 0.0, %v1333
    %v1335 = vpop.f32.mrf.mxu0
    %v1336 = vpop.f32.mrf.mxu0
    %v1337 = vadd.f32 0.0, %v1336
    %v1338 = vpop.f32.mrf.mxu0
    %1339 = vdwg.mxu0
    %1342 = vrot.lane.b32.xlu0 %v493, 96
    %v1343 = vpop.permute.xlu0 %1342
    %1344 = vrot.lane.b32.xlu0 %v494, 96
    %v1345 = vpop.permute.xlu0 %1344
    %1348 = vrot.lane.b32.xlu0 %v501, 96
    %v1349 = vpop.permute.xlu0 %1348
    %1350 = vrot.lane.b32.xlu0 %v502, 96
    %v1351 = vpop.permute.xlu0 %1350
    %v1353 = vsel %vm505, %v1343, 0
    %v1356 = vsel %vm505, %v1345, 0
    %v1359 = vsel %vm505, %v1349, 0
    %v1362 = vsel %vm505, %v1351, 0
    %1364 = vmatprep.subr.bf16.mxu0 0
    %1365 = vmatpush1.bf16.xpose.msra.mxu0 0
    %1366 = vmatprep.subr.bf16.mxu0 0
    %1367 = vmatpush1.bf16.xpose.msra.mxu0 0
    %1368 = vmatprep.subr.bf16.mxu0 0
    %1369 = vmatpush1.bf16.xpose.msra.mxu0 0
    %1370 = vmatprep.subr.bf16.mxu0 0
    %1371 = vmatpush1.bf16.xpose.msra.mxu0 0
    %1372 = vmatprep.subr.bf16.mxu0 0
    %1373 = vmatpush1.bf16.xpose.msra.mxu0 0
    %1374 = vmatprep.subr.bf16.mxu0 0
    %1375 = vmatpush1.bf16.xpose.msra.mxu0 0
    %1376 = vmatprep.subr.bf16.mxu0 0
    %1377 = vmatpush1.bf16.xpose.msra.mxu0 %v1362
    %1378 = vmatprep.subr.bf16.mxu0 0
    %1379 = vmatpush1.bf16.xpose.msra.mxu0 %v1359
    %1380 = vmatprep.subr.bf16.mxu0 0
    %1381 = vmatpush2.bf16.xpose.msra.mxu0 0
    %1382 = vmatprep.subr.bf16.mxu0 0
    %1383 = vmatpush2.bf16.xpose.msra.mxu0 0
    %1384 = vmatprep.subr.bf16.mxu0 0
    %1385 = vmatpush2.bf16.xpose.msra.mxu0 0
    %1386 = vmatprep.subr.bf16.mxu0 0
    %1387 = vmatpush2.bf16.xpose.msra.mxu0 0
    %1388 = vmatprep.subr.bf16.mxu0 0
    %1389 = vmatpush2.bf16.xpose.msra.mxu0 0
    %1390 = vmatprep.subr.bf16.mxu0 0
    %1391 = vmatpush2.bf16.xpose.msra.mxu0 0
    %1392 = vmatprep.subr.bf16.mxu0 0
    %1393 = vmatpush2.bf16.xpose.msra.mxu0 0
    %1394 = vmatprep.subr.bf16.mxu0 0
    %1395 = vmatpush2.bf16.xpose.msra.mxu0 0
    %1396 = vmatprep.mubr.bf16.mxu0 0
    %1397 = vmatmul.mubr.bf16.gmra.mxu0 %v1353
    %v1398 = vpop.f32.mrf.mxu0
    %v1399 = vadd.f32 0.0, %v1398
    %v1400 = vpop.f32.mrf.mxu0
    %v1401 = vpop.f32.mrf.mxu0
    %v1402 = vadd.f32 0.0, %v1401
    %v1403 = vpop.f32.mrf.mxu0
    %1404 = vmatprep.mubr.bf16.mxu0 0
    %1405 = vmatmul.mubr.bf16.gmra.mxu0 %v1356
    %v1406 = vpop.f32.mrf.mxu0
    %v1407 = vadd.f32 0.0, %v1406
    %v1408 = vpop.f32.mrf.mxu0
    %v1409 = vpop.f32.mrf.mxu0
    %v1410 = vadd.f32 0.0, %v1409
    %v1411 = vpop.f32.mrf.mxu0
    %1412 = vdwg.mxu0
    %1415 = vrot.lane.b32.xlu0 %v495, 96
    %v1416 = vpop.permute.xlu0 %1415
    %1417 = vrot.lane.b32.xlu0 %v496, 96
    %v1418 = vpop.permute.xlu0 %1417
    %1421 = vrot.lane.b32.xlu0 %v503, 96
    %v1422 = vpop.permute.xlu0 %1421
    %1423 = vrot.lane.b32.xlu0 %v504, 96
    %v1424 = vpop.permute.xlu0 %1423
    %v1426 = vsel %vm505, %v1416, 0
    %v1429 = vsel %vm505, %v1418, 0
    %v1432 = vsel %vm505, %v1422, 0
    %v1435 = vsel %vm505, %v1424, 0
    %1437 = vmatprep.subr.bf16.mxu0 0
    %1438 = vmatpush1.bf16.xpose.msra.mxu0 0
    %1439 = vmatprep.subr.bf16.mxu0 0
    %1440 = vmatpush1.bf16.xpose.msra.mxu0 0
    %1441 = vmatprep.subr.bf16.mxu0 0
    %1442 = vmatpush1.bf16.xpose.msra.mxu0 0
    %1443 = vmatprep.subr.bf16.mxu0 0
    %1444 = vmatpush1.bf16.xpose.msra.mxu0 0
    %1445 = vmatprep.subr.bf16.mxu0 0
    %1446 = vmatpush1.bf16.xpose.msra.mxu0 0
    %1447 = vmatprep.subr.bf16.mxu0 0
    %1448 = vmatpush1.bf16.xpose.msra.mxu0 0
    %1449 = vmatprep.subr.bf16.mxu0 0
    %1450 = vmatpush1.bf16.xpose.msra.mxu0 %v1435
    %1451 = vmatprep.subr.bf16.mxu0 0
    %1452 = vmatpush1.bf16.xpose.msra.mxu0 %v1432
    %1453 = vmatprep.subr.bf16.mxu0 0
    %1454 = vmatpush2.bf16.xpose.msra.mxu0 0
    %1455 = vmatprep.subr.bf16.mxu0 0
    %1456 = vmatpush2.bf16.xpose.msra.mxu0 0
    %1457 = vmatprep.subr.bf16.mxu0 0
    %1458 = vmatpush2.bf16.xpose.msra.mxu0 0
    %1459 = vmatprep.subr.bf16.mxu0 0
    %1460 = vmatpush2.bf16.xpose.msra.mxu0 0
    %1461 = vmatprep.subr.bf16.mxu0 0
    %1462 = vmatpush2.bf16.xpose.msra.mxu0 0
    %1463 = vmatprep.subr.bf16.mxu0 0
    %1464 = vmatpush2.bf16.xpose.msra.mxu0 0
    %1465 = vmatprep.subr.bf16.mxu0 0
    %1466 = vmatpush2.bf16.xpose.msra.mxu0 0
    %1467 = vmatprep.subr.bf16.mxu0 0
    %1468 = vmatpush2.bf16.xpose.msra.mxu0 0
    %1469 = vmatprep.mubr.bf16.mxu0 0
    %1470 = vmatmul.mubr.bf16.gmra.mxu0 %v1426
    %v1471 = vpop.f32.mrf.mxu0
    %v1472 = vadd.f32 0.0, %v1471
    %v1473 = vpop.f32.mrf.mxu0
    %v1474 = vpop.f32.mrf.mxu0
    %v1475 = vadd.f32 0.0, %v1474
    %v1476 = vpop.f32.mrf.mxu0
    %1477 = vmatprep.mubr.bf16.mxu0 0
    %1478 = vmatmul.mubr.bf16.gmra.mxu0 %v1429
    %v1479 = vpop.f32.mrf.mxu0
    %v1480 = vadd.f32 0.0, %v1479
    %v1481 = vpop.f32.mrf.mxu0
    %v1482 = vpop.f32.mrf.mxu0
    %v1483 = vadd.f32 0.0, %v1482
    %v1484 = vpop.f32.mrf.mxu0
    %1485 = vdwg.mxu0
    %v1486 = vmul.f32 %v1253, 0.17677669
    %v1487 = vmul.f32 %v1256, 0.17677669
    %v1488 = vmul.f32 %v1261, 0.17677669
    %v1489 = vmul.f32 %v1264, 0.17677669
    %v1490 = vmul.f32 %v1326, 0.17677669
    %v1491 = vmul.f32 %v1329, 0.17677669
    %v1492 = vmul.f32 %v1334, 0.17677669
    %v1493 = vmul.f32 %v1337, 0.17677669
    %v1494 = vmul.f32 %v1399, 0.17677669
    %v1495 = vmul.f32 %v1402, 0.17677669
    %v1496 = vmul.f32 %v1407, 0.17677669
    %v1497 = vmul.f32 %v1410, 0.17677669
    %v1498 = vmul.f32 %v1472, 0.17677669
    %v1499 = vmul.f32 %v1475, 0.17677669
    %v1500 = vmul.f32 %v1480, 0.17677669
    %v1501 = vmul.f32 %v1483, 0.17677669
    %v1502 = vadd.f32 %v1486, %v485
    %v1503 = vadd.f32 %v1487, %v486
    %v1504 = vadd.f32 %v1488, %v487
    %v1505 = vadd.f32 %v1489, %v488
    %v1506 = vadd.f32 %v1490, %v485
    %v1507 = vadd.f32 %v1491, %v486
    %v1508 = vadd.f32 %v1492, %v487
    %v1509 = vadd.f32 %v1493, %v488
    %v1510 = vadd.f32 %v1494, %v485
    %v1511 = vadd.f32 %v1495, %v486
    %v1512 = vadd.f32 %v1496, %v487
    %v1513 = vadd.f32 %v1497, %v488
    %v1514 = vadd.f32 %v1498, %v485
    %v1515 = vadd.f32 %v1499, %v486
    %v1516 = vadd.f32 %v1500, %v487
    %v1517 = vadd.f32 %v1501, %v488
    %v1518 = vsel %vm505, %v1502, -inf
    %1519 = vmax.xlane.f32.xlu0 %v1518
    %v1520 = vpop.xlane.xlu0 %1519
    %v1521 = vsel %vm505, %v1503, -inf
    %1522 = vmax.xlane.f32.xlu0 %v1521
    %v1523 = vpop.xlane.xlu0 %1522
    %v1524 = vsel %vm505, %v1504, -inf
    %1525 = vmax.xlane.f32.xlu0 %v1524
    %v1526 = vpop.xlane.xlu0 %1525
    %v1527 = vsel %vm505, %v1505, -inf
    %1528 = vmax.xlane.f32.xlu0 %v1527
    %v1529 = vpop.xlane.xlu0 %1528
    %v1530 = vsel %vm505, %v1506, -inf
    %1531 = vmax.xlane.f32.xlu0 %v1530
    %v1532 = vpop.xlane.xlu0 %1531
    %v1533 = vsel %vm505, %v1507, -inf
    %1534 = vmax.xlane.f32.xlu0 %v1533
    %v1535 = vpop.xlane.xlu0 %1534
    %v1536 = vsel %vm505, %v1508, -inf
    %1537 = vmax.xlane.f32.xlu0 %v1536
    %v1538 = vpop.xlane.xlu0 %1537
    %v1539 = vsel %vm505, %v1509, -inf
    %1540 = vmax.xlane.f32.xlu0 %v1539
    %v1541 = vpop.xlane.xlu0 %1540
    %v1542 = vsel %vm505, %v1510, -inf
    %1543 = vmax.xlane.f32.xlu0 %v1542
    %v1544 = vpop.xlane.xlu0 %1543
    %v1545 = vsel %vm505, %v1511, -inf
    %1546 = vmax.xlane.f32.xlu0 %v1545
    %v1547 = vpop.xlane.xlu0 %1546
    %v1548 = vsel %vm505, %v1512, -inf
    %1549 = vmax.xlane.f32.xlu0 %v1548
    %v1550 = vpop.xlane.xlu0 %1549
    %v1551 = vsel %vm505, %v1513, -inf
    %1552 = vmax.xlane.f32.xlu0 %v1551
    %v1553 = vpop.xlane.xlu0 %1552
    %v1554 = vsel %vm505, %v1514, -inf
    %1555 = vmax.xlane.f32.xlu0 %v1554
    %v1556 = vpop.xlane.xlu0 %1555
    %v1557 = vsel %vm505, %v1515, -inf
    %1558 = vmax.xlane.f32.xlu0 %v1557
    %v1559 = vpop.xlane.xlu0 %1558
    %v1560 = vsel %vm505, %v1516, -inf
    %1561 = vmax.xlane.f32.xlu0 %v1560
    %v1562 = vpop.xlane.xlu0 %1561
    %v1563 = vsel %vm505, %v1517, -inf
    %1564 = vmax.xlane.f32.xlu0 %v1563
    %v1565 = vpop.xlane.xlu0 %1564
    %v1566 = vsub.f32 %v1502, %v1520
    %v1567 = vsub.f32 %v1503, %v1523
    %v1568 = vsub.f32 %v1504, %v1526
    %v1569 = vsub.f32 %v1505, %v1529
    %v1570 = vsub.f32 %v1506, %v1532
    %v1571 = vsub.f32 %v1507, %v1535
    %v1572 = vsub.f32 %v1508, %v1538
    %v1573 = vsub.f32 %v1509, %v1541
    %v1574 = vsub.f32 %v1510, %v1544
    %v1575 = vsub.f32 %v1511, %v1547
    %v1576 = vsub.f32 %v1512, %v1550
    %v1577 = vsub.f32 %v1513, %v1553
    %v1578 = vsub.f32 %v1514, %v1556
    %v1579 = vsub.f32 %v1515, %v1559
    %v1580 = vsub.f32 %v1516, %v1562
    %v1581 = vsub.f32 %v1517, %v1565
    %v1582 = vmul.f32 %v1566, 1.442695
    %v1583 = vpow.pop %v1582
    %v1584 = vmul.f32 %v1567, 1.442695
    %v1585 = vpow.pop %v1584
    %v1586 = vmul.f32 %v1568, 1.442695
    %v1587 = vpow.pop %v1586
    %v1588 = vmul.f32 %v1569, 1.442695
    %v1589 = vpow.pop %v1588
    %v1590 = vmul.f32 %v1570, 1.442695
    %v1591 = vpow.pop %v1590
    %v1592 = vmul.f32 %v1571, 1.442695
    %v1593 = vpow.pop %v1592
    %v1594 = vmul.f32 %v1572, 1.442695
    %v1595 = vpow.pop %v1594
    %v1596 = vmul.f32 %v1573, 1.442695
    %v1597 = vpow.pop %v1596
    %v1598 = vmul.f32 %v1574, 1.442695
    %v1599 = vpow.pop %v1598
    %v1600 = vmul.f32 %v1575, 1.442695
    %v1601 = vpow.pop %v1600
    %v1602 = vmul.f32 %v1576, 1.442695
    %v1603 = vpow.pop %v1602
    %v1604 = vmul.f32 %v1577, 1.442695
    %v1605 = vpow.pop %v1604
    %v1606 = vmul.f32 %v1578, 1.442695
    %v1607 = vpow.pop %v1606
    %v1608 = vmul.f32 %v1579, 1.442695
    %v1609 = vpow.pop %v1608
    %v1610 = vmul.f32 %v1580, 1.442695
    %v1611 = vpow.pop %v1610
    %v1612 = vmul.f32 %v1581, 1.442695
    %v1613 = vpow.pop %v1612
    %v1614 = vsel %vm505, %v1583, 0.0
    %1615 = vadd.xlane.f32.xlu0 %v1614
    %v1616 = vpop.xlane.xlu0 %1615
    %v1617 = vsel %vm505, %v1585, 0.0
    %1618 = vadd.xlane.f32.xlu0 %v1617
    %v1619 = vpop.xlane.xlu0 %1618
    %v1620 = vsel %vm505, %v1587, 0.0
    %1621 = vadd.xlane.f32.xlu0 %v1620
    %v1622 = vpop.xlane.xlu0 %1621
    %v1623 = vsel %vm505, %v1589, 0.0
    %1624 = vadd.xlane.f32.xlu0 %v1623
    %v1625 = vpop.xlane.xlu0 %1624
    %v1626 = vsel %vm505, %v1591, 0.0
    %1627 = vadd.xlane.f32.xlu0 %v1626
    %v1628 = vpop.xlane.xlu0 %1627
    %v1629 = vsel %vm505, %v1593, 0.0
    %1630 = vadd.xlane.f32.xlu0 %v1629
    %v1631 = vpop.xlane.xlu0 %1630
    %v1632 = vsel %vm505, %v1595, 0.0
    %1633 = vadd.xlane.f32.xlu0 %v1632
    %v1634 = vpop.xlane.xlu0 %1633
    %v1635 = vsel %vm505, %v1597, 0.0
    %1636 = vadd.xlane.f32.xlu0 %v1635
    %v1637 = vpop.xlane.xlu0 %1636
    %v1638 = vsel %vm505, %v1599, 0.0
    %1639 = vadd.xlane.f32.xlu0 %v1638
    %v1640 = vpop.xlane.xlu0 %1639
    %v1641 = vsel %vm505, %v1601, 0.0
    %1642 = vadd.xlane.f32.xlu0 %v1641
    %v1643 = vpop.xlane.xlu0 %1642
    %v1644 = vsel %vm505, %v1603, 0.0
    %1645 = vadd.xlane.f32.xlu0 %v1644
    %v1646 = vpop.xlane.xlu0 %1645
    %v1647 = vsel %vm505, %v1605, 0.0
    %1648 = vadd.xlane.f32.xlu0 %v1647
    %v1649 = vpop.xlane.xlu0 %1648
    %v1650 = vsel %vm505, %v1607, 0.0
    %1651 = vadd.xlane.f32.xlu0 %v1650
    %v1652 = vpop.xlane.xlu0 %1651
    %v1653 = vsel %vm505, %v1609, 0.0
    %1654 = vadd.xlane.f32.xlu0 %v1653
    %v1655 = vpop.xlane.xlu0 %1654
    %v1656 = vsel %vm505, %v1611, 0.0
    %1657 = vadd.xlane.f32.xlu0 %v1656
    %v1658 = vpop.xlane.xlu0 %1657
    %v1659 = vsel %vm505, %v1613, 0.0
    %1660 = vadd.xlane.f32.xlu0 %v1659
    %v1661 = vpop.xlane.xlu0 %1660
    %v1662 = vrcp.pop %v1616
    %v1663 = vrcp.pop %v1619
    %v1664 = vrcp.pop %v1622
    %v1665 = vrcp.pop %v1625
    %v1666 = vrcp.pop %v1628
    %v1667 = vrcp.pop %v1631
    %v1668 = vrcp.pop %v1634
    %v1669 = vrcp.pop %v1637
    %v1670 = vrcp.pop %v1640
    %v1671 = vrcp.pop %v1643
    %v1672 = vrcp.pop %v1646
    %v1673 = vrcp.pop %v1649
    %v1674 = vrcp.pop %v1652
    %v1675 = vrcp.pop %v1655
    %v1676 = vrcp.pop %v1658
    %v1677 = vrcp.pop %v1661
    %v1678 = vmul.f32 %v1583, %v1662
    %v1679 = vmul.f32 %v1585, %v1663
    %v1680 = vmul.f32 %v1587, %v1664
    %v1681 = vmul.f32 %v1589, %v1665
    %v1682 = vmul.f32 %v1591, %v1666
    %v1683 = vmul.f32 %v1593, %v1667
    %v1684 = vmul.f32 %v1595, %v1668
    %v1685 = vmul.f32 %v1597, %v1669
    %v1686 = vmul.f32 %v1599, %v1670
    %v1687 = vmul.f32 %v1601, %v1671
    %v1688 = vmul.f32 %v1603, %v1672
    %v1689 = vmul.f32 %v1605, %v1673
    %v1690 = vmul.f32 %v1607, %v1674
    %v1691 = vmul.f32 %v1609, %v1675
    %v1692 = vmul.f32 %v1611, %v1676
    %v1693 = vmul.f32 %v1613, %v1677
    %v1694 = vpack.c.bf16 %v1679, %v1678
    %v1695 = vpack.c.bf16 %v1681, %v1680
    %v1696 = vpack.c.bf16 %v1683, %v1682
    %v1697 = vpack.c.bf16 %v1685, %v1684
    %v1698 = vpack.c.bf16 %v1687, %v1686
    %v1699 = vpack.c.bf16 %v1689, %v1688
    %v1700 = vpack.c.bf16 %v1691, %v1690
    %v1701 = vpack.c.bf16 %v1693, %v1692
    %1704 = vrot.lane.b32.xlu0 %v966, 96
    %v1705 = vpop.permute.xlu0 %1704
    %1706 = vrot.lane.b32.xlu0 %v967, 96
    %v1707 = vpop.permute.xlu0 %1706
    %v1711 = vsel %vm505, %v1694, 0
    %v1714 = vsel %vm505, %v1695, 0
    %1716 = vmatprep.subr.bf16.mxu0 0
    %1717 = vmatpush1.bf16.msra.mxu0 0
    %1718 = vmatprep.subr.bf16.mxu0 0
    %1719 = vmatpush1.bf16.msra.mxu0 0
    %1720 = vmatprep.subr.bf16.mxu0 0
    %1721 = vmatpush1.bf16.msra.mxu0 0
    %1722 = vmatprep.subr.bf16.mxu0 0
    %1723 = vmatpush1.bf16.msra.mxu0 0
    %1724 = vmatprep.subr.bf16.mxu0 0
    %1725 = vmatpush1.bf16.msra.mxu0 0
    %1726 = vmatprep.subr.bf16.mxu0 0
    %1727 = vmatpush1.bf16.msra.mxu0 0
    %1728 = vmatprep.subr.bf16.mxu0 0
    %1729 = vmatpush1.bf16.msra.mxu0 %v1707
    %1730 = vmatprep.subr.bf16.mxu0 0
    %1731 = vmatpush1.bf16.msra.mxu0 %v1705
    %1732 = vmatprep.subr.bf16.mxu0 0
    %1733 = vmatpush2.bf16.msra.mxu0 0
    %1734 = vmatprep.subr.bf16.mxu0 0
    %1735 = vmatpush2.bf16.msra.mxu0 0
    %1736 = vmatprep.subr.bf16.mxu0 0
    %1737 = vmatpush2.bf16.msra.mxu0 0
    %1738 = vmatprep.subr.bf16.mxu0 0
    %1739 = vmatpush2.bf16.msra.mxu0 0
    %1740 = vmatprep.subr.bf16.mxu0 0
    %1741 = vmatpush2.bf16.msra.mxu0 0
    %1742 = vmatprep.subr.bf16.mxu0 0
    %1743 = vmatpush2.bf16.msra.mxu0 0
    %1744 = vmatprep.subr.bf16.mxu0 0
    %1745 = vmatpush2.bf16.msra.mxu0 0
    %1746 = vmatprep.subr.bf16.mxu0 0
    %1747 = vmatpush2.bf16.msra.mxu0 0
    %1748 = vmatprep.mubr.bf16.mxu0 0
    %1749 = vmatmul.mubr.bf16.gmra.mxu0 %v1711
    %v1750 = vpop.f32.mrf.mxu0
    %v1751 = vadd.f32 0.0, %v1750
    %v1752 = vpop.f32.mrf.mxu0
    %v1753 = vpop.f32.mrf.mxu0
    %v1754 = vadd.f32 0.0, %v1753
    %v1755 = vpop.f32.mrf.mxu0
    %1756 = vmatprep.mubr.bf16.mxu0 0
    %1757 = vmatmul.mubr.bf16.gmra.mxu0 %v1714
    %v1758 = vpop.f32.mrf.mxu0
    %v1759 = vadd.f32 0.0, %v1758
    %v1760 = vpop.f32.mrf.mxu0
    %v1761 = vpop.f32.mrf.mxu0
    %v1762 = vadd.f32 0.0, %v1761
    %v1763 = vpop.f32.mrf.mxu0
    %1764 = vdwg.mxu0
    %1767 = vrot.lane.b32.xlu0 %v968, 96
    %v1768 = vpop.permute.xlu0 %1767
    %1769 = vrot.lane.b32.xlu0 %v969, 96
    %v1770 = vpop.permute.xlu0 %1769
    %v1774 = vsel %vm505, %v1696, 0
    %v1777 = vsel %vm505, %v1697, 0
    %1779 = vmatprep.subr.bf16.mxu0 0
    %1780 = vmatpush1.bf16.msra.mxu0 0
    %1781 = vmatprep.subr.bf16.mxu0 0
    %1782 = vmatpush1.bf16.msra.mxu0 0
    %1783 = vmatprep.subr.bf16.mxu0 0
    %1784 = vmatpush1.bf16.msra.mxu0 0
    %1785 = vmatprep.subr.bf16.mxu0 0
    %1786 = vmatpush1.bf16.msra.mxu0 0
    %1787 = vmatprep.subr.bf16.mxu0 0
    %1788 = vmatpush1.bf16.msra.mxu0 0
    %1789 = vmatprep.subr.bf16.mxu0 0
    %1790 = vmatpush1.bf16.msra.mxu0 0
    %1791 = vmatprep.subr.bf16.mxu0 0
    %1792 = vmatpush1.bf16.msra.mxu0 %v1770
    %1793 = vmatprep.subr.bf16.mxu0 0
    %1794 = vmatpush1.bf16.msra.mxu0 %v1768
    %1795 = vmatprep.subr.bf16.mxu0 0
    %1796 = vmatpush2.bf16.msra.mxu0 0
    %1797 = vmatprep.subr.bf16.mxu0 0
    %1798 = vmatpush2.bf16.msra.mxu0 0
    %1799 = vmatprep.subr.bf16.mxu0 0
    %1800 = vmatpush2.bf16.msra.mxu0 0
    %1801 = vmatprep.subr.bf16.mxu0 0
    %1802 = vmatpush2.bf16.msra.mxu0 0
    %1803 = vmatprep.subr.bf16.mxu0 0
    %1804 = vmatpush2.bf16.msra.mxu0 0
    %1805 = vmatprep.subr.bf16.mxu0 0
    %1806 = vmatpush2.bf16.msra.mxu0 0
    %1807 = vmatprep.subr.bf16.mxu0 0
    %1808 = vmatpush2.bf16.msra.mxu0 0
    %1809 = vmatprep.subr.bf16.mxu0 0
    %1810 = vmatpush2.bf16.msra.mxu0 0
    %1811 = vmatprep.mubr.bf16.mxu0 0
    %1812 = vmatmul.mubr.bf16.gmra.mxu0 %v1774
    %v1813 = vpop.f32.mrf.mxu0
    %v1814 = vadd.f32 0.0, %v1813
    %v1815 = vpop.f32.mrf.mxu0
    %v1816 = vpop.f32.mrf.mxu0
    %v1817 = vadd.f32 0.0, %v1816
    %v1818 = vpop.f32.mrf.mxu0
    %1819 = vmatprep.mubr.bf16.mxu0 0
    %1820 = vmatmul.mubr.bf16.gmra.mxu0 %v1777
    %v1821 = vpop.f32.mrf.mxu0
    %v1822 = vadd.f32 0.0, %v1821
    %v1823 = vpop.f32.mrf.mxu0
    %v1824 = vpop.f32.mrf.mxu0
    %v1825 = vadd.f32 0.0, %v1824
    %v1826 = vpop.f32.mrf.mxu0
    %1827 = vdwg.mxu0
    %1830 = vrot.lane.b32.xlu0 %v970, 96
    %v1831 = vpop.permute.xlu0 %1830
    %1832 = vrot.lane.b32.xlu0 %v971, 96
    %v1833 = vpop.permute.xlu0 %1832
    %v1837 = vsel %vm505, %v1698, 0
    %v1840 = vsel %vm505, %v1699, 0
    %1842 = vmatprep.subr.bf16.mxu0 0
    %1843 = vmatpush1.bf16.msra.mxu0 0
    %1844 = vmatprep.subr.bf16.mxu0 0
    %1845 = vmatpush1.bf16.msra.mxu0 0
    %1846 = vmatprep.subr.bf16.mxu0 0
    %1847 = vmatpush1.bf16.msra.mxu0 0
    %1848 = vmatprep.subr.bf16.mxu0 0
    %1849 = vmatpush1.bf16.msra.mxu0 0
    %1850 = vmatprep.subr.bf16.mxu0 0
    %1851 = vmatpush1.bf16.msra.mxu0 0
    %1852 = vmatprep.subr.bf16.mxu0 0
    %1853 = vmatpush1.bf16.msra.mxu0 0
    %1854 = vmatprep.subr.bf16.mxu0 0
    %1855 = vmatpush1.bf16.msra.mxu0 %v1833
    %1856 = vmatprep.subr.bf16.mxu0 0
    %1857 = vmatpush1.bf16.msra.mxu0 %v1831
    %1858 = vmatprep.subr.bf16.mxu0 0
    %1859 = vmatpush2.bf16.msra.mxu0 0
    %1860 = vmatprep.subr.bf16.mxu0 0
    %1861 = vmatpush2.bf16.msra.mxu0 0
    %1862 = vmatprep.subr.bf16.mxu0 0
    %1863 = vmatpush2.bf16.msra.mxu0 0
    %1864 = vmatprep.subr.bf16.mxu0 0
    %1865 = vmatpush2.bf16.msra.mxu0 0
    %1866 = vmatprep.subr.bf16.mxu0 0
    %1867 = vmatpush2.bf16.msra.mxu0 0
    %1868 = vmatprep.subr.bf16.mxu0 0
    %1869 = vmatpush2.bf16.msra.mxu0 0
    %1870 = vmatprep.subr.bf16.mxu0 0
    %1871 = vmatpush2.bf16.msra.mxu0 0
    %1872 = vmatprep.subr.bf16.mxu0 0
    %1873 = vmatpush2.bf16.msra.mxu0 0
    %1874 = vmatprep.mubr.bf16.mxu0 0
    %1875 = vmatmul.mubr.bf16.gmra.mxu0 %v1837
    %v1876 = vpop.f32.mrf.mxu0
    %v1877 = vadd.f32 0.0, %v1876
    %v1878 = vpop.f32.mrf.mxu0
    %v1879 = vpop.f32.mrf.mxu0
    %v1880 = vadd.f32 0.0, %v1879
    %v1881 = vpop.f32.mrf.mxu0
    %1882 = vmatprep.mubr.bf16.mxu0 0
    %1883 = vmatmul.mubr.bf16.gmra.mxu0 %v1840
    %v1884 = vpop.f32.mrf.mxu0
    %v1885 = vadd.f32 0.0, %v1884
    %v1886 = vpop.f32.mrf.mxu0
    %v1887 = vpop.f32.mrf.mxu0
    %v1888 = vadd.f32 0.0, %v1887
    %v1889 = vpop.f32.mrf.mxu0
    %1890 = vdwg.mxu0
    %1893 = vrot.lane.b32.xlu0 %v972, 96
    %v1894 = vpop.permute.xlu0 %1893
    %1895 = vrot.lane.b32.xlu0 %v973, 96
    %v1896 = vpop.permute.xlu0 %1895
    %v1900 = vsel %vm505, %v1700, 0
    %v1903 = vsel %vm505, %v1701, 0
    %1905 = vmatprep.subr.bf16.mxu0 0
    %1906 = vmatpush1.bf16.msra.mxu0 0
    %1907 = vmatprep.subr.bf16.mxu0 0
    %1908 = vmatpush1.bf16.msra.mxu0 0
    %1909 = vmatprep.subr.bf16.mxu0 0
    %1910 = vmatpush1.bf16.msra.mxu0 0
    %1911 = vmatprep.subr.bf16.mxu0 0
    %1912 = vmatpush1.bf16.msra.mxu0 0
    %1913 = vmatprep.subr.bf16.mxu0 0
    %1914 = vmatpush1.bf16.msra.mxu0 0
    %1915 = vmatprep.subr.bf16.mxu0 0
    %1916 = vmatpush1.bf16.msra.mxu0 0
    %1917 = vmatprep.subr.bf16.mxu0 0
    %1918 = vmatpush1.bf16.msra.mxu0 %v1896
    %1919 = vmatprep.subr.bf16.mxu0 0
    %1920 = vmatpush1.bf16.msra.mxu0 %v1894
    %1921 = vmatprep.subr.bf16.mxu0 0
    %1922 = vmatpush2.bf16.msra.mxu0 0
    %1923 = vmatprep.subr.bf16.mxu0 0
    %1924 = vmatpush2.bf16.msra.mxu0 0
    %1925 = vmatprep.subr.bf16.mxu0 0
    %1926 = vmatpush2.bf16.msra.mxu0 0
    %1927 = vmatprep.subr.bf16.mxu0 0
    %1928 = vmatpush2.bf16.msra.mxu0 0
    %1929 = vmatprep.subr.bf16.mxu0 0
    %1930 = vmatpush2.bf16.msra.mxu0 0
    %1931 = vmatprep.subr.bf16.mxu0 0
    %1932 = vmatpush2.bf16.msra.mxu0 0
    %1933 = vmatprep.subr.bf16.mxu0 0
    %1934 = vmatpush2.bf16.msra.mxu0 0
    %1935 = vmatprep.subr.bf16.mxu0 0
    %1936 = vmatpush2.bf16.msra.mxu0 0
    %1937 = vmatprep.mubr.bf16.mxu0 0
    %1938 = vmatmul.mubr.bf16.gmra.mxu0 %v1900
    %v1939 = vpop.f32.mrf.mxu0
    %v1940 = vadd.f32 0.0, %v1939
    %v1941 = vpop.f32.mrf.mxu0
    %v1942 = vpop.f32.mrf.mxu0
    %v1943 = vadd.f32 0.0, %v1942
    %v1944 = vpop.f32.mrf.mxu0
    %1945 = vmatprep.mubr.bf16.mxu0 0
    %1946 = vmatmul.mubr.bf16.gmra.mxu0 %v1903
    %v1947 = vpop.f32.mrf.mxu0
    %v1948 = vadd.f32 0.0, %v1947
    %v1949 = vpop.f32.mrf.mxu0
    %v1950 = vpop.f32.mrf.mxu0
    %v1951 = vadd.f32 0.0, %v1950
    %v1952 = vpop.f32.mrf.mxu0
    %1953 = vdwg.mxu0
    %1954 = vrot.lane.b32.xlu0 %v489, 64
    %v1955 = vpop.permute.xlu0 %1954
    %1956 = vrot.lane.b32.xlu0 %v490, 64
    %v1957 = vpop.permute.xlu0 %1956
    %1958 = vrot.lane.b32.xlu0 %v497, 64
    %v1959 = vpop.permute.xlu0 %1958
    %1960 = vrot.lane.b32.xlu0 %v498, 64
    %v1961 = vpop.permute.xlu0 %1960
    %v1963 = vsel %vm505, %v1955, 0
    %v1966 = vsel %vm505, %v1957, 0
    %v1969 = vsel %vm505, %v1959, 0
    %v1972 = vsel %vm505, %v1961, 0
    %1974 = vmatprep.subr.bf16.mxu0 0
    %1975 = vmatpush1.bf16.xpose.msra.mxu0 0
    %1976 = vmatprep.subr.bf16.mxu0 0
    %1977 = vmatpush1.bf16.xpose.msra.mxu0 0
    %1978 = vmatprep.subr.bf16.mxu0 0
    %1979 = vmatpush1.bf16.xpose.msra.mxu0 0
    %1980 = vmatprep.subr.bf16.mxu0 0
    %1981 = vmatpush1.bf16.xpose.msra.mxu0 0
    %1982 = vmatprep.subr.bf16.mxu0 0
    %1983 = vmatpush1.bf16.xpose.msra.mxu0 0
    %1984 = vmatprep.subr.bf16.mxu0 0
    %1985 = vmatpush1.bf16.xpose.msra.mxu0 0
    %1986 = vmatprep.subr.bf16.mxu0 0
    %1987 = vmatpush1.bf16.xpose.msra.mxu0 %v1972
    %1988 = vmatprep.subr.bf16.mxu0 0
    %1989 = vmatpush1.bf16.xpose.msra.mxu0 %v1969
    %1990 = vmatprep.subr.bf16.mxu0 0
    %1991 = vmatpush2.bf16.xpose.msra.mxu0 0
    %1992 = vmatprep.subr.bf16.mxu0 0
    %1993 = vmatpush2.bf16.xpose.msra.mxu0 0
    %1994 = vmatprep.subr.bf16.mxu0 0
    %1995 = vmatpush2.bf16.xpose.msra.mxu0 0
    %1996 = vmatprep.subr.bf16.mxu0 0
    %1997 = vmatpush2.bf16.xpose.msra.mxu0 0
    %1998 = vmatprep.subr.bf16.mxu0 0
    %1999 = vmatpush2.bf16.xpose.msra.mxu0 0
    %2000 = vmatprep.subr.bf16.mxu0 0
    %2001 = vmatpush2.bf16.xpose.msra.mxu0 0
    %2002 = vmatprep.subr.bf16.mxu0 0
    %2003 = vmatpush2.bf16.xpose.msra.mxu0 0
    %2004 = vmatprep.subr.bf16.mxu0 0
    %2005 = vmatpush2.bf16.xpose.msra.mxu0 0
    %2006 = vmatprep.mubr.bf16.mxu0 0
    %2007 = vmatmul.mubr.bf16.gmra.mxu0 %v1963
    %v2008 = vpop.f32.mrf.mxu0
    %v2009 = vadd.f32 0.0, %v2008
    %v2010 = vpop.f32.mrf.mxu0
    %v2011 = vpop.f32.mrf.mxu0
    %v2012 = vadd.f32 0.0, %v2011
    %v2013 = vpop.f32.mrf.mxu0
    %2014 = vmatprep.mubr.bf16.mxu0 0
    %2015 = vmatmul.mubr.bf16.gmra.mxu0 %v1966
    %v2016 = vpop.f32.mrf.mxu0
    %v2017 = vadd.f32 0.0, %v2016
    %v2018 = vpop.f32.mrf.mxu0
    %v2019 = vpop.f32.mrf.mxu0
    %v2020 = vadd.f32 0.0, %v2019
    %v2021 = vpop.f32.mrf.mxu0
    %2022 = vdwg.mxu0
    %2023 = vrot.lane.b32.xlu0 %v491, 64
    %v2024 = vpop.permute.xlu0 %2023
    %2025 = vrot.lane.b32.xlu0 %v492, 64
    %v2026 = vpop.permute.xlu0 %2025
    %2027 = vrot.lane.b32.xlu0 %v499, 64
    %v2028 = vpop.permute.xlu0 %2027
    %2029 = vrot.lane.b32.xlu0 %v500, 64
    %v2030 = vpop.permute.xlu0 %2029
    %v2032 = vsel %vm505, %v2024, 0
    %v2035 = vsel %vm505, %v2026, 0
    %v2038 = vsel %vm505, %v2028, 0
    %v2041 = vsel %vm505, %v2030, 0
    %2043 = vmatprep.subr.bf16.mxu0 0
    %2044 = vmatpush1.bf16.xpose.msra.mxu0 0
    %2045 = vmatprep.subr.bf16.mxu0 0
    %2046 = vmatpush1.bf16.xpose.msra.mxu0 0
    %2047 = vmatprep.subr.bf16.mxu0 0
    %2048 = vmatpush1.bf16.xpose.msra.mxu0 0
    %2049 = vmatprep.subr.bf16.mxu0 0
    %2050 = vmatpush1.bf16.xpose.msra.mxu0 0
    %2051 = vmatprep.subr.bf16.mxu0 0
    %2052 = vmatpush1.bf16.xpose.msra.mxu0 0
    %2053 = vmatprep.subr.bf16.mxu0 0
    %2054 = vmatpush1.bf16.xpose.msra.mxu0 0
    %2055 = vmatprep.subr.bf16.mxu0 0
    %2056 = vmatpush1.bf16.xpose.msra.mxu0 %v2041
    %2057 = vmatprep.subr.bf16.mxu0 0
    %2058 = vmatpush1.bf16.xpose.msra.mxu0 %v2038
    %2059 = vmatprep.subr.bf16.mxu0 0
    %2060 = vmatpush2.bf16.xpose.msra.mxu0 0
    %2061 = vmatprep.subr.bf16.mxu0 0
    %2062 = vmatpush2.bf16.xpose.msra.mxu0 0
    %2063 = vmatprep.subr.bf16.mxu0 0
    %2064 = vmatpush2.bf16.xpose.msra.mxu0 0
    %2065 = vmatprep.subr.bf16.mxu0 0
    %2066 = vmatpush2.bf16.xpose.msra.mxu0 0
    %2067 = vmatprep.subr.bf16.mxu0 0
    %2068 = vmatpush2.bf16.xpose.msra.mxu0 0
    %2069 = vmatprep.subr.bf16.mxu0 0
    %2070 = vmatpush2.bf16.xpose.msra.mxu0 0
    %2071 = vmatprep.subr.bf16.mxu0 0
    %2072 = vmatpush2.bf16.xpose.msra.mxu0 0
    %2073 = vmatprep.subr.bf16.mxu0 0
    %2074 = vmatpush2.bf16.xpose.msra.mxu0 0
    %2075 = vmatprep.mubr.bf16.mxu0 0
    %2076 = vmatmul.mubr.bf16.gmra.mxu0 %v2032
    %v2077 = vpop.f32.mrf.mxu0
    %v2078 = vadd.f32 0.0, %v2077
    %v2079 = vpop.f32.mrf.mxu0
    %v2080 = vpop.f32.mrf.mxu0
    %v2081 = vadd.f32 0.0, %v2080
    %v2082 = vpop.f32.mrf.mxu0
    %2083 = vmatprep.mubr.bf16.mxu0 0
    %2084 = vmatmul.mubr.bf16.gmra.mxu0 %v2035
    %v2085 = vpop.f32.mrf.mxu0
    %v2086 = vadd.f32 0.0, %v2085
    %v2087 = vpop.f32.mrf.mxu0
    %v2088 = vpop.f32.mrf.mxu0
    %v2089 = vadd.f32 0.0, %v2088
    %v2090 = vpop.f32.mrf.mxu0
    %2091 = vdwg.mxu0
    %2092 = vrot.lane.b32.xlu0 %v493, 64
    %v2093 = vpop.permute.xlu0 %2092
    %2094 = vrot.lane.b32.xlu0 %v494, 64
    %v2095 = vpop.permute.xlu0 %2094
    %2096 = vrot.lane.b32.xlu0 %v501, 64
    %v2097 = vpop.permute.xlu0 %2096
    %2098 = vrot.lane.b32.xlu0 %v502, 64
    %v2099 = vpop.permute.xlu0 %2098
    %v2101 = vsel %vm505, %v2093, 0
    %v2104 = vsel %vm505, %v2095, 0
    %v2107 = vsel %vm505, %v2097, 0
    %v2110 = vsel %vm505, %v2099, 0
    %2112 = vmatprep.subr.bf16.mxu0 0
    %2113 = vmatpush1.bf16.xpose.msra.mxu0 0
    %2114 = vmatprep.subr.bf16.mxu0 0
    %2115 = vmatpush1.bf16.xpose.msra.mxu0 0
    %2116 = vmatprep.subr.bf16.mxu0 0
    %2117 = vmatpush1.bf16.xpose.msra.mxu0 0
    %2118 = vmatprep.subr.bf16.mxu0 0
    %2119 = vmatpush1.bf16.xpose.msra.mxu0 0
    %2120 = vmatprep.subr.bf16.mxu0 0
    %2121 = vmatpush1.bf16.xpose.msra.mxu0 0
    %2122 = vmatprep.subr.bf16.mxu0 0
    %2123 = vmatpush1.bf16.xpose.msra.mxu0 0
    %2124 = vmatprep.subr.bf16.mxu0 0
    %2125 = vmatpush1.bf16.xpose.msra.mxu0 %v2110
    %2126 = vmatprep.subr.bf16.mxu0 0
    %2127 = vmatpush1.bf16.xpose.msra.mxu0 %v2107
    %2128 = vmatprep.subr.bf16.mxu0 0
    %2129 = vmatpush2.bf16.xpose.msra.mxu0 0
    %2130 = vmatprep.subr.bf16.mxu0 0
    %2131 = vmatpush2.bf16.xpose.msra.mxu0 0
    %2132 = vmatprep.subr.bf16.mxu0 0
    %2133 = vmatpush2.bf16.xpose.msra.mxu0 0
    %2134 = vmatprep.subr.bf16.mxu0 0
    %2135 = vmatpush2.bf16.xpose.msra.mxu0 0
    %2136 = vmatprep.subr.bf16.mxu0 0
    %2137 = vmatpush2.bf16.xpose.msra.mxu0 0
    %2138 = vmatprep.subr.bf16.mxu0 0
    %2139 = vmatpush2.bf16.xpose.msra.mxu0 0
    %2140 = vmatprep.subr.bf16.mxu0 0
    %2141 = vmatpush2.bf16.xpose.msra.mxu0 0
    %2142 = vmatprep.subr.bf16.mxu0 0
    %2143 = vmatpush2.bf16.xpose.msra.mxu0 0
    %2144 = vmatprep.mubr.bf16.mxu0 0
    %2145 = vmatmul.mubr.bf16.gmra.mxu0 %v2101
    %v2146 = vpop.f32.mrf.mxu0
    %v2147 = vadd.f32 0.0, %v2146
    %v2148 = vpop.f32.mrf.mxu0
    %v2149 = vpop.f32.mrf.mxu0
    %v2150 = vadd.f32 0.0, %v2149
    %v2151 = vpop.f32.mrf.mxu0
    %2152 = vmatprep.mubr.bf16.mxu0 0
    %2153 = vmatmul.mubr.bf16.gmra.mxu0 %v2104
    %v2154 = vpop.f32.mrf.mxu0
    %v2155 = vadd.f32 0.0, %v2154
    %v2156 = vpop.f32.mrf.mxu0
    %v2157 = vpop.f32.mrf.mxu0
    %v2158 = vadd.f32 0.0, %v2157
    %v2159 = vpop.f32.mrf.mxu0
    %2160 = vdwg.mxu0
    %2161 = vrot.lane.b32.xlu0 %v495, 64
    %v2162 = vpop.permute.xlu0 %2161
    %2163 = vrot.lane.b32.xlu0 %v496, 64
    %v2164 = vpop.permute.xlu0 %2163
    %2165 = vrot.lane.b32.xlu0 %v503, 64
    %v2166 = vpop.permute.xlu0 %2165
    %2167 = vrot.lane.b32.xlu0 %v504, 64
    %v2168 = vpop.permute.xlu0 %2167
    %v2170 = vsel %vm505, %v2162, 0
    %v2173 = vsel %vm505, %v2164, 0
    %v2176 = vsel %vm505, %v2166, 0
    %v2179 = vsel %vm505, %v2168, 0
    %2181 = vmatprep.subr.bf16.mxu0 0
    %2182 = vmatpush1.bf16.xpose.msra.mxu0 0
    %2183 = vmatprep.subr.bf16.mxu0 0
    %2184 = vmatpush1.bf16.xpose.msra.mxu0 0
    %2185 = vmatprep.subr.bf16.mxu0 0
    %2186 = vmatpush1.bf16.xpose.msra.mxu0 0
    %2187 = vmatprep.subr.bf16.mxu0 0
    %2188 = vmatpush1.bf16.xpose.msra.mxu0 0
    %2189 = vmatprep.subr.bf16.mxu0 0
    %2190 = vmatpush1.bf16.xpose.msra.mxu0 0
    %2191 = vmatprep.subr.bf16.mxu0 0
    %2192 = vmatpush1.bf16.xpose.msra.mxu0 0
    %2193 = vmatprep.subr.bf16.mxu0 0
    %2194 = vmatpush1.bf16.xpose.msra.mxu0 %v2179
    %2195 = vmatprep.subr.bf16.mxu0 0
    %2196 = vmatpush1.bf16.xpose.msra.mxu0 %v2176
    %2197 = vmatprep.subr.bf16.mxu0 0
    %2198 = vmatpush2.bf16.xpose.msra.mxu0 0
    %2199 = vmatprep.subr.bf16.mxu0 0
    %2200 = vmatpush2.bf16.xpose.msra.mxu0 0
    %2201 = vmatprep.subr.bf16.mxu0 0
    %2202 = vmatpush2.bf16.xpose.msra.mxu0 0
    %2203 = vmatprep.subr.bf16.mxu0 0
    %2204 = vmatpush2.bf16.xpose.msra.mxu0 0
    %2205 = vmatprep.subr.bf16.mxu0 0
    %2206 = vmatpush2.bf16.xpose.msra.mxu0 0
    %2207 = vmatprep.subr.bf16.mxu0 0
    %2208 = vmatpush2.bf16.xpose.msra.mxu0 0
    %2209 = vmatprep.subr.bf16.mxu0 0
    %2210 = vmatpush2.bf16.xpose.msra.mxu0 0
    %2211 = vmatprep.subr.bf16.mxu0 0
    %2212 = vmatpush2.bf16.xpose.msra.mxu0 0
    %2213 = vmatprep.mubr.bf16.mxu0 0
    %2214 = vmatmul.mubr.bf16.gmra.mxu0 %v2170
    %v2215 = vpop.f32.mrf.mxu0
    %v2216 = vadd.f32 0.0, %v2215
    %v2217 = vpop.f32.mrf.mxu0
    %v2218 = vpop.f32.mrf.mxu0
    %v2219 = vadd.f32 0.0, %v2218
    %v2220 = vpop.f32.mrf.mxu0
    %2221 = vmatprep.mubr.bf16.mxu0 0
    %2222 = vmatmul.mubr.bf16.gmra.mxu0 %v2173
    %v2223 = vpop.f32.mrf.mxu0
    %v2224 = vadd.f32 0.0, %v2223
    %v2225 = vpop.f32.mrf.mxu0
    %v2226 = vpop.f32.mrf.mxu0
    %v2227 = vadd.f32 0.0, %v2226
    %v2228 = vpop.f32.mrf.mxu0
    %2229 = vdwg.mxu0
    %v2230 = vmul.f32 %v2009, 0.17677669
    %v2231 = vmul.f32 %v2012, 0.17677669
    %v2232 = vmul.f32 %v2017, 0.17677669
    %v2233 = vmul.f32 %v2020, 0.17677669
    %v2234 = vmul.f32 %v2078, 0.17677669
    %v2235 = vmul.f32 %v2081, 0.17677669
    %v2236 = vmul.f32 %v2086, 0.17677669
    %v2237 = vmul.f32 %v2089, 0.17677669
    %v2238 = vmul.f32 %v2147, 0.17677669
    %v2239 = vmul.f32 %v2150, 0.17677669
    %v2240 = vmul.f32 %v2155, 0.17677669
    %v2241 = vmul.f32 %v2158, 0.17677669
    %v2242 = vmul.f32 %v2216, 0.17677669
    %v2243 = vmul.f32 %v2219, 0.17677669
    %v2244 = vmul.f32 %v2224, 0.17677669
    %v2245 = vmul.f32 %v2227, 0.17677669
    %v2246 = vadd.f32 %v2230, %v485
    %v2247 = vadd.f32 %v2231, %v486
    %v2248 = vadd.f32 %v2232, %v487
    %v2249 = vadd.f32 %v2233, %v488
    %v2250 = vadd.f32 %v2234, %v485
    %v2251 = vadd.f32 %v2235, %v486
    %v2252 = vadd.f32 %v2236, %v487
    %v2253 = vadd.f32 %v2237, %v488
    %v2254 = vadd.f32 %v2238, %v485
    %v2255 = vadd.f32 %v2239, %v486
    %v2256 = vadd.f32 %v2240, %v487
    %v2257 = vadd.f32 %v2241, %v488
    %v2258 = vadd.f32 %v2242, %v485
    %v2259 = vadd.f32 %v2243, %v486
    %v2260 = vadd.f32 %v2244, %v487
    %v2261 = vadd.f32 %v2245, %v488
    %v2262 = vsel %vm505, %v2246, -inf
    %2263 = vmax.xlane.f32.xlu0 %v2262
    %v2264 = vpop.xlane.xlu0 %2263
    %v2265 = vsel %vm505, %v2247, -inf
    %2266 = vmax.xlane.f32.xlu0 %v2265
    %v2267 = vpop.xlane.xlu0 %2266
    %v2268 = vsel %vm505, %v2248, -inf
    %2269 = vmax.xlane.f32.xlu0 %v2268
    %v2270 = vpop.xlane.xlu0 %2269
    %v2271 = vsel %vm505, %v2249, -inf
    %2272 = vmax.xlane.f32.xlu0 %v2271
    %v2273 = vpop.xlane.xlu0 %2272
    %v2274 = vsel %vm505, %v2250, -inf
    %2275 = vmax.xlane.f32.xlu0 %v2274
    %v2276 = vpop.xlane.xlu0 %2275
    %v2277 = vsel %vm505, %v2251, -inf
    %2278 = vmax.xlane.f32.xlu0 %v2277
    %v2279 = vpop.xlane.xlu0 %2278
    %v2280 = vsel %vm505, %v2252, -inf
    %2281 = vmax.xlane.f32.xlu0 %v2280
    %v2282 = vpop.xlane.xlu0 %2281
    %v2283 = vsel %vm505, %v2253, -inf
    %2284 = vmax.xlane.f32.xlu0 %v2283
    %v2285 = vpop.xlane.xlu0 %2284
    %v2286 = vsel %vm505, %v2254, -inf
    %2287 = vmax.xlane.f32.xlu0 %v2286
    %v2288 = vpop.xlane.xlu0 %2287
    %v2289 = vsel %vm505, %v2255, -inf
    %2290 = vmax.xlane.f32.xlu0 %v2289
    %v2291 = vpop.xlane.xlu0 %2290
    %v2292 = vsel %vm505, %v2256, -inf
    %2293 = vmax.xlane.f32.xlu0 %v2292
    %v2294 = vpop.xlane.xlu0 %2293
    %v2295 = vsel %vm505, %v2257, -inf
    %2296 = vmax.xlane.f32.xlu0 %v2295
    %v2297 = vpop.xlane.xlu0 %2296
    %v2298 = vsel %vm505, %v2258, -inf
    %2299 = vmax.xlane.f32.xlu0 %v2298
    %v2300 = vpop.xlane.xlu0 %2299
    %v2301 = vsel %vm505, %v2259, -inf
    %2302 = vmax.xlane.f32.xlu0 %v2301
    %v2303 = vpop.xlane.xlu0 %2302
    %v2304 = vsel %vm505, %v2260, -inf
    %2305 = vmax.xlane.f32.xlu0 %v2304
    %v2306 = vpop.xlane.xlu0 %2305
    %v2307 = vsel %vm505, %v2261, -inf
    %2308 = vmax.xlane.f32.xlu0 %v2307
    %v2309 = vpop.xlane.xlu0 %2308
    %v2310 = vsub.f32 %v2246, %v2264
    %v2311 = vsub.f32 %v2247, %v2267
    %v2312 = vsub.f32 %v2248, %v2270
    %v2313 = vsub.f32 %v2249, %v2273
    %v2314 = vsub.f32 %v2250, %v2276
    %v2315 = vsub.f32 %v2251, %v2279
    %v2316 = vsub.f32 %v2252, %v2282
    %v2317 = vsub.f32 %v2253, %v2285
    %v2318 = vsub.f32 %v2254, %v2288
    %v2319 = vsub.f32 %v2255, %v2291
    %v2320 = vsub.f32 %v2256, %v2294
    %v2321 = vsub.f32 %v2257, %v2297
    %v2322 = vsub.f32 %v2258, %v2300
    %v2323 = vsub.f32 %v2259, %v2303
    %v2324 = vsub.f32 %v2260, %v2306
    %v2325 = vsub.f32 %v2261, %v2309
    %v2326 = vmul.f32 %v2310, 1.442695
    %v2327 = vpow.pop %v2326
    %v2328 = vmul.f32 %v2311, 1.442695
    %v2329 = vpow.pop %v2328
    %v2330 = vmul.f32 %v2312, 1.442695
    %v2331 = vpow.pop %v2330
    %v2332 = vmul.f32 %v2313, 1.442695
    %v2333 = vpow.pop %v2332
    %v2334 = vmul.f32 %v2314, 1.442695
    %v2335 = vpow.pop %v2334
    %v2336 = vmul.f32 %v2315, 1.442695
    %v2337 = vpow.pop %v2336
    %v2338 = vmul.f32 %v2316, 1.442695
    %v2339 = vpow.pop %v2338
    %v2340 = vmul.f32 %v2317, 1.442695
    %v2341 = vpow.pop %v2340
    %v2342 = vmul.f32 %v2318, 1.442695
    %v2343 = vpow.pop %v2342
    %v2344 = vmul.f32 %v2319, 1.442695
    %v2345 = vpow.pop %v2344
    %v2346 = vmul.f32 %v2320, 1.442695
    %v2347 = vpow.pop %v2346
    %v2348 = vmul.f32 %v2321, 1.442695
    %v2349 = vpow.pop %v2348
    %v2350 = vmul.f32 %v2322, 1.442695
    %v2351 = vpow.pop %v2350
    %v2352 = vmul.f32 %v2323, 1.442695
    %v2353 = vpow.pop %v2352
    %v2354 = vmul.f32 %v2324, 1.442695
    %v2355 = vpow.pop %v2354
    %v2356 = vmul.f32 %v2325, 1.442695
    %v2357 = vpow.pop %v2356
    %v2358 = vsel %vm505, %v2327, 0.0
    %2359 = vadd.xlane.f32.xlu0 %v2358
    %v2360 = vpop.xlane.xlu0 %2359
    %v2361 = vsel %vm505, %v2329, 0.0
    %2362 = vadd.xlane.f32.xlu0 %v2361
    %v2363 = vpop.xlane.xlu0 %2362
    %v2364 = vsel %vm505, %v2331, 0.0
    %2365 = vadd.xlane.f32.xlu0 %v2364
    %v2366 = vpop.xlane.xlu0 %2365
    %v2367 = vsel %vm505, %v2333, 0.0
    %2368 = vadd.xlane.f32.xlu0 %v2367
    %v2369 = vpop.xlane.xlu0 %2368
    %v2370 = vsel %vm505, %v2335, 0.0
    %2371 = vadd.xlane.f32.xlu0 %v2370
    %v2372 = vpop.xlane.xlu0 %2371
    %v2373 = vsel %vm505, %v2337, 0.0
    %2374 = vadd.xlane.f32.xlu0 %v2373
    %v2375 = vpop.xlane.xlu0 %2374
    %v2376 = vsel %vm505, %v2339, 0.0
    %2377 = vadd.xlane.f32.xlu0 %v2376
    %v2378 = vpop.xlane.xlu0 %2377
    %v2379 = vsel %vm505, %v2341, 0.0
    %2380 = vadd.xlane.f32.xlu0 %v2379
    %v2381 = vpop.xlane.xlu0 %2380
    %v2382 = vsel %vm505, %v2343, 0.0
    %2383 = vadd.xlane.f32.xlu0 %v2382
    %v2384 = vpop.xlane.xlu0 %2383
    %v2385 = vsel %vm505, %v2345, 0.0
    %2386 = vadd.xlane.f32.xlu0 %v2385
    %v2387 = vpop.xlane.xlu0 %2386
    %v2388 = vsel %vm505, %v2347, 0.0
    %2389 = vadd.xlane.f32.xlu0 %v2388
    %v2390 = vpop.xlane.xlu0 %2389
    %v2391 = vsel %vm505, %v2349, 0.0
    %2392 = vadd.xlane.f32.xlu0 %v2391
    %v2393 = vpop.xlane.xlu0 %2392
    %v2394 = vsel %vm505, %v2351, 0.0
    %2395 = vadd.xlane.f32.xlu0 %v2394
    %v2396 = vpop.xlane.xlu0 %2395
    %v2397 = vsel %vm505, %v2353, 0.0
    %2398 = vadd.xlane.f32.xlu0 %v2397
    %v2399 = vpop.xlane.xlu0 %2398
    %v2400 = vsel %vm505, %v2355, 0.0
    %2401 = vadd.xlane.f32.xlu0 %v2400
    %v2402 = vpop.xlane.xlu0 %2401
    %v2403 = vsel %vm505, %v2357, 0.0
    %2404 = vadd.xlane.f32.xlu0 %v2403
    %v2405 = vpop.xlane.xlu0 %2404
    %v2406 = vrcp.pop %v2360
    %v2407 = vrcp.pop %v2363
    %v2408 = vrcp.pop %v2366
    %v2409 = vrcp.pop %v2369
    %v2410 = vrcp.pop %v2372
    %v2411 = vrcp.pop %v2375
    %v2412 = vrcp.pop %v2378
    %v2413 = vrcp.pop %v2381
    %v2414 = vrcp.pop %v2384
    %v2415 = vrcp.pop %v2387
    %v2416 = vrcp.pop %v2390
    %v2417 = vrcp.pop %v2393
    %v2418 = vrcp.pop %v2396
    %v2419 = vrcp.pop %v2399
    %v2420 = vrcp.pop %v2402
    %v2421 = vrcp.pop %v2405
    %v2422 = vmul.f32 %v2327, %v2406
    %v2423 = vmul.f32 %v2329, %v2407
    %v2424 = vmul.f32 %v2331, %v2408
    %v2425 = vmul.f32 %v2333, %v2409
    %v2426 = vmul.f32 %v2335, %v2410
    %v2427 = vmul.f32 %v2337, %v2411
    %v2428 = vmul.f32 %v2339, %v2412
    %v2429 = vmul.f32 %v2341, %v2413
    %v2430 = vmul.f32 %v2343, %v2414
    %v2431 = vmul.f32 %v2345, %v2415
    %v2432 = vmul.f32 %v2347, %v2416
    %v2433 = vmul.f32 %v2349, %v2417
    %v2434 = vmul.f32 %v2351, %v2418
    %v2435 = vmul.f32 %v2353, %v2419
    %v2436 = vmul.f32 %v2355, %v2420
    %v2437 = vmul.f32 %v2357, %v2421
    %v2438 = vpack.c.bf16 %v2423, %v2422
    %v2439 = vpack.c.bf16 %v2425, %v2424
    %v2440 = vpack.c.bf16 %v2427, %v2426
    %v2441 = vpack.c.bf16 %v2429, %v2428
    %v2442 = vpack.c.bf16 %v2431, %v2430
    %v2443 = vpack.c.bf16 %v2433, %v2432
    %v2444 = vpack.c.bf16 %v2435, %v2434
    %v2445 = vpack.c.bf16 %v2437, %v2436
    %2446 = vrot.lane.b32.xlu0 %v966, 64
    %v2447 = vpop.permute.xlu0 %2446
    %2448 = vrot.lane.b32.xlu0 %v967, 64
    %v2449 = vpop.permute.xlu0 %2448
    %v2453 = vsel %vm505, %v2438, 0
    %v2456 = vsel %vm505, %v2439, 0
    %2458 = vmatprep.subr.bf16.mxu0 0
    %2459 = vmatpush1.bf16.msra.mxu0 0
    %2460 = vmatprep.subr.bf16.mxu0 0
    %2461 = vmatpush1.bf16.msra.mxu0 0
    %2462 = vmatprep.subr.bf16.mxu0 0
    %2463 = vmatpush1.bf16.msra.mxu0 0
    %2464 = vmatprep.subr.bf16.mxu0 0
    %2465 = vmatpush1.bf16.msra.mxu0 0
    %2466 = vmatprep.subr.bf16.mxu0 0
    %2467 = vmatpush1.bf16.msra.mxu0 0
    %2468 = vmatprep.subr.bf16.mxu0 0
    %2469 = vmatpush1.bf16.msra.mxu0 0
    %2470 = vmatprep.subr.bf16.mxu0 0
    %2471 = vmatpush1.bf16.msra.mxu0 %v2449
    %2472 = vmatprep.subr.bf16.mxu0 0
    %2473 = vmatpush1.bf16.msra.mxu0 %v2447
    %2474 = vmatprep.subr.bf16.mxu0 0
    %2475 = vmatpush2.bf16.msra.mxu0 0
    %2476 = vmatprep.subr.bf16.mxu0 0
    %2477 = vmatpush2.bf16.msra.mxu0 0
    %2478 = vmatprep.subr.bf16.mxu0 0
    %2479 = vmatpush2.bf16.msra.mxu0 0
    %2480 = vmatprep.subr.bf16.mxu0 0
    %2481 = vmatpush2.bf16.msra.mxu0 0
    %2482 = vmatprep.subr.bf16.mxu0 0
    %2483 = vmatpush2.bf16.msra.mxu0 0
    %2484 = vmatprep.subr.bf16.mxu0 0
    %2485 = vmatpush2.bf16.msra.mxu0 0
    %2486 = vmatprep.subr.bf16.mxu0 0
    %2487 = vmatpush2.bf16.msra.mxu0 0
    %2488 = vmatprep.subr.bf16.mxu0 0
    %2489 = vmatpush2.bf16.msra.mxu0 0
    %2490 = vmatprep.mubr.bf16.mxu0 0
    %2491 = vmatmul.mubr.bf16.gmra.mxu0 %v2453
    %v2492 = vpop.f32.mrf.mxu0
    %v2493 = vadd.f32 0.0, %v2492
    %v2494 = vpop.f32.mrf.mxu0
    %v2495 = vpop.f32.mrf.mxu0
    %v2496 = vadd.f32 0.0, %v2495
    %v2497 = vpop.f32.mrf.mxu0
    %2498 = vmatprep.mubr.bf16.mxu0 0
    %2499 = vmatmul.mubr.bf16.gmra.mxu0 %v2456
    %v2500 = vpop.f32.mrf.mxu0
    %v2501 = vadd.f32 0.0, %v2500
    %v2502 = vpop.f32.mrf.mxu0
    %v2503 = vpop.f32.mrf.mxu0
    %v2504 = vadd.f32 0.0, %v2503
    %v2505 = vpop.f32.mrf.mxu0
    %2506 = vdwg.mxu0
    %2507 = vrot.lane.b32.xlu0 %v968, 64
    %v2508 = vpop.permute.xlu0 %2507
    %2509 = vrot.lane.b32.xlu0 %v969, 64
    %v2510 = vpop.permute.xlu0 %2509
    %v2514 = vsel %vm505, %v2440, 0
    %v2517 = vsel %vm505, %v2441, 0
    %2519 = vmatprep.subr.bf16.mxu0 0
    %2520 = vmatpush1.bf16.msra.mxu0 0
    %2521 = vmatprep.subr.bf16.mxu0 0
    %2522 = vmatpush1.bf16.msra.mxu0 0
    %2523 = vmatprep.subr.bf16.mxu0 0
    %2524 = vmatpush1.bf16.msra.mxu0 0
    %2525 = vmatprep.subr.bf16.mxu0 0
    %2526 = vmatpush1.bf16.msra.mxu0 0
    %2527 = vmatprep.subr.bf16.mxu0 0
    %2528 = vmatpush1.bf16.msra.mxu0 0
    %2529 = vmatprep.subr.bf16.mxu0 0
    %2530 = vmatpush1.bf16.msra.mxu0 0
    %2531 = vmatprep.subr.bf16.mxu0 0
    %2532 = vmatpush1.bf16.msra.mxu0 %v2510
    %2533 = vmatprep.subr.bf16.mxu0 0
    %2534 = vmatpush1.bf16.msra.mxu0 %v2508
    %2535 = vmatprep.subr.bf16.mxu0 0
    %2536 = vmatpush2.bf16.msra.mxu0 0
    %2537 = vmatprep.subr.bf16.mxu0 0
    %2538 = vmatpush2.bf16.msra.mxu0 0
    %2539 = vmatprep.subr.bf16.mxu0 0
    %2540 = vmatpush2.bf16.msra.mxu0 0
    %2541 = vmatprep.subr.bf16.mxu0 0
    %2542 = vmatpush2.bf16.msra.mxu0 0
    %2543 = vmatprep.subr.bf16.mxu0 0
    %2544 = vmatpush2.bf16.msra.mxu0 0
    %2545 = vmatprep.subr.bf16.mxu0 0
    %2546 = vmatpush2.bf16.msra.mxu0 0
    %2547 = vmatprep.subr.bf16.mxu0 0
    %2548 = vmatpush2.bf16.msra.mxu0 0
    %2549 = vmatprep.subr.bf16.mxu0 0
    %2550 = vmatpush2.bf16.msra.mxu0 0
    %2551 = vmatprep.mubr.bf16.mxu0 0
    %2552 = vmatmul.mubr.bf16.gmra.mxu0 %v2514
    %v2553 = vpop.f32.mrf.mxu0
    %v2554 = vadd.f32 0.0, %v2553
    %v2555 = vpop.f32.mrf.mxu0
    %v2556 = vpop.f32.mrf.mxu0
    %v2557 = vadd.f32 0.0, %v2556
    %v2558 = vpop.f32.mrf.mxu0
    %2559 = vmatprep.mubr.bf16.mxu0 0
    %2560 = vmatmul.mubr.bf16.gmra.mxu0 %v2517
    %v2561 = vpop.f32.mrf.mxu0
    %v2562 = vadd.f32 0.0, %v2561
    %v2563 = vpop.f32.mrf.mxu0
    %v2564 = vpop.f32.mrf.mxu0
    %v2565 = vadd.f32 0.0, %v2564
    %v2566 = vpop.f32.mrf.mxu0
    %2567 = vdwg.mxu0
    %2568 = vrot.lane.b32.xlu0 %v970, 64
    %v2569 = vpop.permute.xlu0 %2568
    %2570 = vrot.lane.b32.xlu0 %v971, 64
    %v2571 = vpop.permute.xlu0 %2570
    %v2575 = vsel %vm505, %v2442, 0
    %v2578 = vsel %vm505, %v2443, 0
    %2580 = vmatprep.subr.bf16.mxu0 0
    %2581 = vmatpush1.bf16.msra.mxu0 0
    %2582 = vmatprep.subr.bf16.mxu0 0
    %2583 = vmatpush1.bf16.msra.mxu0 0
    %2584 = vmatprep.subr.bf16.mxu0 0
    %2585 = vmatpush1.bf16.msra.mxu0 0
    %2586 = vmatprep.subr.bf16.mxu0 0
    %2587 = vmatpush1.bf16.msra.mxu0 0
    %2588 = vmatprep.subr.bf16.mxu0 0
    %2589 = vmatpush1.bf16.msra.mxu0 0
    %2590 = vmatprep.subr.bf16.mxu0 0
    %2591 = vmatpush1.bf16.msra.mxu0 0
    %2592 = vmatprep.subr.bf16.mxu0 0
    %2593 = vmatpush1.bf16.msra.mxu0 %v2571
    %2594 = vmatprep.subr.bf16.mxu0 0
    %2595 = vmatpush1.bf16.msra.mxu0 %v2569
    %2596 = vmatprep.subr.bf16.mxu0 0
    %2597 = vmatpush2.bf16.msra.mxu0 0
    %2598 = vmatprep.subr.bf16.mxu0 0
    %2599 = vmatpush2.bf16.msra.mxu0 0
    %2600 = vmatprep.subr.bf16.mxu0 0
    %2601 = vmatpush2.bf16.msra.mxu0 0
    %2602 = vmatprep.subr.bf16.mxu0 0
    %2603 = vmatpush2.bf16.msra.mxu0 0
    %2604 = vmatprep.subr.bf16.mxu0 0
    %2605 = vmatpush2.bf16.msra.mxu0 0
    %2606 = vmatprep.subr.bf16.mxu0 0
    %2607 = vmatpush2.bf16.msra.mxu0 0
    %2608 = vmatprep.subr.bf16.mxu0 0
    %2609 = vmatpush2.bf16.msra.mxu0 0
    %2610 = vmatprep.subr.bf16.mxu0 0
    %2611 = vmatpush2.bf16.msra.mxu0 0
    %2612 = vmatprep.mubr.bf16.mxu0 0
    %2613 = vmatmul.mubr.bf16.gmra.mxu0 %v2575
    %v2614 = vpop.f32.mrf.mxu0
    %v2615 = vadd.f32 0.0, %v2614
    %v2616 = vpop.f32.mrf.mxu0
    %v2617 = vpop.f32.mrf.mxu0
    %v2618 = vadd.f32 0.0, %v2617
    %v2619 = vpop.f32.mrf.mxu0
    %2620 = vmatprep.mubr.bf16.mxu0 0
    %2621 = vmatmul.mubr.bf16.gmra.mxu0 %v2578
    %v2622 = vpop.f32.mrf.mxu0
    %v2623 = vadd.f32 0.0, %v2622
    %v2624 = vpop.f32.mrf.mxu0
    %v2625 = vpop.f32.mrf.mxu0
    %v2626 = vadd.f32 0.0, %v2625
    %v2627 = vpop.f32.mrf.mxu0
    %2628 = vdwg.mxu0
    %2629 = vrot.lane.b32.xlu0 %v972, 64
    %v2630 = vpop.permute.xlu0 %2629
    %2631 = vrot.lane.b32.xlu0 %v973, 64
    %v2632 = vpop.permute.xlu0 %2631
    %v2636 = vsel %vm505, %v2444, 0
    %v2639 = vsel %vm505, %v2445, 0
    %2641 = vmatprep.subr.bf16.mxu0 0
    %2642 = vmatpush1.bf16.msra.mxu0 0
    %2643 = vmatprep.subr.bf16.mxu0 0
    %2644 = vmatpush1.bf16.msra.mxu0 0
    %2645 = vmatprep.subr.bf16.mxu0 0
    %2646 = vmatpush1.bf16.msra.mxu0 0
    %2647 = vmatprep.subr.bf16.mxu0 0
    %2648 = vmatpush1.bf16.msra.mxu0 0
    %2649 = vmatprep.subr.bf16.mxu0 0
    %2650 = vmatpush1.bf16.msra.mxu0 0
    %2651 = vmatprep.subr.bf16.mxu0 0
    %2652 = vmatpush1.bf16.msra.mxu0 0
    %2653 = vmatprep.subr.bf16.mxu0 0
    %2654 = vmatpush1.bf16.msra.mxu0 %v2632
    %2655 = vmatprep.subr.bf16.mxu0 0
    %2656 = vmatpush1.bf16.msra.mxu0 %v2630
    %2657 = vmatprep.subr.bf16.mxu0 0
    %2658 = vmatpush2.bf16.msra.mxu0 0
    %2659 = vmatprep.subr.bf16.mxu0 0
    %2660 = vmatpush2.bf16.msra.mxu0 0
    %2661 = vmatprep.subr.bf16.mxu0 0
    %2662 = vmatpush2.bf16.msra.mxu0 0
    %2663 = vmatprep.subr.bf16.mxu0 0
    %2664 = vmatpush2.bf16.msra.mxu0 0
    %2665 = vmatprep.subr.bf16.mxu0 0
    %2666 = vmatpush2.bf16.msra.mxu0 0
    %2667 = vmatprep.subr.bf16.mxu0 0
    %2668 = vmatpush2.bf16.msra.mxu0 0
    %2669 = vmatprep.subr.bf16.mxu0 0
    %2670 = vmatpush2.bf16.msra.mxu0 0
    %2671 = vmatprep.subr.bf16.mxu0 0
    %2672 = vmatpush2.bf16.msra.mxu0 0
    %2673 = vmatprep.mubr.bf16.mxu0 0
    %2674 = vmatmul.mubr.bf16.gmra.mxu0 %v2636
    %v2675 = vpop.f32.mrf.mxu0
    %v2676 = vadd.f32 0.0, %v2675
    %v2677 = vpop.f32.mrf.mxu0
    %v2678 = vpop.f32.mrf.mxu0
    %v2679 = vadd.f32 0.0, %v2678
    %v2680 = vpop.f32.mrf.mxu0
    %2681 = vmatprep.mubr.bf16.mxu0 0
    %2682 = vmatmul.mubr.bf16.gmra.mxu0 %v2639
    %v2683 = vpop.f32.mrf.mxu0
    %v2684 = vadd.f32 0.0, %v2683
    %v2685 = vpop.f32.mrf.mxu0
    %v2686 = vpop.f32.mrf.mxu0
    %v2687 = vadd.f32 0.0, %v2686
    %v2688 = vpop.f32.mrf.mxu0
    %2689 = vdwg.mxu0
    %2690 = vrot.lane.b32.xlu0 %v489, 32
    %v2691 = vpop.permute.xlu0 %2690
    %2692 = vrot.lane.b32.xlu0 %v490, 32
    %v2693 = vpop.permute.xlu0 %2692
    %2694 = vrot.lane.b32.xlu0 %v497, 32
    %v2695 = vpop.permute.xlu0 %2694
    %2696 = vrot.lane.b32.xlu0 %v498, 32
    %v2697 = vpop.permute.xlu0 %2696
    %v2699 = vsel %vm505, %v2691, 0
    %v2702 = vsel %vm505, %v2693, 0
    %v2705 = vsel %vm505, %v2695, 0
    %v2708 = vsel %vm505, %v2697, 0
    %2710 = vmatprep.subr.bf16.mxu0 0
    %2711 = vmatpush1.bf16.xpose.msra.mxu0 0
    %2712 = vmatprep.subr.bf16.mxu0 0
    %2713 = vmatpush1.bf16.xpose.msra.mxu0 0
    %2714 = vmatprep.subr.bf16.mxu0 0
    %2715 = vmatpush1.bf16.xpose.msra.mxu0 0
    %2716 = vmatprep.subr.bf16.mxu0 0
    %2717 = vmatpush1.bf16.xpose.msra.mxu0 0
    %2718 = vmatprep.subr.bf16.mxu0 0
    %2719 = vmatpush1.bf16.xpose.msra.mxu0 0
    %2720 = vmatprep.subr.bf16.mxu0 0
    %2721 = vmatpush1.bf16.xpose.msra.mxu0 0
    %2722 = vmatprep.subr.bf16.mxu0 0
    %2723 = vmatpush1.bf16.xpose.msra.mxu0 %v2708
    %2724 = vmatprep.subr.bf16.mxu0 0
    %2725 = vmatpush1.bf16.xpose.msra.mxu0 %v2705
    %2726 = vmatprep.subr.bf16.mxu0 0
    %2727 = vmatpush2.bf16.xpose.msra.mxu0 0
    %2728 = vmatprep.subr.bf16.mxu0 0
    %2729 = vmatpush2.bf16.xpose.msra.mxu0 0
    %2730 = vmatprep.subr.bf16.mxu0 0
    %2731 = vmatpush2.bf16.xpose.msra.mxu0 0
    %2732 = vmatprep.subr.bf16.mxu0 0
    %2733 = vmatpush2.bf16.xpose.msra.mxu0 0
    %2734 = vmatprep.subr.bf16.mxu0 0
    %2735 = vmatpush2.bf16.xpose.msra.mxu0 0
    %2736 = vmatprep.subr.bf16.mxu0 0
    %2737 = vmatpush2.bf16.xpose.msra.mxu0 0
    %2738 = vmatprep.subr.bf16.mxu0 0
    %2739 = vmatpush2.bf16.xpose.msra.mxu0 0
    %2740 = vmatprep.subr.bf16.mxu0 0
    %2741 = vmatpush2.bf16.xpose.msra.mxu0 0
    %2742 = vmatprep.mubr.bf16.mxu0 0
    %2743 = vmatmul.mubr.bf16.gmra.mxu0 %v2699
    %v2744 = vpop.f32.mrf.mxu0
    %v2745 = vadd.f32 0.0, %v2744
    %v2746 = vpop.f32.mrf.mxu0
    %v2747 = vpop.f32.mrf.mxu0
    %v2748 = vadd.f32 0.0, %v2747
    %v2749 = vpop.f32.mrf.mxu0
    %2750 = vmatprep.mubr.bf16.mxu0 0
    %2751 = vmatmul.mubr.bf16.gmra.mxu0 %v2702
    %v2752 = vpop.f32.mrf.mxu0
    %v2753 = vadd.f32 0.0, %v2752
    %v2754 = vpop.f32.mrf.mxu0
    %v2755 = vpop.f32.mrf.mxu0
    %v2756 = vadd.f32 0.0, %v2755
    %v2757 = vpop.f32.mrf.mxu0
    %2758 = vdwg.mxu0
    %2759 = vrot.lane.b32.xlu0 %v491, 32
    %v2760 = vpop.permute.xlu0 %2759
    %2761 = vrot.lane.b32.xlu0 %v492, 32
    %v2762 = vpop.permute.xlu0 %2761
    %2763 = vrot.lane.b32.xlu0 %v499, 32
    %v2764 = vpop.permute.xlu0 %2763
    %2765 = vrot.lane.b32.xlu0 %v500, 32
    %v2766 = vpop.permute.xlu0 %2765
    %v2768 = vsel %vm505, %v2760, 0
    %v2771 = vsel %vm505, %v2762, 0
    %v2774 = vsel %vm505, %v2764, 0
    %v2777 = vsel %vm505, %v2766, 0
    %2779 = vmatprep.subr.bf16.mxu0 0
    %2780 = vmatpush1.bf16.xpose.msra.mxu0 0
    %2781 = vmatprep.subr.bf16.mxu0 0
    %2782 = vmatpush1.bf16.xpose.msra.mxu0 0
    %2783 = vmatprep.subr.bf16.mxu0 0
    %2784 = vmatpush1.bf16.xpose.msra.mxu0 0
    %2785 = vmatprep.subr.bf16.mxu0 0
    %2786 = vmatpush1.bf16.xpose.msra.mxu0 0
    %2787 = vmatprep.subr.bf16.mxu0 0
    %2788 = vmatpush1.bf16.xpose.msra.mxu0 0
    %2789 = vmatprep.subr.bf16.mxu0 0
    %2790 = vmatpush1.bf16.xpose.msra.mxu0 0
    %2791 = vmatprep.subr.bf16.mxu0 0
    %2792 = vmatpush1.bf16.xpose.msra.mxu0 %v2777
    %2793 = vmatprep.subr.bf16.mxu0 0
    %2794 = vmatpush1.bf16.xpose.msra.mxu0 %v2774
    %2795 = vmatprep.subr.bf16.mxu0 0
    %2796 = vmatpush2.bf16.xpose.msra.mxu0 0
    %2797 = vmatprep.subr.bf16.mxu0 0
    %2798 = vmatpush2.bf16.xpose.msra.mxu0 0
    %2799 = vmatprep.subr.bf16.mxu0 0
    %2800 = vmatpush2.bf16.xpose.msra.mxu0 0
    %2801 = vmatprep.subr.bf16.mxu0 0
    %2802 = vmatpush2.bf16.xpose.msra.mxu0 0
    %2803 = vmatprep.subr.bf16.mxu0 0
    %2804 = vmatpush2.bf16.xpose.msra.mxu0 0
    %2805 = vmatprep.subr.bf16.mxu0 0
    %2806 = vmatpush2.bf16.xpose.msra.mxu0 0
    %2807 = vmatprep.subr.bf16.mxu0 0
    %2808 = vmatpush2.bf16.xpose.msra.mxu0 0
    %2809 = vmatprep.subr.bf16.mxu0 0
    %2810 = vmatpush2.bf16.xpose.msra.mxu0 0
    %2811 = vmatprep.mubr.bf16.mxu0 0
    %2812 = vmatmul.mubr.bf16.gmra.mxu0 %v2768
    %v2813 = vpop.f32.mrf.mxu0
    %v2814 = vadd.f32 0.0, %v2813
    %v2815 = vpop.f32.mrf.mxu0
    %v2816 = vpop.f32.mrf.mxu0
    %v2817 = vadd.f32 0.0, %v2816
    %v2818 = vpop.f32.mrf.mxu0
    %2819 = vmatprep.mubr.bf16.mxu0 0
    %2820 = vmatmul.mubr.bf16.gmra.mxu0 %v2771
    %v2821 = vpop.f32.mrf.mxu0
    %v2822 = vadd.f32 0.0, %v2821
    %v2823 = vpop.f32.mrf.mxu0
    %v2824 = vpop.f32.mrf.mxu0
    %v2825 = vadd.f32 0.0, %v2824
    %v2826 = vpop.f32.mrf.mxu0
    %2827 = vdwg.mxu0
    %2828 = vrot.lane.b32.xlu0 %v493, 32
    %v2829 = vpop.permute.xlu0 %2828
    %2830 = vrot.lane.b32.xlu0 %v494, 32
    %v2831 = vpop.permute.xlu0 %2830
    %2832 = vrot.lane.b32.xlu0 %v501, 32
    %v2833 = vpop.permute.xlu0 %2832
    %2834 = vrot.lane.b32.xlu0 %v502, 32
    %v2835 = vpop.permute.xlu0 %2834
    %v2837 = vsel %vm505, %v2829, 0
    %v2840 = vsel %vm505, %v2831, 0
    %v2843 = vsel %vm505, %v2833, 0
    %v2846 = vsel %vm505, %v2835, 0
    %2848 = vmatprep.subr.bf16.mxu0 0
    %2849 = vmatpush1.bf16.xpose.msra.mxu0 0
    %2850 = vmatprep.subr.bf16.mxu0 0
    %2851 = vmatpush1.bf16.xpose.msra.mxu0 0
    %2852 = vmatprep.subr.bf16.mxu0 0
    %2853 = vmatpush1.bf16.xpose.msra.mxu0 0
    %2854 = vmatprep.subr.bf16.mxu0 0
    %2855 = vmatpush1.bf16.xpose.msra.mxu0 0
    %2856 = vmatprep.subr.bf16.mxu0 0
    %2857 = vmatpush1.bf16.xpose.msra.mxu0 0
    %2858 = vmatprep.subr.bf16.mxu0 0
    %2859 = vmatpush1.bf16.xpose.msra.mxu0 0
    %2860 = vmatprep.subr.bf16.mxu0 0
    %2861 = vmatpush1.bf16.xpose.msra.mxu0 %v2846
    %2862 = vmatprep.subr.bf16.mxu0 0
    %2863 = vmatpush1.bf16.xpose.msra.mxu0 %v2843
    %2864 = vmatprep.subr.bf16.mxu0 0
    %2865 = vmatpush2.bf16.xpose.msra.mxu0 0
    %2866 = vmatprep.subr.bf16.mxu0 0
    %2867 = vmatpush2.bf16.xpose.msra.mxu0 0
    %2868 = vmatprep.subr.bf16.mxu0 0
    %2869 = vmatpush2.bf16.xpose.msra.mxu0 0
    %2870 = vmatprep.subr.bf16.mxu0 0
    %2871 = vmatpush2.bf16.xpose.msra.mxu0 0
    %2872 = vmatprep.subr.bf16.mxu0 0
    %2873 = vmatpush2.bf16.xpose.msra.mxu0 0
    %2874 = vmatprep.subr.bf16.mxu0 0
    %2875 = vmatpush2.bf16.xpose.msra.mxu0 0
    %2876 = vmatprep.subr.bf16.mxu0 0
    %2877 = vmatpush2.bf16.xpose.msra.mxu0 0
    %2878 = vmatprep.subr.bf16.mxu0 0
    %2879 = vmatpush2.bf16.xpose.msra.mxu0 0
    %2880 = vmatprep.mubr.bf16.mxu0 0
    %2881 = vmatmul.mubr.bf16.gmra.mxu0 %v2837
    %v2882 = vpop.f32.mrf.mxu0
    %v2883 = vadd.f32 0.0, %v2882
    %v2884 = vpop.f32.mrf.mxu0
    %v2885 = vpop.f32.mrf.mxu0
    %v2886 = vadd.f32 0.0, %v2885
    %v2887 = vpop.f32.mrf.mxu0
    %2888 = vmatprep.mubr.bf16.mxu0 0
    %2889 = vmatmul.mubr.bf16.gmra.mxu0 %v2840
    %v2890 = vpop.f32.mrf.mxu0
    %v2891 = vadd.f32 0.0, %v2890
    %v2892 = vpop.f32.mrf.mxu0
    %v2893 = vpop.f32.mrf.mxu0
    %v2894 = vadd.f32 0.0, %v2893
    %v2895 = vpop.f32.mrf.mxu0
    %2896 = vdwg.mxu0
    %2897 = vrot.lane.b32.xlu0 %v495, 32
    %v2898 = vpop.permute.xlu0 %2897
    %2899 = vrot.lane.b32.xlu0 %v496, 32
    %v2900 = vpop.permute.xlu0 %2899
    %2901 = vrot.lane.b32.xlu0 %v503, 32
    %v2902 = vpop.permute.xlu0 %2901
    %2903 = vrot.lane.b32.xlu0 %v504, 32
    %v2904 = vpop.permute.xlu0 %2903
    %v2906 = vsel %vm505, %v2898, 0
    %v2909 = vsel %vm505, %v2900, 0
    %v2912 = vsel %vm505, %v2902, 0
    %v2915 = vsel %vm505, %v2904, 0
    %2917 = vmatprep.subr.bf16.mxu0 0
    %2918 = vmatpush1.bf16.xpose.msra.mxu0 0
    %2919 = vmatprep.subr.bf16.mxu0 0
    %2920 = vmatpush1.bf16.xpose.msra.mxu0 0
    %2921 = vmatprep.subr.bf16.mxu0 0
    %2922 = vmatpush1.bf16.xpose.msra.mxu0 0
    %2923 = vmatprep.subr.bf16.mxu0 0
    %2924 = vmatpush1.bf16.xpose.msra.mxu0 0
    %2925 = vmatprep.subr.bf16.mxu0 0
    %2926 = vmatpush1.bf16.xpose.msra.mxu0 0
    %2927 = vmatprep.subr.bf16.mxu0 0
    %2928 = vmatpush1.bf16.xpose.msra.mxu0 0
    %2929 = vmatprep.subr.bf16.mxu0 0
    %2930 = vmatpush1.bf16.xpose.msra.mxu0 %v2915
    %2931 = vmatprep.subr.bf16.mxu0 0
    %2932 = vmatpush1.bf16.xpose.msra.mxu0 %v2912
    %2933 = vmatprep.subr.bf16.mxu0 0
    %2934 = vmatpush2.bf16.xpose.msra.mxu0 0
    %2935 = vmatprep.subr.bf16.mxu0 0
    %2936 = vmatpush2.bf16.xpose.msra.mxu0 0
    %2937 = vmatprep.subr.bf16.mxu0 0
    %2938 = vmatpush2.bf16.xpose.msra.mxu0 0
    %2939 = vmatprep.subr.bf16.mxu0 0
    %2940 = vmatpush2.bf16.xpose.msra.mxu0 0
    %2941 = vmatprep.subr.bf16.mxu0 0
    %2942 = vmatpush2.bf16.xpose.msra.mxu0 0
    %2943 = vmatprep.subr.bf16.mxu0 0
    %2944 = vmatpush2.bf16.xpose.msra.mxu0 0
    %2945 = vmatprep.subr.bf16.mxu0 0
    %2946 = vmatpush2.bf16.xpose.msra.mxu0 0
    %2947 = vmatprep.subr.bf16.mxu0 0
    %2948 = vmatpush2.bf16.xpose.msra.mxu0 0
    %2949 = vmatprep.mubr.bf16.mxu0 0
    %2950 = vmatmul.mubr.bf16.gmra.mxu0 %v2906
    %v2951 = vpop.f32.mrf.mxu0
    %v2952 = vadd.f32 0.0, %v2951
    %v2953 = vpop.f32.mrf.mxu0
    %v2954 = vpop.f32.mrf.mxu0
    %v2955 = vadd.f32 0.0, %v2954
    %v2956 = vpop.f32.mrf.mxu0
    %2957 = vmatprep.mubr.bf16.mxu0 0
    %2958 = vmatmul.mubr.bf16.gmra.mxu0 %v2909
    %v2959 = vpop.f32.mrf.mxu0
    %v2960 = vadd.f32 0.0, %v2959
    %v2961 = vpop.f32.mrf.mxu0
    %v2962 = vpop.f32.mrf.mxu0
    %v2963 = vadd.f32 0.0, %v2962
    %v2964 = vpop.f32.mrf.mxu0
    %2965 = vdwg.mxu0
    %v2966 = vmul.f32 %v2745, 0.17677669
    %v2967 = vmul.f32 %v2748, 0.17677669
    %v2968 = vmul.f32 %v2753, 0.17677669
    %v2969 = vmul.f32 %v2756, 0.17677669
    %v2970 = vmul.f32 %v2814, 0.17677669
    %v2971 = vmul.f32 %v2817, 0.17677669
    %v2972 = vmul.f32 %v2822, 0.17677669
    %v2973 = vmul.f32 %v2825, 0.17677669
    %v2974 = vmul.f32 %v2883, 0.17677669
    %v2975 = vmul.f32 %v2886, 0.17677669
    %v2976 = vmul.f32 %v2891, 0.17677669
    %v2977 = vmul.f32 %v2894, 0.17677669
    %v2978 = vmul.f32 %v2952, 0.17677669
    %v2979 = vmul.f32 %v2955, 0.17677669
    %v2980 = vmul.f32 %v2960, 0.17677669
    %v2981 = vmul.f32 %v2963, 0.17677669
    %v2982 = vadd.f32 %v2966, %v485
    %v2983 = vadd.f32 %v2967, %v486
    %v2984 = vadd.f32 %v2968, %v487
    %v2985 = vadd.f32 %v2969, %v488
    %v2986 = vadd.f32 %v2970, %v485
    %v2987 = vadd.f32 %v2971, %v486
    %v2988 = vadd.f32 %v2972, %v487
    %v2989 = vadd.f32 %v2973, %v488
    %v2990 = vadd.f32 %v2974, %v485
    %v2991 = vadd.f32 %v2975, %v486
    %v2992 = vadd.f32 %v2976, %v487
    %v2993 = vadd.f32 %v2977, %v488
    %v2994 = vadd.f32 %v2978, %v485
    %v2995 = vadd.f32 %v2979, %v486
    %v2996 = vadd.f32 %v2980, %v487
    %v2997 = vadd.f32 %v2981, %v488
    %v2998 = vsel %vm505, %v2982, -inf
    %2999 = vmax.xlane.f32.xlu0 %v2998
    %v3000 = vpop.xlane.xlu0 %2999
    %v3001 = vsel %vm505, %v2983, -inf
    %3002 = vmax.xlane.f32.xlu0 %v3001
    %v3003 = vpop.xlane.xlu0 %3002
    %v3004 = vsel %vm505, %v2984, -inf
    %3005 = vmax.xlane.f32.xlu0 %v3004
    %v3006 = vpop.xlane.xlu0 %3005
    %v3007 = vsel %vm505, %v2985, -inf
    %3008 = vmax.xlane.f32.xlu0 %v3007
    %v3009 = vpop.xlane.xlu0 %3008
    %v3010 = vsel %vm505, %v2986, -inf
    %3011 = vmax.xlane.f32.xlu0 %v3010
    %v3012 = vpop.xlane.xlu0 %3011
    %v3013 = vsel %vm505, %v2987, -inf
    %3014 = vmax.xlane.f32.xlu0 %v3013
    %v3015 = vpop.xlane.xlu0 %3014
    %v3016 = vsel %vm505, %v2988, -inf
    %3017 = vmax.xlane.f32.xlu0 %v3016
    %v3018 = vpop.xlane.xlu0 %3017
    %v3019 = vsel %vm505, %v2989, -inf
    %3020 = vmax.xlane.f32.xlu0 %v3019
    %v3021 = vpop.xlane.xlu0 %3020
    %v3022 = vsel %vm505, %v2990, -inf
    %3023 = vmax.xlane.f32.xlu0 %v3022
    %v3024 = vpop.xlane.xlu0 %3023
    %v3025 = vsel %vm505, %v2991, -inf
    %3026 = vmax.xlane.f32.xlu0 %v3025
    %v3027 = vpop.xlane.xlu0 %3026
    %v3028 = vsel %vm505, %v2992, -inf
    %3029 = vmax.xlane.f32.xlu0 %v3028
    %v3030 = vpop.xlane.xlu0 %3029
    %v3031 = vsel %vm505, %v2993, -inf
    %3032 = vmax.xlane.f32.xlu0 %v3031
    %v3033 = vpop.xlane.xlu0 %3032
    %v3034 = vsel %vm505, %v2994, -inf
    %3035 = vmax.xlane.f32.xlu0 %v3034
    %v3036 = vpop.xlane.xlu0 %3035
    %v3037 = vsel %vm505, %v2995, -inf
    %3038 = vmax.xlane.f32.xlu0 %v3037
    %v3039 = vpop.xlane.xlu0 %3038
    %v3040 = vsel %vm505, %v2996, -inf
    %3041 = vmax.xlane.f32.xlu0 %v3040
    %v3042 = vpop.xlane.xlu0 %3041
    %v3043 = vsel %vm505, %v2997, -inf
    %3044 = vmax.xlane.f32.xlu0 %v3043
    %v3045 = vpop.xlane.xlu0 %3044
    %v3046 = vsub.f32 %v2982, %v3000
    %v3047 = vsub.f32 %v2983, %v3003
    %v3048 = vsub.f32 %v2984, %v3006
    %v3049 = vsub.f32 %v2985, %v3009
    %v3050 = vsub.f32 %v2986, %v3012
    %v3051 = vsub.f32 %v2987, %v3015
    %v3052 = vsub.f32 %v2988, %v3018
    %v3053 = vsub.f32 %v2989, %v3021
    %v3054 = vsub.f32 %v2990, %v3024
    %v3055 = vsub.f32 %v2991, %v3027
    %v3056 = vsub.f32 %v2992, %v3030
    %v3057 = vsub.f32 %v2993, %v3033
    %v3058 = vsub.f32 %v2994, %v3036
    %v3059 = vsub.f32 %v2995, %v3039
    %v3060 = vsub.f32 %v2996, %v3042
    %v3061 = vsub.f32 %v2997, %v3045
    %v3062 = vmul.f32 %v3046, 1.442695
    %v3063 = vpow.pop %v3062
    %v3064 = vmul.f32 %v3047, 1.442695
    %v3065 = vpow.pop %v3064
    %v3066 = vmul.f32 %v3048, 1.442695
    %v3067 = vpow.pop %v3066
    %v3068 = vmul.f32 %v3049, 1.442695
    %v3069 = vpow.pop %v3068
    %v3070 = vmul.f32 %v3050, 1.442695
    %v3071 = vpow.pop %v3070
    %v3072 = vmul.f32 %v3051, 1.442695
    %v3073 = vpow.pop %v3072
    %v3074 = vmul.f32 %v3052, 1.442695
    %v3075 = vpow.pop %v3074
    %v3076 = vmul.f32 %v3053, 1.442695
    %v3077 = vpow.pop %v3076
    %v3078 = vmul.f32 %v3054, 1.442695
    %v3079 = vpow.pop %v3078
    %v3080 = vmul.f32 %v3055, 1.442695
    %v3081 = vpow.pop %v3080
    %v3082 = vmul.f32 %v3056, 1.442695
    %v3083 = vpow.pop %v3082
    %v3084 = vmul.f32 %v3057, 1.442695
    %v3085 = vpow.pop %v3084
    %v3086 = vmul.f32 %v3058, 1.442695
    %v3087 = vpow.pop %v3086
    %v3088 = vmul.f32 %v3059, 1.442695
    %v3089 = vpow.pop %v3088
    %v3090 = vmul.f32 %v3060, 1.442695
    %v3091 = vpow.pop %v3090
    %v3092 = vmul.f32 %v3061, 1.442695
    %v3093 = vpow.pop %v3092
    %v3094 = vsel %vm505, %v3063, 0.0
    %3095 = vadd.xlane.f32.xlu0 %v3094
    %v3096 = vpop.xlane.xlu0 %3095
    %v3097 = vsel %vm505, %v3065, 0.0
    %3098 = vadd.xlane.f32.xlu0 %v3097
    %v3099 = vpop.xlane.xlu0 %3098
    %v3100 = vsel %vm505, %v3067, 0.0
    %3101 = vadd.xlane.f32.xlu0 %v3100
    %v3102 = vpop.xlane.xlu0 %3101
    %v3103 = vsel %vm505, %v3069, 0.0
    %3104 = vadd.xlane.f32.xlu0 %v3103
    %v3105 = vpop.xlane.xlu0 %3104
    %v3106 = vsel %vm505, %v3071, 0.0
    %3107 = vadd.xlane.f32.xlu0 %v3106
    %v3108 = vpop.xlane.xlu0 %3107
    %v3109 = vsel %vm505, %v3073, 0.0
    %3110 = vadd.xlane.f32.xlu0 %v3109
    %v3111 = vpop.xlane.xlu0 %3110
    %v3112 = vsel %vm505, %v3075, 0.0
    %3113 = vadd.xlane.f32.xlu0 %v3112
    %v3114 = vpop.xlane.xlu0 %3113
    %v3115 = vsel %vm505, %v3077, 0.0
    %3116 = vadd.xlane.f32.xlu0 %v3115
    %v3117 = vpop.xlane.xlu0 %3116
    %v3118 = vsel %vm505, %v3079, 0.0
    %3119 = vadd.xlane.f32.xlu0 %v3118
    %v3120 = vpop.xlane.xlu0 %3119
    %v3121 = vsel %vm505, %v3081, 0.0
    %3122 = vadd.xlane.f32.xlu0 %v3121
    %v3123 = vpop.xlane.xlu0 %3122
    %v3124 = vsel %vm505, %v3083, 0.0
    %3125 = vadd.xlane.f32.xlu0 %v3124
    %v3126 = vpop.xlane.xlu0 %3125
    %v3127 = vsel %vm505, %v3085, 0.0
    %3128 = vadd.xlane.f32.xlu0 %v3127
    %v3129 = vpop.xlane.xlu0 %3128
    %v3130 = vsel %vm505, %v3087, 0.0
    %3131 = vadd.xlane.f32.xlu0 %v3130
    %v3132 = vpop.xlane.xlu0 %3131
    %v3133 = vsel %vm505, %v3089, 0.0
    %3134 = vadd.xlane.f32.xlu0 %v3133
    %v3135 = vpop.xlane.xlu0 %3134
    %v3136 = vsel %vm505, %v3091, 0.0
    %3137 = vadd.xlane.f32.xlu0 %v3136
    %v3138 = vpop.xlane.xlu0 %3137
    %v3139 = vsel %vm505, %v3093, 0.0
    %3140 = vadd.xlane.f32.xlu0 %v3139
    %v3141 = vpop.xlane.xlu0 %3140
    %v3142 = vrcp.pop %v3096
    %v3143 = vrcp.pop %v3099
    %v3144 = vrcp.pop %v3102
    %v3145 = vrcp.pop %v3105
    %v3146 = vrcp.pop %v3108
    %v3147 = vrcp.pop %v3111
    %v3148 = vrcp.pop %v3114
    %v3149 = vrcp.pop %v3117
    %v3150 = vrcp.pop %v3120
    %v3151 = vrcp.pop %v3123
    %v3152 = vrcp.pop %v3126
    %v3153 = vrcp.pop %v3129
    %v3154 = vrcp.pop %v3132
    %v3155 = vrcp.pop %v3135
    %v3156 = vrcp.pop %v3138
    %v3157 = vrcp.pop %v3141
    %v3158 = vmul.f32 %v3063, %v3142
    %v3159 = vmul.f32 %v3065, %v3143
    %v3160 = vmul.f32 %v3067, %v3144
    %v3161 = vmul.f32 %v3069, %v3145
    %v3162 = vmul.f32 %v3071, %v3146
    %v3163 = vmul.f32 %v3073, %v3147
    %v3164 = vmul.f32 %v3075, %v3148
    %v3165 = vmul.f32 %v3077, %v3149
    %v3166 = vmul.f32 %v3079, %v3150
    %v3167 = vmul.f32 %v3081, %v3151
    %v3168 = vmul.f32 %v3083, %v3152
    %v3169 = vmul.f32 %v3085, %v3153
    %v3170 = vmul.f32 %v3087, %v3154
    %v3171 = vmul.f32 %v3089, %v3155
    %v3172 = vmul.f32 %v3091, %v3156
    %v3173 = vmul.f32 %v3093, %v3157
    %v3174 = vpack.c.bf16 %v3159, %v3158
    %v3175 = vpack.c.bf16 %v3161, %v3160
    %v3176 = vpack.c.bf16 %v3163, %v3162
    %v3177 = vpack.c.bf16 %v3165, %v3164
    %v3178 = vpack.c.bf16 %v3167, %v3166
    %v3179 = vpack.c.bf16 %v3169, %v3168
    %v3180 = vpack.c.bf16 %v3171, %v3170
    %v3181 = vpack.c.bf16 %v3173, %v3172
    %3182 = vrot.lane.b32.xlu0 %v966, 32
    %v3183 = vpop.permute.xlu0 %3182
    %3184 = vrot.lane.b32.xlu0 %v967, 32
    %v3185 = vpop.permute.xlu0 %3184
    %v3189 = vsel %vm505, %v3174, 0
    %v3192 = vsel %vm505, %v3175, 0
    %3194 = vmatprep.subr.bf16.mxu0 0
    %3195 = vmatpush1.bf16.msra.mxu0 0
    %3196 = vmatprep.subr.bf16.mxu0 0
    %3197 = vmatpush1.bf16.msra.mxu0 0
    %3198 = vmatprep.subr.bf16.mxu0 0
    %3199 = vmatpush1.bf16.msra.mxu0 0
    %3200 = vmatprep.subr.bf16.mxu0 0
    %3201 = vmatpush1.bf16.msra.mxu0 0
    %3202 = vmatprep.subr.bf16.mxu0 0
    %3203 = vmatpush1.bf16.msra.mxu0 0
    %3204 = vmatprep.subr.bf16.mxu0 0
    %3205 = vmatpush1.bf16.msra.mxu0 0
    %3206 = vmatprep.subr.bf16.mxu0 0
    %3207 = vmatpush1.bf16.msra.mxu0 %v3185
    %3208 = vmatprep.subr.bf16.mxu0 0
    %3209 = vmatpush1.bf16.msra.mxu0 %v3183
    %3210 = vmatprep.subr.bf16.mxu0 0
    %3211 = vmatpush2.bf16.msra.mxu0 0
    %3212 = vmatprep.subr.bf16.mxu0 0
    %3213 = vmatpush2.bf16.msra.mxu0 0
    %3214 = vmatprep.subr.bf16.mxu0 0
    %3215 = vmatpush2.bf16.msra.mxu0 0
    %3216 = vmatprep.subr.bf16.mxu0 0
    %3217 = vmatpush2.bf16.msra.mxu0 0
    %3218 = vmatprep.subr.bf16.mxu0 0
    %3219 = vmatpush2.bf16.msra.mxu0 0
    %3220 = vmatprep.subr.bf16.mxu0 0
    %3221 = vmatpush2.bf16.msra.mxu0 0
    %3222 = vmatprep.subr.bf16.mxu0 0
    %3223 = vmatpush2.bf16.msra.mxu0 0
    %3224 = vmatprep.subr.bf16.mxu0 0
    %3225 = vmatpush2.bf16.msra.mxu0 0
    %3226 = vmatprep.mubr.bf16.mxu0 0
    %3227 = vmatmul.mubr.bf16.gmra.mxu0 %v3189
    %v3228 = vpop.f32.mrf.mxu0
    %v3229 = vadd.f32 0.0, %v3228
    %v3230 = vpop.f32.mrf.mxu0
    %v3231 = vpop.f32.mrf.mxu0
    %v3232 = vadd.f32 0.0, %v3231
    %v3233 = vpop.f32.mrf.mxu0
    %3234 = vmatprep.mubr.bf16.mxu0 0
    %3235 = vmatmul.mubr.bf16.gmra.mxu0 %v3192
    %v3236 = vpop.f32.mrf.mxu0
    %v3237 = vadd.f32 0.0, %v3236
    %v3238 = vpop.f32.mrf.mxu0
    %v3239 = vpop.f32.mrf.mxu0
    %v3240 = vadd.f32 0.0, %v3239
    %v3241 = vpop.f32.mrf.mxu0
    %3242 = vdwg.mxu0
    %3243 = vrot.lane.b32.xlu0 %v968, 32
    %v3244 = vpop.permute.xlu0 %3243
    %3245 = vrot.lane.b32.xlu0 %v969, 32
    %v3246 = vpop.permute.xlu0 %3245
    %v3250 = vsel %vm505, %v3176, 0
    %v3253 = vsel %vm505, %v3177, 0
    %3255 = vmatprep.subr.bf16.mxu0 0
    %3256 = vmatpush1.bf16.msra.mxu0 0
    %3257 = vmatprep.subr.bf16.mxu0 0
    %3258 = vmatpush1.bf16.msra.mxu0 0
    %3259 = vmatprep.subr.bf16.mxu0 0
    %3260 = vmatpush1.bf16.msra.mxu0 0
    %3261 = vmatprep.subr.bf16.mxu0 0
    %3262 = vmatpush1.bf16.msra.mxu0 0
    %3263 = vmatprep.subr.bf16.mxu0 0
    %3264 = vmatpush1.bf16.msra.mxu0 0
    %3265 = vmatprep.subr.bf16.mxu0 0
    %3266 = vmatpush1.bf16.msra.mxu0 0
    %3267 = vmatprep.subr.bf16.mxu0 0
    %3268 = vmatpush1.bf16.msra.mxu0 %v3246
    %3269 = vmatprep.subr.bf16.mxu0 0
    %3270 = vmatpush1.bf16.msra.mxu0 %v3244
    %3271 = vmatprep.subr.bf16.mxu0 0
    %3272 = vmatpush2.bf16.msra.mxu0 0
    %3273 = vmatprep.subr.bf16.mxu0 0
    %3274 = vmatpush2.bf16.msra.mxu0 0
    %3275 = vmatprep.subr.bf16.mxu0 0
    %3276 = vmatpush2.bf16.msra.mxu0 0
    %3277 = vmatprep.subr.bf16.mxu0 0
    %3278 = vmatpush2.bf16.msra.mxu0 0
    %3279 = vmatprep.subr.bf16.mxu0 0
    %3280 = vmatpush2.bf16.msra.mxu0 0
    %3281 = vmatprep.subr.bf16.mxu0 0
    %3282 = vmatpush2.bf16.msra.mxu0 0
    %3283 = vmatprep.subr.bf16.mxu0 0
    %3284 = vmatpush2.bf16.msra.mxu0 0
    %3285 = vmatprep.subr.bf16.mxu0 0
    %3286 = vmatpush2.bf16.msra.mxu0 0
    %3287 = vmatprep.mubr.bf16.mxu0 0
    %3288 = vmatmul.mubr.bf16.gmra.mxu0 %v3250
    %v3289 = vpop.f32.mrf.mxu0
    %v3290 = vadd.f32 0.0, %v3289
    %v3291 = vpop.f32.mrf.mxu0
    %v3292 = vpop.f32.mrf.mxu0
    %v3293 = vadd.f32 0.0, %v3292
    %v3294 = vpop.f32.mrf.mxu0
    %3295 = vmatprep.mubr.bf16.mxu0 0
    %3296 = vmatmul.mubr.bf16.gmra.mxu0 %v3253
    %v3297 = vpop.f32.mrf.mxu0
    %v3298 = vadd.f32 0.0, %v3297
    %v3299 = vpop.f32.mrf.mxu0
    %v3300 = vpop.f32.mrf.mxu0
    %v3301 = vadd.f32 0.0, %v3300
    %v3302 = vpop.f32.mrf.mxu0
    %3303 = vdwg.mxu0
    %3304 = vrot.lane.b32.xlu0 %v970, 32
    %v3305 = vpop.permute.xlu0 %3304
    %3306 = vrot.lane.b32.xlu0 %v971, 32
    %v3307 = vpop.permute.xlu0 %3306
    %v3311 = vsel %vm505, %v3178, 0
    %v3314 = vsel %vm505, %v3179, 0
    %3316 = vmatprep.subr.bf16.mxu0 0
    %3317 = vmatpush1.bf16.msra.mxu0 0
    %3318 = vmatprep.subr.bf16.mxu0 0
    %3319 = vmatpush1.bf16.msra.mxu0 0
    %3320 = vmatprep.subr.bf16.mxu0 0
    %3321 = vmatpush1.bf16.msra.mxu0 0
    %3322 = vmatprep.subr.bf16.mxu0 0
    %3323 = vmatpush1.bf16.msra.mxu0 0
    %3324 = vmatprep.subr.bf16.mxu0 0
    %3325 = vmatpush1.bf16.msra.mxu0 0
    %3326 = vmatprep.subr.bf16.mxu0 0
    %3327 = vmatpush1.bf16.msra.mxu0 0
    %3328 = vmatprep.subr.bf16.mxu0 0
    %3329 = vmatpush1.bf16.msra.mxu0 %v3307
    %3330 = vmatprep.subr.bf16.mxu0 0
    %3331 = vmatpush1.bf16.msra.mxu0 %v3305
    %3332 = vmatprep.subr.bf16.mxu0 0
    %3333 = vmatpush2.bf16.msra.mxu0 0
    %3334 = vmatprep.subr.bf16.mxu0 0
    %3335 = vmatpush2.bf16.msra.mxu0 0
    %3336 = vmatprep.subr.bf16.mxu0 0
    %3337 = vmatpush2.bf16.msra.mxu0 0
    %3338 = vmatprep.subr.bf16.mxu0 0
    %3339 = vmatpush2.bf16.msra.mxu0 0
    %3340 = vmatprep.subr.bf16.mxu0 0
    %3341 = vmatpush2.bf16.msra.mxu0 0
    %3342 = vmatprep.subr.bf16.mxu0 0
    %3343 = vmatpush2.bf16.msra.mxu0 0
    %3344 = vmatprep.subr.bf16.mxu0 0
    %3345 = vmatpush2.bf16.msra.mxu0 0
    %3346 = vmatprep.subr.bf16.mxu0 0
    %3347 = vmatpush2.bf16.msra.mxu0 0
    %3348 = vmatprep.mubr.bf16.mxu0 0
    %3349 = vmatmul.mubr.bf16.gmra.mxu0 %v3311
    %v3350 = vpop.f32.mrf.mxu0
    %v3351 = vadd.f32 0.0, %v3350
    %v3352 = vpop.f32.mrf.mxu0
    %v3353 = vpop.f32.mrf.mxu0
    %v3354 = vadd.f32 0.0, %v3353
    %v3355 = vpop.f32.mrf.mxu0
    %3356 = vmatprep.mubr.bf16.mxu0 0
    %3357 = vmatmul.mubr.bf16.gmra.mxu0 %v3314
    %v3358 = vpop.f32.mrf.mxu0
    %v3359 = vadd.f32 0.0, %v3358
    %v3360 = vpop.f32.mrf.mxu0
    %v3361 = vpop.f32.mrf.mxu0
    %v3362 = vadd.f32 0.0, %v3361
    %v3363 = vpop.f32.mrf.mxu0
    %3364 = vdwg.mxu0
    %3365 = vrot.lane.b32.xlu0 %v972, 32
    %v3366 = vpop.permute.xlu0 %3365
    %3367 = vrot.lane.b32.xlu0 %v973, 32
    %v3368 = vpop.permute.xlu0 %3367
    %v3372 = vsel %vm505, %v3180, 0
    %v3375 = vsel %vm505, %v3181, 0
    %3377 = vmatprep.subr.bf16.mxu0 0
    %3378 = vmatpush1.bf16.msra.mxu0 0
    %3379 = vmatprep.subr.bf16.mxu0 0
    %3380 = vmatpush1.bf16.msra.mxu0 0
    %3381 = vmatprep.subr.bf16.mxu0 0
    %3382 = vmatpush1.bf16.msra.mxu0 0
    %3383 = vmatprep.subr.bf16.mxu0 0
    %3384 = vmatpush1.bf16.msra.mxu0 0
    %3385 = vmatprep.subr.bf16.mxu0 0
    %3386 = vmatpush1.bf16.msra.mxu0 0
    %3387 = vmatprep.subr.bf16.mxu0 0
    %3388 = vmatpush1.bf16.msra.mxu0 0
    %3389 = vmatprep.subr.bf16.mxu0 0
    %3390 = vmatpush1.bf16.msra.mxu0 %v3368
    %3391 = vmatprep.subr.bf16.mxu0 0
    %3392 = vmatpush1.bf16.msra.mxu0 %v3366
    %3393 = vmatprep.subr.bf16.mxu0 0
    %3394 = vmatpush2.bf16.msra.mxu0 0
    %3395 = vmatprep.subr.bf16.mxu0 0
    %3396 = vmatpush2.bf16.msra.mxu0 0
    %3397 = vmatprep.subr.bf16.mxu0 0
    %3398 = vmatpush2.bf16.msra.mxu0 0
    %3399 = vmatprep.subr.bf16.mxu0 0
    %3400 = vmatpush2.bf16.msra.mxu0 0
    %3401 = vmatprep.subr.bf16.mxu0 0
    %3402 = vmatpush2.bf16.msra.mxu0 0
    %3403 = vmatprep.subr.bf16.mxu0 0
    %3404 = vmatpush2.bf16.msra.mxu0 0
    %3405 = vmatprep.subr.bf16.mxu0 0
    %3406 = vmatpush2.bf16.msra.mxu0 0
    %3407 = vmatprep.subr.bf16.mxu0 0
    %3408 = vmatpush2.bf16.msra.mxu0 0
    %3409 = vmatprep.mubr.bf16.mxu0 0
    %3410 = vmatmul.mubr.bf16.gmra.mxu0 %v3372
    %v3411 = vpop.f32.mrf.mxu0
    %v3412 = vadd.f32 0.0, %v3411
    %v3413 = vpop.f32.mrf.mxu0
    %v3414 = vpop.f32.mrf.mxu0
    %v3415 = vadd.f32 0.0, %v3414
    %v3416 = vpop.f32.mrf.mxu0
    %3417 = vmatprep.mubr.bf16.mxu0 0
    %3418 = vmatmul.mubr.bf16.gmra.mxu0 %v3375
    %v3419 = vpop.f32.mrf.mxu0
    %v3420 = vadd.f32 0.0, %v3419
    %v3421 = vpop.f32.mrf.mxu0
    %v3422 = vpop.f32.mrf.mxu0
    %v3423 = vadd.f32 0.0, %v3422
    %v3424 = vpop.f32.mrf.mxu0
    %3425 = vdwg.mxu0
    %3442 = vrot.lane.b32.xlu0 %v1751, 32
    %v3443 = vpop.permute.xlu0 %3442
    %3444 = vrot.lane.b32.xlu0 %v1754, 32
    %v3445 = vpop.permute.xlu0 %3444
    %3446 = vrot.lane.b32.xlu0 %v1759, 32
    %v3447 = vpop.permute.xlu0 %3446
    %3448 = vrot.lane.b32.xlu0 %v1762, 32
    %v3449 = vpop.permute.xlu0 %3448
    %3450 = vrot.lane.b32.xlu0 %v1814, 32
    %v3451 = vpop.permute.xlu0 %3450
    %3452 = vrot.lane.b32.xlu0 %v1817, 32
    %v3453 = vpop.permute.xlu0 %3452
    %3454 = vrot.lane.b32.xlu0 %v1822, 32
    %v3455 = vpop.permute.xlu0 %3454
    %3456 = vrot.lane.b32.xlu0 %v1825, 32
    %v3457 = vpop.permute.xlu0 %3456
    %3458 = vrot.lane.b32.xlu0 %v1877, 32
    %v3459 = vpop.permute.xlu0 %3458
    %3460 = vrot.lane.b32.xlu0 %v1880, 32
    %v3461 = vpop.permute.xlu0 %3460
    %3462 = vrot.lane.b32.xlu0 %v1885, 32
    %v3463 = vpop.permute.xlu0 %3462
    %3464 = vrot.lane.b32.xlu0 %v1888, 32
    %v3465 = vpop.permute.xlu0 %3464
    %3466 = vrot.lane.b32.xlu0 %v1940, 32
    %v3467 = vpop.permute.xlu0 %3466
    %3468 = vrot.lane.b32.xlu0 %v1943, 32
    %v3469 = vpop.permute.xlu0 %3468
    %3470 = vrot.lane.b32.xlu0 %v1948, 32
    %v3471 = vpop.permute.xlu0 %3470
    %3472 = vrot.lane.b32.xlu0 %v1951, 32
    %v3473 = vpop.permute.xlu0 %3472
    %3506 = vrot.lane.b32.xlu0 %v2493, 64
    %v3507 = vpop.permute.xlu0 %3506
    %3508 = vrot.lane.b32.xlu0 %v2496, 64
    %v3509 = vpop.permute.xlu0 %3508
    %3510 = vrot.lane.b32.xlu0 %v2501, 64
    %v3511 = vpop.permute.xlu0 %3510
    %3512 = vrot.lane.b32.xlu0 %v2504, 64
    %v3513 = vpop.permute.xlu0 %3512
    %3514 = vrot.lane.b32.xlu0 %v2554, 64
    %v3515 = vpop.permute.xlu0 %3514
    %3516 = vrot.lane.b32.xlu0 %v2557, 64
    %v3517 = vpop.permute.xlu0 %3516
    %3518 = vrot.lane.b32.xlu0 %v2562, 64
    %v3519 = vpop.permute.xlu0 %3518
    %3520 = vrot.lane.b32.xlu0 %v2565, 64
    %v3521 = vpop.permute.xlu0 %3520
    %3522 = vrot.lane.b32.xlu0 %v2615, 64
    %v3523 = vpop.permute.xlu0 %3522
    %3524 = vrot.lane.b32.xlu0 %v2618, 64
    %v3525 = vpop.permute.xlu0 %3524
    %3526 = vrot.lane.b32.xlu0 %v2623, 64
    %v3527 = vpop.permute.xlu0 %3526
    %3528 = vrot.lane.b32.xlu0 %v2626, 64
    %v3529 = vpop.permute.xlu0 %3528
    %3530 = vrot.lane.b32.xlu0 %v2676, 64
    %v3531 = vpop.permute.xlu0 %3530
    %3532 = vrot.lane.b32.xlu0 %v2679, 64
    %v3533 = vpop.permute.xlu0 %3532
    %3534 = vrot.lane.b32.xlu0 %v2684, 64
    %v3535 = vpop.permute.xlu0 %3534
    %3536 = vrot.lane.b32.xlu0 %v2687, 64
    %v3537 = vpop.permute.xlu0 %3536
    %3570 = vrot.lane.b32.xlu0 %v3229, 96
    %v3571 = vpop.permute.xlu0 %3570
    %3572 = vrot.lane.b32.xlu0 %v3232, 96
    %v3573 = vpop.permute.xlu0 %3572
    %3574 = vrot.lane.b32.xlu0 %v3237, 96
    %v3575 = vpop.permute.xlu0 %3574
    %3576 = vrot.lane.b32.xlu0 %v3240, 96
    %v3577 = vpop.permute.xlu0 %3576
    %3578 = vrot.lane.b32.xlu0 %v3290, 96
    %v3579 = vpop.permute.xlu0 %3578
    %3580 = vrot.lane.b32.xlu0 %v3293, 96
    %v3581 = vpop.permute.xlu0 %3580
    %3582 = vrot.lane.b32.xlu0 %v3298, 96
    %v3583 = vpop.permute.xlu0 %3582
    %3584 = vrot.lane.b32.xlu0 %v3301, 96
    %v3585 = vpop.permute.xlu0 %3584
    %3586 = vrot.lane.b32.xlu0 %v3351, 96
    %v3587 = vpop.permute.xlu0 %3586
    %3588 = vrot.lane.b32.xlu0 %v3354, 96
    %v3589 = vpop.permute.xlu0 %3588
    %3590 = vrot.lane.b32.xlu0 %v3359, 96
    %v3591 = vpop.permute.xlu0 %3590
    %3592 = vrot.lane.b32.xlu0 %v3362, 96
    %v3593 = vpop.permute.xlu0 %3592
    %3594 = vrot.lane.b32.xlu0 %v3412, 96
    %v3595 = vpop.permute.xlu0 %3594
    %3596 = vrot.lane.b32.xlu0 %v3415, 96
    %v3597 = vpop.permute.xlu0 %3596
    %3598 = vrot.lane.b32.xlu0 %v3420, 96
    %v3599 = vpop.permute.xlu0 %3598
    %3600 = vrot.lane.b32.xlu0 %v3423, 96
    %v3601 = vpop.permute.xlu0 %3600
    %v3618 = vsel %vm505, %v1015, %v3443
    %v3619 = vsel %vm505, %v1018, %v3445
    %v3620 = vsel %vm505, %v1023, %v3447
    %v3621 = vsel %vm505, %v1026, %v3449
    %v3622 = vsel %vm505, %v1070, %v3451
    %v3623 = vsel %vm505, %v1073, %v3453
    %v3624 = vsel %vm505, %v1078, %v3455
    %v3625 = vsel %vm505, %v1081, %v3457
    %v3626 = vsel %vm505, %v1125, %v3459
    %v3627 = vsel %vm505, %v1128, %v3461
    %v3628 = vsel %vm505, %v1133, %v3463
    %v3629 = vsel %vm505, %v1136, %v3465
    %v3630 = vsel %vm505, %v1180, %v3467
    %v3631 = vsel %vm505, %v1183, %v3469
    %v3632 = vsel %vm505, %v1188, %v3471
    %v3633 = vsel %vm505, %v1191, %v3473
    %vm3634 = vcmask 523264
    %v3635 = vsel %vm3634, %v3618, %v3507
    %v3636 = vsel %vm3634, %v3619, %v3509
    %v3637 = vsel %vm3634, %v3620, %v3511
    %v3638 = vsel %vm3634, %v3621, %v3513
    %v3639 = vsel %vm3634, %v3622, %v3515
    %v3640 = vsel %vm3634, %v3623, %v3517
    %v3641 = vsel %vm3634, %v3624, %v3519
    %v3642 = vsel %vm3634, %v3625, %v3521
    %v3643 = vsel %vm3634, %v3626, %v3523
    %v3644 = vsel %vm3634, %v3627, %v3525
    %v3645 = vsel %vm3634, %v3628, %v3527
    %v3646 = vsel %vm3634, %v3629, %v3529
    %v3647 = vsel %vm3634, %v3630, %v3531
    %v3648 = vsel %vm3634, %v3631, %v3533
    %v3649 = vsel %vm3634, %v3632, %v3535
    %v3650 = vsel %vm3634, %v3633, %v3537
    %vm3651 = vcmask 785408
    %v3652 = vsel %vm3651, %v3635, %v3571
    %v3653 = vsel %vm3651, %v3636, %v3573
    %v3654 = vsel %vm3651, %v3637, %v3575
    %v3655 = vsel %vm3651, %v3638, %v3577
    %v3656 = vsel %vm3651, %v3639, %v3579
    %v3657 = vsel %vm3651, %v3640, %v3581
    %v3658 = vsel %vm3651, %v3641, %v3583
    %v3659 = vsel %vm3651, %v3642, %v3585
    %v3660 = vsel %vm3651, %v3643, %v3587
    %v3661 = vsel %vm3651, %v3644, %v3589
    %v3662 = vsel %vm3651, %v3645, %v3591
    %v3663 = vsel %vm3651, %v3646, %v3593
    %v3664 = vsel %vm3651, %v3647, %v3595
    %v3665 = vsel %vm3651, %v3648, %v3597
    %v3666 = vsel %vm3651, %v3649, %v3599
    %v3667 = vsel %vm3651, %v3650, %v3601
    %v3668 = vpack.c.bf16 %v3653, %v3652
    %v3669 = vpack.c.bf16 %v3655, %v3654
    %v3670 = vpack.c.bf16 %v3657, %v3656
    %v3671 = vpack.c.bf16 %v3659, %v3658
    %v3672 = vpack.c.bf16 %v3661, %v3660
    %v3673 = vpack.c.bf16 %v3663, %v3662
    %v3674 = vpack.c.bf16 %v3665, %v3664
    %v3675 = vpack.c.bf16 %v3667, %v3666
    %v3676 = vld [vmem:[#allocation7] sm:$0xf]
    %v3677 = vld [vmem:[#allocation7 + $0x4] sm:$0xf]
    %v3678 = vld [vmem:[#allocation7 + $0x8] sm:$0xf]
    %v3679 = vld [vmem:[#allocation7 + $0xc] sm:$0xf]
    %v3680 = vld [vmem:[#allocation7 + $0x10] sm:$0xf]
    %v3681 = vld [vmem:[#allocation7 + $0x14] sm:$0xf]
    %v3682 = vld [vmem:[#allocation7 + $0x18] sm:$0xf]
    %v3683 = vld [vmem:[#allocation7 + $0x1c] sm:$0xf]
    %v3684 = vld [vmem:[#allocation7 + $0x20] sm:$0xf]
    %v3685 = vld [vmem:[#allocation7 + $0x24] sm:$0xf]
    %v3686 = vld [vmem:[#allocation7 + $0x28] sm:$0xf]
    %v3687 = vld [vmem:[#allocation7 + $0x2c] sm:$0xf]
    %v3688 = vld [vmem:[#allocation7 + $0x30] sm:$0xf]
    %v3689 = vld [vmem:[#allocation7 + $0x34] sm:$0xf]
    %v3690 = vld [vmem:[#allocation7 + $0x38] sm:$0xf]
    %v3691 = vld [vmem:[#allocation7 + $0x3c] sm:$0xf]
    %v3692 = vld [vmem:[%s4] sm:$0x1]
    %v3694 = vlaneseq
    %v3695 = vshrl.u32 %v3694, 7
    %v3696 = vsub.s32 0, %v3695
    %v3697 = vrot.slane %v3692, %v3696
    %v3715 = vunpack.c.l.b16 %v3676
    %v3716 = vunpack.c.l.b16 %v3677
    %v3717 = vunpack.c.l.b16 %v3678
    %v3718 = vunpack.c.l.b16 %v3679
    %v3719 = vunpack.c.l.b16 %v3680
    %v3720 = vunpack.c.l.b16 %v3681
    %v3721 = vunpack.c.l.b16 %v3682
    %v3722 = vunpack.c.l.b16 %v3683
    %v3723 = vunpack.c.l.b16 %v3684
    %v3724 = vunpack.c.l.b16 %v3685
    %v3725 = vunpack.c.l.b16 %v3686
    %v3726 = vunpack.c.l.b16 %v3687
    %v3727 = vunpack.c.l.b16 %v3688
    %v3728 = vunpack.c.l.b16 %v3689
    %v3729 = vunpack.c.l.b16 %v3690
    %v3730 = vunpack.c.l.b16 %v3691
    %v3731 = vpack.c.b16 %v3716, %v3715
    %v3732 = vpack.c.b16 %v3718, %v3717
    %v3733 = vpack.c.b16 %v3720, %v3719
    %v3734 = vpack.c.b16 %v3722, %v3721
    %v3735 = vpack.c.b16 %v3724, %v3723
    %v3736 = vpack.c.b16 %v3726, %v3725
    %v3737 = vpack.c.b16 %v3728, %v3727
    %v3738 = vpack.c.b16 %v3730, %v3729
    %3747 = vmatprep.subr.bf16.mxu0 0
    %3748 = vmatpush1.bf16.msra.mxu0 %v3738
    %3749 = vmatprep.subr.bf16.mxu0 0
    %3750 = vmatpush1.bf16.msra.mxu0 %v3737
    %3751 = vmatprep.subr.bf16.mxu0 0
    %3752 = vmatpush1.bf16.msra.mxu0 %v3736
    %3753 = vmatprep.subr.bf16.mxu0 0
    %3754 = vmatpush1.bf16.msra.mxu0 %v3735
    %3755 = vmatprep.subr.bf16.mxu0 0
    %3756 = vmatpush1.bf16.msra.mxu0 %v3734
    %3757 = vmatprep.subr.bf16.mxu0 0
    %3758 = vmatpush1.bf16.msra.mxu0 %v3733
    %3759 = vmatprep.subr.bf16.mxu0 0
    %3760 = vmatpush1.bf16.msra.mxu0 %v3732
    %3761 = vmatprep.subr.bf16.mxu0 0
    %3762 = vmatpush1.bf16.msra.mxu0 %v3731
    %3763 = vmatprep.subr.bf16.mxu0 0
    %3764 = vmatpush2.bf16.msra.mxu0 0
    %3765 = vmatprep.subr.bf16.mxu0 0
    %3766 = vmatpush2.bf16.msra.mxu0 0
    %3767 = vmatprep.subr.bf16.mxu0 0
    %3768 = vmatpush2.bf16.msra.mxu0 0
    %3769 = vmatprep.subr.bf16.mxu0 0
    %3770 = vmatpush2.bf16.msra.mxu0 0
    %3771 = vmatprep.subr.bf16.mxu0 0
    %3772 = vmatpush2.bf16.msra.mxu0 0
    %3773 = vmatprep.subr.bf16.mxu0 0
    %3774 = vmatpush2.bf16.msra.mxu0 0
    %3775 = vmatprep.subr.bf16.mxu0 0
    %3776 = vmatpush2.bf16.msra.mxu0 0
    %3777 = vmatprep.subr.bf16.mxu0 0
    %3778 = vmatpush2.bf16.msra.mxu0 0
    %3779 = vmatprep.mubr.bf16.mxu0 0
    %3780 = vmatmul.mubr.bf16.gmra.mxu0 %v3668
    %v3781 = vpop.f32.mrf.mxu0
    %v3782 = vadd.f32 %v3697, %v3781
    %v3783 = vpop.f32.mrf.mxu0
    %v3784 = vpop.f32.mrf.mxu0
    %v3785 = vadd.f32 %v3697, %v3784
    %v3786 = vpop.f32.mrf.mxu0
    %3787 = vmatprep.mubr.bf16.mxu0 0
    %3788 = vmatmul.mubr.bf16.gmra.mxu0 %v3669
    %v3789 = vpop.f32.mrf.mxu0
    %v3790 = vadd.f32 %v3697, %v3789
    %v3791 = vpop.f32.mrf.mxu0
    %v3792 = vpop.f32.mrf.mxu0
    %v3793 = vadd.f32 %v3697, %v3792
    %v3794 = vpop.f32.mrf.mxu0
    %3795 = vmatprep.mubr.bf16.mxu0 0
    %3796 = vmatmul.mubr.bf16.gmra.mxu0 %v3670
    %v3797 = vpop.f32.mrf.mxu0
    %v3798 = vadd.f32 %v3697, %v3797
    %v3799 = vpop.f32.mrf.mxu0
    %v3800 = vpop.f32.mrf.mxu0
    %v3801 = vadd.f32 %v3697, %v3800
    %v3802 = vpop.f32.mrf.mxu0
    %3803 = vmatprep.mubr.bf16.mxu0 0
    %3804 = vmatmul.mubr.bf16.gmra.mxu0 %v3671
    %v3805 = vpop.f32.mrf.mxu0
    %v3806 = vadd.f32 %v3697, %v3805
    %v3807 = vpop.f32.mrf.mxu0
    %v3808 = vpop.f32.mrf.mxu0
    %v3809 = vadd.f32 %v3697, %v3808
    %v3810 = vpop.f32.mrf.mxu0
    %3811 = vmatprep.mubr.bf16.mxu0 0
    %3812 = vmatmul.mubr.bf16.gmra.mxu0 %v3672
    %v3813 = vpop.f32.mrf.mxu0
    %v3814 = vadd.f32 %v3697, %v3813
    %v3815 = vpop.f32.mrf.mxu0
    %v3816 = vpop.f32.mrf.mxu0
    %v3817 = vadd.f32 %v3697, %v3816
    %v3818 = vpop.f32.mrf.mxu0
    %3819 = vmatprep.mubr.bf16.mxu0 0
    %3820 = vmatmul.mubr.bf16.gmra.mxu0 %v3673
    %v3821 = vpop.f32.mrf.mxu0
    %v3822 = vadd.f32 %v3697, %v3821
    %v3823 = vpop.f32.mrf.mxu0
    %v3824 = vpop.f32.mrf.mxu0
    %v3825 = vadd.f32 %v3697, %v3824
    %v3826 = vpop.f32.mrf.mxu0
    %3827 = vmatprep.mubr.bf16.mxu0 0
    %3828 = vmatmul.mubr.bf16.gmra.mxu0 %v3674
    %v3829 = vpop.f32.mrf.mxu0
    %v3830 = vadd.f32 %v3697, %v3829
    %v3831 = vpop.f32.mrf.mxu0
    %v3832 = vpop.f32.mrf.mxu0
    %v3833 = vadd.f32 %v3697, %v3832
    %v3834 = vpop.f32.mrf.mxu0
    %3835 = vmatprep.mubr.bf16.mxu0 0
    %3836 = vmatmul.mubr.bf16.gmra.mxu0 %v3675
    %v3837 = vpop.f32.mrf.mxu0
    %v3838 = vadd.f32 %v3697, %v3837
    %v3839 = vpop.f32.mrf.mxu0
    %v3840 = vpop.f32.mrf.mxu0
    %v3841 = vadd.f32 %v3697, %v3840
    %v3842 = vpop.f32.mrf.mxu0
    %3843 = vdwg.mxu0
    %3844 = vst [vmem:[#allocation8] sm:$0xff] %v3782
    %3845 = vst [vmem:[#allocation8 + $0x8] sm:$0xff] %v3785
    %3846 = vst [vmem:[#allocation8 + $0x10] sm:$0xff] %v3790
    %3847 = vst [vmem:[#allocation8 + $0x18] sm:$0xff] %v3793
    %3848 = vst [vmem:[#allocation8 + $0x20] sm:$0xff] %v3798
    %3849 = vst [vmem:[#allocation8 + $0x28] sm:$0xff] %v3801
    %3850 = vst [vmem:[#allocation8 + $0x30] sm:$0xff] %v3806
    %3851 = vst [vmem:[#allocation8 + $0x38] sm:$0xff] %v3809
    %3852 = vst [vmem:[#allocation8 + $0x40] sm:$0xff] %v3814
    %3853 = vst [vmem:[#allocation8 + $0x48] sm:$0xff] %v3817
    %3854 = vst [vmem:[#allocation8 + $0x50] sm:$0xff] %v3822
    %3855 = vst [vmem:[#allocation8 + $0x58] sm:$0xff] %v3825
    %3856 = vst [vmem:[#allocation8 + $0x60] sm:$0xff] %v3830
    %3857 = vst [vmem:[#allocation8 + $0x68] sm:$0xff] %v3833
    %3858 = vst [vmem:[#allocation8 + $0x70] sm:$0xff] %v3838
    %3859 = vst [vmem:[#allocation8 + $0x78] sm:$0xff] %v3841
    // Predicated region
    $region34: #{causal_self_attention.1} parent=1 // pred_check
      _
    $region35: #{causal_self_attention.1} parent=1 // pred_check_branch
      %3861 = sbr.rel (0) target = $region37
    $region36: #{causal_self_attention.1} parent=1 // pred_region
      %s3863 = ssub.s32 2048, 2048
      %3864 = vsyncadd [#allocation4], %s3863
      %s3865 = sshll.u32 [#allocation8], 4
      %s3866 = int_to_ptr.vmem [resolvable:$true] %s3865
      %3871 = dma.vmem_to_hbm [thread:$0]  %s3866, 2048, %s5, [#allocation4], 128, 128, 8
    $region37: #{causal_self_attention.1} parent=1 // pred_fallthru
      _
    // Predicated region
    $region38: #{causal_self_attention.1} parent=1 // pred_check
      _
    $region39: #{causal_self_attention.1} parent=1 // pred_check_branch
      %3873 = sbr.rel (0) target = $region41
    $region40: #{causal_self_attention.1} parent=1 // pred_region
      %3874 = dma.done [#allocation4], 2048
    $region41: #{causal_self_attention.1} parent=1 // pred_fallthru
      _
    %3875 = vsyncpa [#allocation3], 1
    %3876 = vsyncpa [#allocation6], 1
    %3877 = vsyncpa [#allocation4], 1

</llo_original>
